<compile_context>
chip_gen: v6e
topology: v6e:2x2x1
jax: 0.10.0
libtpu: 0.0.40
codegen_flags: <defaults>
</compile_context>

<pallas_src>
import functools
import math
import random as pyrandom

import jax
import jax.numpy as jnp
import numpy as np
from jax.experimental import pallas as pl
from jax.experimental.pallas import tpu as pltpu


# ------------------------------ Pallas kernel ------------------------------ #

def _nar_loss_kernel(x_ref, kbias_ref,
                     wq_ref, wk_ref, wv_ref, bq_ref, bk_ref, bv_ref,
                     wo_ref, bo_ref,
                     w1_ref, b1_ref, w2_ref, b2_ref,
                     g1_ref, be1_ref, g2_ref, be2_ref,
                     embt_ref, y_ref,
                     loss_ref, cnt_ref,
                     *, n_layers, n_heads, ignore_ind, tail_start, ln_eps=1e-5):
    """Whole NAR training forward for one batch element.

    x_ref:     (1, T, D)        concatenated (text | prom | code) embeddings, f32
    kbias_ref: (1, 1, T)        additive key-validity bias row (0 valid / -1e9 padded), f32
    w*_ref:    bf16 weights already transposed to (in, out); biases/LN params f32 (1, ...)
    embt_ref:  (D, V)  bf16     wave_emb[i].weight.T
    y_ref:     (1, tail_len, 1) int32 targets over the gt tail (prefix rows = ignore_ind)
    loss_ref:  (1, 1, 1)        sum of per-token CE over valid tokens
    cnt_ref:   (1, 1, 1)        number of valid tokens
    """
    seq, d_model = x_ref.shape[1], x_ref.shape[2]
    dh = d_model // n_heads
    scale = 1.0 / math.sqrt(dh)
    bf16 = jnp.bfloat16

    x0 = x_ref[0]                 # (T, D) f32 residual stream
    attn_bias = kbias_ref[0]      # (1, T) f32 additive key bias

    wq = wq_ref[...]; wk = wk_ref[...]; wv = wv_ref[...]      # bf16 (D, D)
    bq = bq_ref[...]; bk = bk_ref[...]; bv = bv_ref[...]      # f32  (1, D)
    wo = wo_ref[...]; bo = bo_ref[...]
    w1 = w1_ref[...]; b1 = b1_ref[...]
    w2 = w2_ref[...]; b2 = b2_ref[...]
    g1 = g1_ref[...]; be1 = be1_ref[...]
    g2 = g2_ref[...]; be2 = be2_ref[...]

    def layer_norm(v, g, b):
        mu = jnp.mean(v, axis=-1, keepdims=True)
        var = jnp.mean((v - mu) * (v - mu), axis=-1, keepdims=True)
        return (v - mu) * jax.lax.rsqrt(var + ln_eps) * g + b

    def layer(xin):
        # MXU work in bf16 (f32 accumulation); everything elementwise stays f32.
        xb = xin.astype(bf16)
        q = jnp.dot(xb, wq, preferred_element_type=jnp.float32) + bq
        k = jnp.dot(xb, wk, preferred_element_type=jnp.float32) + bk
        v = jnp.dot(xb, wv, preferred_element_type=jnp.float32) + bv
        q16, k16, v16 = q.astype(bf16), k.astype(bf16), v.astype(bf16)

        heads = []
        for h in range(n_heads):
            lo, hi = h * dh, (h + 1) * dh
            s = jax.lax.dot_general(q16[:, lo:hi], k16[:, lo:hi],
                                    (((1,), (1,)), ((), ())),
                                    preferred_element_type=jnp.float32) * scale
            s = s + attn_bias                                   # f32 mask add
            s = s - jnp.max(s, axis=-1, keepdims=True)
            p = jnp.exp(s)
            p = p * pl.reciprocal(jnp.sum(p, axis=-1, keepdims=True), approx=True)
            heads.append(jnp.dot(p.astype(bf16), v16[:, lo:hi],
                                 preferred_element_type=jnp.float32))       # (T, dh)
        # Reassemble heads lane-dense -> one full-width output projection.
        o = jnp.concatenate(heads, axis=-1)                                  # (T, D)
        attn = jnp.dot(o.astype(bf16), wo, preferred_element_type=jnp.float32) + bo

        xmid = layer_norm(xin + attn, g1, be1)
        hmid = jnp.dot(xmid.astype(bf16), w1, preferred_element_type=jnp.float32) + b1
        hmid = jax.nn.gelu(hmid, approximate=True)
        ffn = jnp.dot(hmid.astype(bf16), w2, preferred_element_type=jnp.float32) + b2
        return layer_norm(xmid + ffn, g2, be2)

    # Weight-tied layers: unroll tiny stacks, otherwise fori_loop bounds live ranges.
    if n_layers <= 2:
        x = x0
        for _ in range(n_layers):
            x = layer(x)
    else:
        x = jax.lax.fori_loop(0, n_layers, lambda _, xc: layer(xc), x0)

    # LM head + masked CE only over the (sublane-aligned) gt tail.  Positions in the tail
    # that precede the real gt window carry ignore_ind targets, so the loss is identical
    # to PyTorch's h[:, -Lg:, :] slicing + gt_mask handling.
    vocab = embt_ref.shape[1]
    tail_len = seq - tail_start
    x_tail = x[tail_start:, :]                                               # (tail_len, D)
    logits = jnp.dot(x_tail.astype(bf16), embt_ref[...],
                     preferred_element_type=jnp.float32)                     # (tail_len, V)
    y = y_ref[0]                                                             # (tail_len, 1)
    lane = jax.lax.broadcasted_iota(jnp.int32, (tail_len, vocab), 1)
    onehot = (lane == y).astype(jnp.float32)
    mmax = jnp.max(logits, axis=-1, keepdims=True)
    lse = mmax + jnp.log(jnp.sum(jnp.exp(logits - mmax), axis=-1, keepdims=True))
    zy = jnp.sum(logits * onehot, axis=-1, keepdims=True)
    valid = (y != ignore_ind).astype(jnp.float32)
    loss_ref[0] = jnp.sum(valid * (lse - zy), keepdims=True)
    cnt_ref[0] = jnp.sum(valid, keepdims=True)


# --------------------------- module-level wrapper --------------------------- #

def nar_forward(params, text, prom, code, mask, gt, gt_mask, *,
                codec_i, n_heads, n_layers, ignore_ind):
    """Equivalent of NAR.forward(..., infer=False) with the codec level fixed to codec_i."""
    B, _, D = text.shape
    Lg = gt.shape[1]
    bf = jnp.bfloat16

    # Cheap prep (sums / concat / casts) stays in XLA — it fuses for free.
    prom_s = jnp.sum(prom, axis=-1)                        # (B, Lp, D)
    code_s = jnp.sum(code[..., :codec_i], axis=-1)         # (B, Lg, D)
    x = jnp.concatenate((text, prom_s, code_s), axis=-2)   # (B, T, D)
    T = x.shape[1]

    # O(T) key-validity bias row instead of the dense (T,T) mask (padding-mask assumption:
    # every valid query row carries the same key bias; max over queries recovers it).
    key_bias = jnp.max(mask.astype(jnp.float32), axis=1, keepdims=True)     # (B, 1, T)

    ipw, ipb = params["in_proj_weight"], params["in_proj_bias"]
    wq = ipw[:D].T.astype(bf); wk = ipw[D:2 * D].T.astype(bf); wv = ipw[2 * D:].T.astype(bf)
    bq, bk, bv = ipb[:D][None, :], ipb[D:2 * D][None, :], ipb[2 * D:][None, :]
    wo, bo = params["out_proj_weight"].T.astype(bf), params["out_proj_bias"][None, :]
    w1, b1 = params["ffn_w1"].T.astype(bf), params["ffn_b1"][None, :]
    w2, b2 = params["ffn_w2"].T.astype(bf), params["ffn_b2"][None, :]
    g1, be1 = params["norm1_weight"][None, :], params["norm1_bias"][None, :]
    g2, be2 = params["norm2_weight"][None, :], params["norm2_bias"][None, :]
    embt = params["wave_emb"][codec_i].T.astype(bf)        # (D, V) bf16
    V = embt.shape[1]
    Hff = w1.shape[1]

    # Sublane-aligned tail window covering the gt region.
    tail_start = ((T - Lg) // 8) * 8
    tail_len = T - tail_start

    # Targets over the tail; positions before the gt window get ignore_ind (identical loss).
    y = jnp.where(gt_mask, gt[..., codec_i], ignore_ind).astype(jnp.int32)  # (B, Lg)
    y_tail = jnp.concatenate(
        (jnp.full((B, tail_len - Lg), ignore_ind, jnp.int32), y), axis=1)[:, :, None]

    kernel = functools.partial(_nar_loss_kernel, n_layers=n_layers, n_heads=n_heads,
                               ignore_ind=ignore_ind, tail_start=tail_start)

    def const(shape):
        return pl.BlockSpec(shape, lambda b, _s=shape: (0,) * len(_s))

    flops = int(B * (n_layers * (8 * T * D * D + 4 * T * T * D + 4 * T * D * Hff)
                     + 2 * tail_len * D * V))
    transcendentals = int(B * (n_layers * (n_heads * T * T + T * Hff) + tail_len * V))
    bytes_accessed = int(4 * B * T * D + 4 * B * T
                         + 2 * (4 * D * D + 2 * D * Hff + D * V)
                         + 4 * (8 * D + 2 * Hff)
                         + 4 * B * tail_len + 8 * B)

    loss_sum, cnt = pl.pallas_call(
        kernel,
        out_shape=(jax.ShapeDtypeStruct((B, 1, 1), jnp.float32),
                   jax.ShapeDtypeStruct((B, 1, 1), jnp.float32)),
        grid_spec=pltpu.PrefetchScalarGridSpec(
            num_scalar_prefetch=0,
            grid=(B,),
            in_specs=[
                pl.BlockSpec((1, T, D), lambda b: (b, 0, 0)),   # x
                pl.BlockSpec((1, 1, T), lambda b: (b, 0, 0)),   # key-validity bias row
                const((D, D)), const((D, D)), const((D, D)),    # wq wk wv (bf16)
                const((1, D)), const((1, D)), const((1, D)),    # bq bk bv
                const((D, D)), const((1, D)),                   # wo bo
                const((D, Hff)), const((1, Hff)),               # ffn w1 b1
                const((Hff, D)), const((1, D)),                 # ffn w2 b2
                const((1, D)), const((1, D)),                   # norm1
                const((1, D)), const((1, D)),                   # norm2
                const((D, V)),                                  # wave_emb[i].T (bf16)
                pl.BlockSpec((1, tail_len, 1), lambda b: (b, 0, 0)),  # targets (tail)
            ],
            out_specs=(pl.BlockSpec((1, 1, 1), lambda b: (b, 0, 0)),
                       pl.BlockSpec((1, 1, 1), lambda b: (b, 0, 0))),
        ),
        compiler_params=pltpu.CompilerParams(
            dimension_semantics=("parallel",),
            vmem_limit_bytes=64 * 1024 * 1024),
        cost_estimate=pl.CostEstimate(flops=flops,
                                      transcendentals=transcendentals,
                                      bytes_accessed=bytes_accessed),
    )(x, key_bias, wq, wk, wv, bq, bk, bv, wo, bo, w1, b1, w2, b2,
      g1, be1, g2, be2, embt, y_tail)

    return jnp.sum(loss_sum) / jnp.maximum(jnp.sum(cnt), 1.0)


# ---------------------------- pure-JAX reference ---------------------------- #

def ref_forward(params, text, prom, code, mask, gt, gt_mask, *,
                codec_i, n_heads, n_layers, ignore_ind, ln_eps=1e-5):
    B, _, D = text.shape
    H = n_heads
    dh = D // H
    scale = 1.0 / math.sqrt(dh)
    prom_s = jnp.sum(prom, axis=-1)
    code_s = jnp.sum(code[..., :codec_i], axis=-1)
    x = jnp.concatenate((text, prom_s, code_s), axis=-2)
    T = x.shape[1]

    ipw, ipb = params["in_proj_weight"], params["in_proj_bias"]
    wq, wk, wv = ipw[:D], ipw[D:2 * D], ipw[2 * D:]
    bq, bk, bv = ipb[:D], ipb[D:2 * D], ipb[2 * D:]
    maskf = mask.astype(jnp.float32)

    def layer_norm(v, g, b):
        mu = jnp.mean(v, axis=-1, keepdims=True)
        var = jnp.mean((v - mu) ** 2, axis=-1, keepdims=True)
        return (v - mu) * jax.lax.rsqrt(var + ln_eps) * g + b

    for _ in range(n_layers):
        q = (x @ wq.T + bq).reshape(B, T, H, dh)
        k = (x @ wk.T + bk).reshape(B, T, H, dh)
        v = (x @ wv.T + bv).reshape(B, T, H, dh)
        s = jnp.einsum("bqhd,bkhd->bhqk", q, k) * scale + maskf[:, None]
        p = jax.nn.softmax(s, axis=-1)
        a = jnp.einsum("bhqk,bkhd->bqhd", p, v).reshape(B, T, D)
        a = a @ params["out_proj_weight"].T + params["out_proj_bias"]
        x = layer_norm(x + a, params["norm1_weight"], params["norm1_bias"])
        hmid = jax.nn.gelu(x @ params["ffn_w1"].T + params["ffn_b1"], approximate=True)
        f = hmid @ params["ffn_w2"].T + params["ffn_b2"]
        x = layer_norm(x + f, params["norm2_weight"], params["norm2_bias"])

    emb = params["wave_emb"][codec_i]
    h = x @ emb.T
    Lg = gt.shape[1]
    h = h[:, -Lg:, :] * gt_mask[..., None].astype(h.dtype)
    y = jnp.where(gt_mask, gt[..., codec_i], ignore_ind)
    lse = jax.scipy.special.logsumexp(h, axis=-1)
    zy = jnp.take_along_axis(h, jnp.clip(y, 0, h.shape[-1] - 1)[..., None], axis=-1)[..., 0]
    valid = (y != ignore_ind)
    per_tok = (lse - zy) * valid
    return jnp.sum(per_tok) / jnp.maximum(jnp.sum(valid), 1)


# ----------------------------------- main ----------------------------------- #

if __name__ == "__main__":
    n_codec, d_model, n_heads, n_layers = 4, 128, 4, 2
    n_wave_vocab = 1024
    start_ind, end_ind, ignore_ind = n_wave_vocab - 2, n_wave_vocab - 1, -100
    B, Lt2, Lp, Lg = 2, 10, 8, 8            # text already padded to t+2, code to t"+2
    T = Lt2 + Lp + Lg                       # 26

    key = jax.random.PRNGKey(0)
    ks = jax.random.split(key, 16)
    sc = 0.02

    def nrm(k, shape):
        return sc * jax.random.normal(k, shape, jnp.float32)

    # NAR inputs are already-embedded tensors (outputs of the Emb front-end).
    text = nrm(ks[0], (B, Lt2, d_model))
    prom = nrm(ks[1], (B, Lp, d_model, n_codec))
    code = nrm(ks[2], (B, Lg, d_model, n_codec))
    gt = jax.random.randint(ks[3], (B, Lg, n_codec), 0, n_wave_vocab - 2, dtype=jnp.int32)

    lengths = jnp.array([T, T - 5], dtype=jnp.int32)
    valid = jnp.arange(T)[None, :] < lengths[:, None]                       # (B, T)
    mask = jnp.where(valid[:, :, None] & valid[:, None, :], 0.0, -1e9).astype(jnp.float32)
    gt_lengths = jnp.array([Lg, 3], dtype=jnp.int32)
    gt_mask = jnp.arange(Lg)[None, :] < gt_lengths[:, None]                 # (B, Lg) bool

    params = {
        "in_proj_weight": nrm(ks[4], (3 * d_model, d_model)),
        "in_proj_bias":   nrm(ks[5], (3 * d_model,)),
        "out_proj_weight": nrm(ks[6], (d_model, d_model)),
        "out_proj_bias":   nrm(ks[7], (d_model,)),
        "ffn_w1": nrm(ks[8], (4 * d_model, d_model)),
        "ffn_b1": nrm(ks[9], (4 * d_model,)),
        "ffn_w2": nrm(ks[10], (d_model, 4 * d_model)),
        "ffn_b2": nrm(ks[11], (d_model,)),
        "norm1_weight": jnp.ones((d_model,), jnp.float32),
        "norm1_bias": jnp.zeros((d_model,), jnp.float32),
        "norm2_weight": jnp.ones((d_model,), jnp.float32),
        "norm2_bias": jnp.zeros((d_model,), jnp.float32),
        "wave_emb": [nrm(jax.random.fold_in(ks[12], i), (n_wave_vocab, d_model))
                     for i in range(n_codec)],
    }

    # Deterministic stand-in for `i = random.randrange(1, n_codec)`.
    codec_i = pyrandom.Random(0).randrange(1, n_codec)

    loss = nar_forward(params, text, prom, code, mask, gt, gt_mask,
                       codec_i=codec_i, n_heads=n_heads, n_layers=n_layers,
                       ignore_ind=ignore_ind)
    loss = jax.block_until_ready(loss)

    ref = ref_forward(params, text, prom, code, mask, gt, gt_mask,
                      codec_i=codec_i, n_heads=n_heads, n_layers=n_layers,
                      ignore_ind=ignore_ind)
    # Slightly wider tolerance than pure-f32: MXU operands run in bf16 (f32 accumulation)
    # and softmax uses the EUP approximate reciprocal.
    np.testing.assert_allclose(np.asarray(loss), np.asarray(ref), rtol=1e-2, atol=1e-2)

    print("KERNEL_OK")
</pallas_src>

<mosaic_0001>
module attributes {stable_mosaic.version = 11 : i64} {
  func.func @_nar_loss_kernel(%arg0: i32, %arg1: memref<1x26x128xf32, #tpu.memory_space<vmem>>, %arg2: memref<1x1x26xf32, #tpu.memory_space<vmem>>, %arg3: memref<128x128xbf16, #tpu.memory_space<vmem>>, %arg4: memref<128x128xbf16, #tpu.memory_space<vmem>>, %arg5: memref<128x128xbf16, #tpu.memory_space<vmem>>, %arg6: memref<1x128xf32, #tpu.memory_space<vmem>>, %arg7: memref<1x128xf32, #tpu.memory_space<vmem>>, %arg8: memref<1x128xf32, #tpu.memory_space<vmem>>, %arg9: memref<128x128xbf16, #tpu.memory_space<vmem>>, %arg10: memref<1x128xf32, #tpu.memory_space<vmem>>, %arg11: memref<128x512xbf16, #tpu.memory_space<vmem>>, %arg12: memref<1x512xf32, #tpu.memory_space<vmem>>, %arg13: memref<512x128xbf16, #tpu.memory_space<vmem>>, %arg14: memref<1x128xf32, #tpu.memory_space<vmem>>, %arg15: memref<1x128xf32, #tpu.memory_space<vmem>>, %arg16: memref<1x128xf32, #tpu.memory_space<vmem>>, %arg17: memref<1x128xf32, #tpu.memory_space<vmem>>, %arg18: memref<1x128xf32, #tpu.memory_space<vmem>>, %arg19: memref<128x1024xbf16, #tpu.memory_space<vmem>>, %arg20: memref<1x10x1xi32, #tpu.memory_space<vmem>>, %arg21: memref<1x1x1xf32, #tpu.memory_space<vmem>>, %arg22: memref<1x1x1xf32, #tpu.memory_space<vmem>>) attributes {dimension_semantics = [#tpu.dimension_semantics<parallel>], iteration_bounds = array<i64: 2>, scalar_prefetch = 0 : i64, scratch_operands = 0 : i64, tpu.core_type = #tpu.core_type<tc>, window_params = [{transform_indices = @transform_0, window_bounds = array<i64: 1, 26, 128>}, {transform_indices = @transform_1, window_bounds = array<i64: 1, 1, 26>}, {pipeline_mode = #tpu.pipeline_mode<synchronous>, transform_indices = @transform_2, window_bounds = array<i64: 128, 128>}, {pipeline_mode = #tpu.pipeline_mode<synchronous>, transform_indices = @transform_3, window_bounds = array<i64: 128, 128>}, {pipeline_mode = #tpu.pipeline_mode<synchronous>, transform_indices = @transform_4, window_bounds = array<i64: 128, 128>}, {pipeline_mode = #tpu.pipeline_mode<synchronous>, transform_indices = @transform_5, window_bounds = array<i64: 1, 128>}, {pipeline_mode = #tpu.pipeline_mode<synchronous>, transform_indices = @transform_6, window_bounds = array<i64: 1, 128>}, {pipeline_mode = #tpu.pipeline_mode<synchronous>, transform_indices = @transform_7, window_bounds = array<i64: 1, 128>}, {pipeline_mode = #tpu.pipeline_mode<synchronous>, transform_indices = @transform_8, window_bounds = array<i64: 128, 128>}, {pipeline_mode = #tpu.pipeline_mode<synchronous>, transform_indices = @transform_9, window_bounds = array<i64: 1, 128>}, {pipeline_mode = #tpu.pipeline_mode<synchronous>, transform_indices = @transform_10, window_bounds = array<i64: 128, 512>}, {pipeline_mode = #tpu.pipeline_mode<synchronous>, transform_indices = @transform_11, window_bounds = array<i64: 1, 512>}, {pipeline_mode = #tpu.pipeline_mode<synchronous>, transform_indices = @transform_12, window_bounds = array<i64: 512, 128>}, {pipeline_mode = #tpu.pipeline_mode<synchronous>, transform_indices = @transform_13, window_bounds = array<i64: 1, 128>}, {pipeline_mode = #tpu.pipeline_mode<synchronous>, transform_indices = @transform_14, window_bounds = array<i64: 1, 128>}, {pipeline_mode = #tpu.pipeline_mode<synchronous>, transform_indices = @transform_15, window_bounds = array<i64: 1, 128>}, {pipeline_mode = #tpu.pipeline_mode<synchronous>, transform_indices = @transform_16, window_bounds = array<i64: 1, 128>}, {pipeline_mode = #tpu.pipeline_mode<synchronous>, transform_indices = @transform_17, window_bounds = array<i64: 1, 128>}, {pipeline_mode = #tpu.pipeline_mode<synchronous>, transform_indices = @transform_18, window_bounds = array<i64: 128, 1024>}, {transform_indices = @transform_19, window_bounds = array<i64: 1, 10, 1>}, {transform_indices = @transform_20, window_bounds = array<i64: 1, 1, 1>}, {transform_indices = @transform_21, window_bounds = array<i64: 1, 1, 1>}]} {
    %c0 = arith.constant 0 : index
    %c0_0 = arith.constant 0 : index
    %c0_1 = arith.constant 0 : index
    %0 = vector.load %arg1[%c0, %c0_0, %c0_1] : memref<1x26x128xf32, #tpu.memory_space<vmem>>, vector<1x26x128xf32>
    %1 = vector.shape_cast %0 : vector<1x26x128xf32> to vector<26x128xf32>
    %c0_2 = arith.constant 0 : index
    %c0_3 = arith.constant 0 : index
    %c0_4 = arith.constant 0 : index
    %2 = vector.load %arg2[%c0_2, %c0_3, %c0_4] : memref<1x1x26xf32, #tpu.memory_space<vmem>>, vector<1x1x26xf32>
    %3 = vector.shape_cast %2 : vector<1x1x26xf32> to vector<1x26xf32>
    %c0_5 = arith.constant 0 : index
    %c0_6 = arith.constant 0 : index
    %4 = vector.load %arg3[%c0_5, %c0_6] : memref<128x128xbf16, #tpu.memory_space<vmem>>, vector<128x128xbf16>
    %c0_7 = arith.constant 0 : index
    %c0_8 = arith.constant 0 : index
    %5 = vector.load %arg4[%c0_7, %c0_8] : memref<128x128xbf16, #tpu.memory_space<vmem>>, vector<128x128xbf16>
    %c0_9 = arith.constant 0 : index
    %c0_10 = arith.constant 0 : index
    %6 = vector.load %arg5[%c0_9, %c0_10] : memref<128x128xbf16, #tpu.memory_space<vmem>>, vector<128x128xbf16>
    %c0_11 = arith.constant 0 : index
    %c0_12 = arith.constant 0 : index
    %7 = vector.load %arg6[%c0_11, %c0_12] : memref<1x128xf32, #tpu.memory_space<vmem>>, vector<1x128xf32>
    %c0_13 = arith.constant 0 : index
    %c0_14 = arith.constant 0 : index
    %8 = vector.load %arg7[%c0_13, %c0_14] : memref<1x128xf32, #tpu.memory_space<vmem>>, vector<1x128xf32>
    %c0_15 = arith.constant 0 : index
    %c0_16 = arith.constant 0 : index
    %9 = vector.load %arg8[%c0_15, %c0_16] : memref<1x128xf32, #tpu.memory_space<vmem>>, vector<1x128xf32>
    %c0_17 = arith.constant 0 : index
    %c0_18 = arith.constant 0 : index
    %10 = vector.load %arg9[%c0_17, %c0_18] : memref<128x128xbf16, #tpu.memory_space<vmem>>, vector<128x128xbf16>
    %c0_19 = arith.constant 0 : index
    %c0_20 = arith.constant 0 : index
    %11 = vector.load %arg10[%c0_19, %c0_20] : memref<1x128xf32, #tpu.memory_space<vmem>>, vector<1x128xf32>
    %c0_21 = arith.constant 0 : index
    %c0_22 = arith.constant 0 : index
    %12 = vector.load %arg11[%c0_21, %c0_22] : memref<128x512xbf16, #tpu.memory_space<vmem>>, vector<128x512xbf16>
    %c0_23 = arith.constant 0 : index
    %c0_24 = arith.constant 0 : index
    %13 = vector.load %arg12[%c0_23, %c0_24] : memref<1x512xf32, #tpu.memory_space<vmem>>, vector<1x512xf32>
    %c0_25 = arith.constant 0 : index
    %c0_26 = arith.constant 0 : index
    %14 = vector.load %arg13[%c0_25, %c0_26] : memref<512x128xbf16, #tpu.memory_space<vmem>>, vector<512x128xbf16>
    %c0_27 = arith.constant 0 : index
    %c0_28 = arith.constant 0 : index
    %15 = vector.load %arg14[%c0_27, %c0_28] : memref<1x128xf32, #tpu.memory_space<vmem>>, vector<1x128xf32>
    %c0_29 = arith.constant 0 : index
    %c0_30 = arith.constant 0 : index
    %16 = vector.load %arg15[%c0_29, %c0_30] : memref<1x128xf32, #tpu.memory_space<vmem>>, vector<1x128xf32>
    %c0_31 = arith.constant 0 : index
    %c0_32 = arith.constant 0 : index
    %17 = vector.load %arg16[%c0_31, %c0_32] : memref<1x128xf32, #tpu.memory_space<vmem>>, vector<1x128xf32>
    %c0_33 = arith.constant 0 : index
    %c0_34 = arith.constant 0 : index
    %18 = vector.load %arg17[%c0_33, %c0_34] : memref<1x128xf32, #tpu.memory_space<vmem>>, vector<1x128xf32>
    %c0_35 = arith.constant 0 : index
    %c0_36 = arith.constant 0 : index
    %19 = vector.load %arg18[%c0_35, %c0_36] : memref<1x128xf32, #tpu.memory_space<vmem>>, vector<1x128xf32>
    %20 = arith.truncf %1 : vector<26x128xf32> to vector<26x128xbf16>
    %cst = arith.constant dense<0.000000e+00> : vector<26x128xf32>
    %21 = tpu.matmul %20, %4, %cst {dimension_numbers = #tpu.dot_dimension_numbers<[1], [0], [0], [1], [0, 0, 1, 1], [], []>} : vector<26x128xbf16>, vector<128x128xbf16>, vector<26x128xf32> -> vector<26x128xf32>
    %22 = vector.broadcast %7 : vector<1x128xf32> to vector<26x128xf32>
    %23 = arith.addf %21, %22 : vector<26x128xf32>
    %cst_37 = arith.constant dense<0.000000e+00> : vector<26x128xf32>
    %24 = tpu.matmul %20, %5, %cst_37 {dimension_numbers = #tpu.dot_dimension_numbers<[1], [0], [0], [1], [0, 0, 1, 1], [], []>} : vector<26x128xbf16>, vector<128x128xbf16>, vector<26x128xf32> -> vector<26x128xf32>
    %25 = vector.broadcast %8 : vector<1x128xf32> to vector<26x128xf32>
    %26 = arith.addf %24, %25 : vector<26x128xf32>
    %cst_38 = arith.constant dense<0.000000e+00> : vector<26x128xf32>
    %27 = tpu.matmul %20, %6, %cst_38 {dimension_numbers = #tpu.dot_dimension_numbers<[1], [0], [0], [1], [0, 0, 1, 1], [], []>} : vector<26x128xbf16>, vector<128x128xbf16>, vector<26x128xf32> -> vector<26x128xf32>
    %28 = vector.broadcast %9 : vector<1x128xf32> to vector<26x128xf32>
    %29 = arith.addf %27, %28 : vector<26x128xf32>
    %30 = arith.truncf %23 : vector<26x128xf32> to vector<26x128xbf16>
    %31 = arith.truncf %26 : vector<26x128xf32> to vector<26x128xbf16>
    %32 = arith.truncf %29 : vector<26x128xf32> to vector<26x128xbf16>
    %33 = vector.extract_strided_slice %30 {offsets = [0, 0], sizes = [26, 32], strides = [1, 1]} : vector<26x128xbf16> to vector<26x32xbf16>
    %34 = vector.extract_strided_slice %31 {offsets = [0, 0], sizes = [26, 32], strides = [1, 1]} : vector<26x128xbf16> to vector<26x32xbf16>
    %cst_39 = arith.constant dense<0.000000e+00> : vector<26x26xf32>
    %35 = tpu.matmul %33, %34, %cst_39 {dimension_numbers = #tpu.dot_dimension_numbers<[1], [1], [0], [0], [0, 0, 1, 0], [], []>} : vector<26x32xbf16>, vector<26x32xbf16>, vector<26x26xf32> -> vector<26x26xf32>
    %cst_40 = arith.constant 0.176776692 : f32
    %36 = vector.broadcast %cst_40 : f32 to vector<26x26xf32>
    %37 = arith.mulf %35, %36 : vector<26x26xf32>
    %38 = vector.broadcast %3 : vector<1x26xf32> to vector<26x26xf32>
    %39 = arith.addf %37, %38 : vector<26x26xf32>
    %cst_41 = arith.constant dense<0xFF800000> : vector<26xf32>
    %40 = vector.multi_reduction <maximumf>, %39, %cst_41 [1] : vector<26x26xf32> to vector<26xf32>
    %41 = vector.shape_cast %40 : vector<26xf32> to vector<26x1xf32>
    %42 = vector.broadcast %41 : vector<26x1xf32> to vector<26x26xf32>
    %43 = arith.subf %39, %42 : vector<26x26xf32>
    %44 = math.exp %43 : vector<26x26xf32>
    %cst_42 = arith.constant dense<0.000000e+00> : vector<26xf32>
    %45 = vector.multi_reduction <add>, %44, %cst_42 [1] : vector<26x26xf32> to vector<26xf32>
    %46 = vector.shape_cast %45 : vector<26xf32> to vector<26x1xf32>
    %47 = tpu.reciprocal %46 {approx = true} : vector<26x1xf32> -> vector<26x1xf32>
    %48 = vector.broadcast %47 : vector<26x1xf32> to vector<26x26xf32>
    %49 = arith.mulf %44, %48 : vector<26x26xf32>
    %50 = arith.truncf %49 : vector<26x26xf32> to vector<26x26xbf16>
    %51 = vector.extract_strided_slice %32 {offsets = [0, 0], sizes = [26, 32], strides = [1, 1]} : vector<26x128xbf16> to vector<26x32xbf16>
    %cst_43 = arith.constant dense<0.000000e+00> : vector<26x32xf32>
    %52 = tpu.matmul %50, %51, %cst_43 {dimension_numbers = #tpu.dot_dimension_numbers<[1], [0], [0], [1], [0, 0, 1, 1], [], []>} : vector<26x26xbf16>, vector<26x32xbf16>, vector<26x32xf32> -> vector<26x32xf32>
    %53 = vector.extract_strided_slice %30 {offsets = [0, 32], sizes = [26, 32], strides = [1, 1]} : vector<26x128xbf16> to vector<26x32xbf16>
    %54 = vector.extract_strided_slice %31 {offsets = [0, 32], sizes = [26, 32], strides = [1, 1]} : vector<26x128xbf16> to vector<26x32xbf16>
    %cst_44 = arith.constant dense<0.000000e+00> : vector<26x26xf32>
    %55 = tpu.matmul %53, %54, %cst_44 {dimension_numbers = #tpu.dot_dimension_numbers<[1], [1], [0], [0], [0, 0, 1, 0], [], []>} : vector<26x32xbf16>, vector<26x32xbf16>, vector<26x26xf32> -> vector<26x26xf32>
    %cst_45 = arith.constant 0.176776692 : f32
    %56 = vector.broadcast %cst_45 : f32 to vector<26x26xf32>
    %57 = arith.mulf %55, %56 : vector<26x26xf32>
    %58 = vector.broadcast %3 : vector<1x26xf32> to vector<26x26xf32>
    %59 = arith.addf %57, %58 : vector<26x26xf32>
    %cst_46 = arith.constant dense<0xFF800000> : vector<26xf32>
    %60 = vector.multi_reduction <maximumf>, %59, %cst_46 [1] : vector<26x26xf32> to vector<26xf32>
    %61 = vector.shape_cast %60 : vector<26xf32> to vector<26x1xf32>
    %62 = vector.broadcast %61 : vector<26x1xf32> to vector<26x26xf32>
    %63 = arith.subf %59, %62 : vector<26x26xf32>
    %64 = math.exp %63 : vector<26x26xf32>
    %cst_47 = arith.constant dense<0.000000e+00> : vector<26xf32>
    %65 = vector.multi_reduction <add>, %64, %cst_47 [1] : vector<26x26xf32> to vector<26xf32>
    %66 = vector.shape_cast %65 : vector<26xf32> to vector<26x1xf32>
    %67 = tpu.reciprocal %66 {approx = true} : vector<26x1xf32> -> vector<26x1xf32>
    %68 = vector.broadcast %67 : vector<26x1xf32> to vector<26x26xf32>
    %69 = arith.mulf %64, %68 : vector<26x26xf32>
    %70 = arith.truncf %69 : vector<26x26xf32> to vector<26x26xbf16>
    %71 = vector.extract_strided_slice %32 {offsets = [0, 32], sizes = [26, 32], strides = [1, 1]} : vector<26x128xbf16> to vector<26x32xbf16>
    %cst_48 = arith.constant dense<0.000000e+00> : vector<26x32xf32>
    %72 = tpu.matmul %70, %71, %cst_48 {dimension_numbers = #tpu.dot_dimension_numbers<[1], [0], [0], [1], [0, 0, 1, 1], [], []>} : vector<26x26xbf16>, vector<26x32xbf16>, vector<26x32xf32> -> vector<26x32xf32>
    %73 = vector.extract_strided_slice %30 {offsets = [0, 64], sizes = [26, 32], strides = [1, 1]} : vector<26x128xbf16> to vector<26x32xbf16>
    %74 = vector.extract_strided_slice %31 {offsets = [0, 64], sizes = [26, 32], strides = [1, 1]} : vector<26x128xbf16> to vector<26x32xbf16>
    %cst_49 = arith.constant dense<0.000000e+00> : vector<26x26xf32>
    %75 = tpu.matmul %73, %74, %cst_49 {dimension_numbers = #tpu.dot_dimension_numbers<[1], [1], [0], [0], [0, 0, 1, 0], [], []>} : vector<26x32xbf16>, vector<26x32xbf16>, vector<26x26xf32> -> vector<26x26xf32>
    %cst_50 = arith.constant 0.176776692 : f32
    %76 = vector.broadcast %cst_50 : f32 to vector<26x26xf32>
    %77 = arith.mulf %75, %76 : vector<26x26xf32>
    %78 = vector.broadcast %3 : vector<1x26xf32> to vector<26x26xf32>
    %79 = arith.addf %77, %78 : vector<26x26xf32>
    %cst_51 = arith.constant dense<0xFF800000> : vector<26xf32>
    %80 = vector.multi_reduction <maximumf>, %79, %cst_51 [1] : vector<26x26xf32> to vector<26xf32>
    %81 = vector.shape_cast %80 : vector<26xf32> to vector<26x1xf32>
    %82 = vector.broadcast %81 : vector<26x1xf32> to vector<26x26xf32>
    %83 = arith.subf %79, %82 : vector<26x26xf32>
    %84 = math.exp %83 : vector<26x26xf32>
    %cst_52 = arith.constant dense<0.000000e+00> : vector<26xf32>
    %85 = vector.multi_reduction <add>, %84, %cst_52 [1] : vector<26x26xf32> to vector<26xf32>
    %86 = vector.shape_cast %85 : vector<26xf32> to vector<26x1xf32>
    %87 = tpu.reciprocal %86 {approx = true} : vector<26x1xf32> -> vector<26x1xf32>
    %88 = vector.broadcast %87 : vector<26x1xf32> to vector<26x26xf32>
    %89 = arith.mulf %84, %88 : vector<26x26xf32>
    %90 = arith.truncf %89 : vector<26x26xf32> to vector<26x26xbf16>
    %91 = vector.extract_strided_slice %32 {offsets = [0, 64], sizes = [26, 32], strides = [1, 1]} : vector<26x128xbf16> to vector<26x32xbf16>
    %cst_53 = arith.constant dense<0.000000e+00> : vector<26x32xf32>
    %92 = tpu.matmul %90, %91, %cst_53 {dimension_numbers = #tpu.dot_dimension_numbers<[1], [0], [0], [1], [0, 0, 1, 1], [], []>} : vector<26x26xbf16>, vector<26x32xbf16>, vector<26x32xf32> -> vector<26x32xf32>
    %93 = vector.extract_strided_slice %30 {offsets = [0, 96], sizes = [26, 32], strides = [1, 1]} : vector<26x128xbf16> to vector<26x32xbf16>
    %94 = vector.extract_strided_slice %31 {offsets = [0, 96], sizes = [26, 32], strides = [1, 1]} : vector<26x128xbf16> to vector<26x32xbf16>
    %cst_54 = arith.constant dense<0.000000e+00> : vector<26x26xf32>
    %95 = tpu.matmul %93, %94, %cst_54 {dimension_numbers = #tpu.dot_dimension_numbers<[1], [1], [0], [0], [0, 0, 1, 0], [], []>} : vector<26x32xbf16>, vector<26x32xbf16>, vector<26x26xf32> -> vector<26x26xf32>
    %cst_55 = arith.constant 0.176776692 : f32
    %96 = vector.broadcast %cst_55 : f32 to vector<26x26xf32>
    %97 = arith.mulf %95, %96 : vector<26x26xf32>
    %98 = vector.broadcast %3 : vector<1x26xf32> to vector<26x26xf32>
    %99 = arith.addf %97, %98 : vector<26x26xf32>
    %cst_56 = arith.constant dense<0xFF800000> : vector<26xf32>
    %100 = vector.multi_reduction <maximumf>, %99, %cst_56 [1] : vector<26x26xf32> to vector<26xf32>
    %101 = vector.shape_cast %100 : vector<26xf32> to vector<26x1xf32>
    %102 = vector.broadcast %101 : vector<26x1xf32> to vector<26x26xf32>
    %103 = arith.subf %99, %102 : vector<26x26xf32>
    %104 = math.exp %103 : vector<26x26xf32>
    %cst_57 = arith.constant dense<0.000000e+00> : vector<26xf32>
    %105 = vector.multi_reduction <add>, %104, %cst_57 [1] : vector<26x26xf32> to vector<26xf32>
    %106 = vector.shape_cast %105 : vector<26xf32> to vector<26x1xf32>
    %107 = tpu.reciprocal %106 {approx = true} : vector<26x1xf32> -> vector<26x1xf32>
    %108 = vector.broadcast %107 : vector<26x1xf32> to vector<26x26xf32>
    %109 = arith.mulf %104, %108 : vector<26x26xf32>
    %110 = arith.truncf %109 : vector<26x26xf32> to vector<26x26xbf16>
    %111 = vector.extract_strided_slice %32 {offsets = [0, 96], sizes = [26, 32], strides = [1, 1]} : vector<26x128xbf16> to vector<26x32xbf16>
    %cst_58 = arith.constant dense<0.000000e+00> : vector<26x32xf32>
    %112 = tpu.matmul %110, %111, %cst_58 {dimension_numbers = #tpu.dot_dimension_numbers<[1], [0], [0], [1], [0, 0, 1, 1], [], []>} : vector<26x26xbf16>, vector<26x32xbf16>, vector<26x32xf32> -> vector<26x32xf32>
    %113 = tpu.concatenate %52, %72, %92, %112 in 1 : vector<26x32xf32>, vector<26x32xf32>, vector<26x32xf32>, vector<26x32xf32> -> vector<26x128xf32>
    %114 = arith.truncf %113 : vector<26x128xf32> to vector<26x128xbf16>
    %cst_59 = arith.constant dense<0.000000e+00> : vector<26x128xf32>
    %115 = tpu.matmul %114, %10, %cst_59 {dimension_numbers = #tpu.dot_dimension_numbers<[1], [0], [0], [1], [0, 0, 1, 1], [], []>} : vector<26x128xbf16>, vector<128x128xbf16>, vector<26x128xf32> -> vector<26x128xf32>
    %116 = vector.broadcast %11 : vector<1x128xf32> to vector<26x128xf32>
    %117 = arith.addf %115, %116 : vector<26x128xf32>
    %118 = arith.addf %1, %117 : vector<26x128xf32>
    %cst_60 = arith.constant dense<0.000000e+00> : vector<26xf32>
    %119 = vector.multi_reduction <add>, %118, %cst_60 [1] : vector<26x128xf32> to vector<26xf32>
    %120 = vector.shape_cast %119 : vector<26xf32> to vector<26x1xf32>
    %cst_61 = arith.constant 1.280000e+02 : f32
    %121 = vector.broadcast %cst_61 : f32 to vector<26x1xf32>
    %122 = arith.divf %120, %121 : vector<26x1xf32>
    %123 = vector.broadcast %122 : vector<26x1xf32> to vector<26x128xf32>
    %124 = arith.subf %118, %123 : vector<26x128xf32>
    %125 = vector.broadcast %122 : vector<26x1xf32> to vector<26x128xf32>
    %126 = arith.subf %118, %125 : vector<26x128xf32>
    %127 = arith.mulf %124, %126 : vector<26x128xf32>
    %cst_62 = arith.constant dense<0.000000e+00> : vector<26xf32>
    %128 = vector.multi_reduction <add>, %127, %cst_62 [1] : vector<26x128xf32> to vector<26xf32>
    %129 = vector.shape_cast %128 : vector<26xf32> to vector<26x1xf32>
    %cst_63 = arith.constant 1.280000e+02 : f32
    %130 = vector.broadcast %cst_63 : f32 to vector<26x1xf32>
    %131 = arith.divf %129, %130 : vector<26x1xf32>
    %132 = vector.broadcast %122 : vector<26x1xf32> to vector<26x128xf32>
    %133 = arith.subf %118, %132 : vector<26x128xf32>
    %cst_64 = arith.constant 9.99999974E-6 : f32
    %134 = vector.broadcast %cst_64 : f32 to vector<26x1xf32>
    %135 = arith.addf %131, %134 : vector<26x1xf32>
    %136 = math.rsqrt %135 : vector<26x1xf32>
    %137 = vector.broadcast %136 : vector<26x1xf32> to vector<26x128xf32>
    %138 = arith.mulf %133, %137 : vector<26x128xf32>
    %139 = vector.broadcast %16 : vector<1x128xf32> to vector<26x128xf32>
    %140 = arith.mulf %138, %139 : vector<26x128xf32>
    %141 = vector.broadcast %17 : vector<1x128xf32> to vector<26x128xf32>
    %142 = arith.addf %140, %141 : vector<26x128xf32>
    %143 = arith.truncf %142 : vector<26x128xf32> to vector<26x128xbf16>
    %cst_65 = arith.constant dense<0.000000e+00> : vector<26x512xf32>
    %144 = tpu.matmul %143, %12, %cst_65 {dimension_numbers = #tpu.dot_dimension_numbers<[1], [0], [0], [1], [0, 0, 1, 1], [], []>} : vector<26x128xbf16>, vector<128x512xbf16>, vector<26x512xf32> -> vector<26x512xf32>
    %145 = vector.broadcast %13 : vector<1x512xf32> to vector<26x512xf32>
    %146 = arith.addf %144, %145 : vector<26x512xf32>
    %147 = arith.mulf %146, %146 : vector<26x512xf32>
    %148 = arith.mulf %146, %147 : vector<26x512xf32>
    %cst_66 = arith.constant 4.471500e-02 : f32
    %149 = vector.broadcast %cst_66 : f32 to vector<26x512xf32>
    %150 = arith.mulf %149, %148 : vector<26x512xf32>
    %151 = arith.addf %146, %150 : vector<26x512xf32>
    %cst_67 = arith.constant 0.797884583 : f32
    %152 = vector.broadcast %cst_67 : f32 to vector<26x512xf32>
    %153 = arith.mulf %152, %151 : vector<26x512xf32>
    %154 = math.tanh %153 : vector<26x512xf32>
    %cst_68 = arith.constant 1.000000e+00 : f32
    %155 = vector.broadcast %cst_68 : f32 to vector<26x512xf32>
    %156 = arith.addf %155, %154 : vector<26x512xf32>
    %cst_69 = arith.constant 5.000000e-01 : f32
    %157 = vector.broadcast %cst_69 : f32 to vector<26x512xf32>
    %158 = arith.mulf %157, %156 : vector<26x512xf32>
    %159 = arith.mulf %146, %158 : vector<26x512xf32>
    %160 = arith.truncf %159 : vector<26x512xf32> to vector<26x512xbf16>
    %cst_70 = arith.constant dense<0.000000e+00> : vector<26x128xf32>
    %161 = tpu.matmul %160, %14, %cst_70 {dimension_numbers = #tpu.dot_dimension_numbers<[1], [0], [0], [1], [0, 0, 1, 1], [], []>} : vector<26x512xbf16>, vector<512x128xbf16>, vector<26x128xf32> -> vector<26x128xf32>
    %162 = vector.broadcast %15 : vector<1x128xf32> to vector<26x128xf32>
    %163 = arith.addf %161, %162 : vector<26x128xf32>
    %164 = arith.addf %142, %163 : vector<26x128xf32>
    %cst_71 = arith.constant dense<0.000000e+00> : vector<26xf32>
    %165 = vector.multi_reduction <add>, %164, %cst_71 [1] : vector<26x128xf32> to vector<26xf32>
    %166 = vector.shape_cast %165 : vector<26xf32> to vector<26x1xf32>
    %cst_72 = arith.constant 1.280000e+02 : f32
    %167 = vector.broadcast %cst_72 : f32 to vector<26x1xf32>
    %168 = arith.divf %166, %167 : vector<26x1xf32>
    %169 = vector.broadcast %168 : vector<26x1xf32> to vector<26x128xf32>
    %170 = arith.subf %164, %169 : vector<26x128xf32>
    %171 = vector.broadcast %168 : vector<26x1xf32> to vector<26x128xf32>
    %172 = arith.subf %164, %171 : vector<26x128xf32>
    %173 = arith.mulf %170, %172 : vector<26x128xf32>
    %cst_73 = arith.constant dense<0.000000e+00> : vector<26xf32>
    %174 = vector.multi_reduction <add>, %173, %cst_73 [1] : vector<26x128xf32> to vector<26xf32>
    %175 = vector.shape_cast %174 : vector<26xf32> to vector<26x1xf32>
    %cst_74 = arith.constant 1.280000e+02 : f32
    %176 = vector.broadcast %cst_74 : f32 to vector<26x1xf32>
    %177 = arith.divf %175, %176 : vector<26x1xf32>
    %178 = vector.broadcast %168 : vector<26x1xf32> to vector<26x128xf32>
    %179 = arith.subf %164, %178 : vector<26x128xf32>
    %cst_75 = arith.constant 9.99999974E-6 : f32
    %180 = vector.broadcast %cst_75 : f32 to vector<26x1xf32>
    %181 = arith.addf %177, %180 : vector<26x1xf32>
    %182 = math.rsqrt %181 : vector<26x1xf32>
    %183 = vector.broadcast %182 : vector<26x1xf32> to vector<26x128xf32>
    %184 = arith.mulf %179, %183 : vector<26x128xf32>
    %185 = vector.broadcast %18 : vector<1x128xf32> to vector<26x128xf32>
    %186 = arith.mulf %184, %185 : vector<26x128xf32>
    %187 = vector.broadcast %19 : vector<1x128xf32> to vector<26x128xf32>
    %188 = arith.addf %186, %187 : vector<26x128xf32>
    %189 = arith.truncf %188 : vector<26x128xf32> to vector<26x128xbf16>
    %cst_76 = arith.constant dense<0.000000e+00> : vector<26x128xf32>
    %190 = tpu.matmul %189, %4, %cst_76 {dimension_numbers = #tpu.dot_dimension_numbers<[1], [0], [0], [1], [0, 0, 1, 1], [], []>} : vector<26x128xbf16>, vector<128x128xbf16>, vector<26x128xf32> -> vector<26x128xf32>
    %191 = vector.broadcast %7 : vector<1x128xf32> to vector<26x128xf32>
    %192 = arith.addf %190, %191 : vector<26x128xf32>
    %cst_77 = arith.constant dense<0.000000e+00> : vector<26x128xf32>
    %193 = tpu.matmul %189, %5, %cst_77 {dimension_numbers = #tpu.dot_dimension_numbers<[1], [0], [0], [1], [0, 0, 1, 1], [], []>} : vector<26x128xbf16>, vector<128x128xbf16>, vector<26x128xf32> -> vector<26x128xf32>
    %194 = vector.broadcast %8 : vector<1x128xf32> to vector<26x128xf32>
    %195 = arith.addf %193, %194 : vector<26x128xf32>
    %cst_78 = arith.constant dense<0.000000e+00> : vector<26x128xf32>
    %196 = tpu.matmul %189, %6, %cst_78 {dimension_numbers = #tpu.dot_dimension_numbers<[1], [0], [0], [1], [0, 0, 1, 1], [], []>} : vector<26x128xbf16>, vector<128x128xbf16>, vector<26x128xf32> -> vector<26x128xf32>
    %197 = vector.broadcast %9 : vector<1x128xf32> to vector<26x128xf32>
    %198 = arith.addf %196, %197 : vector<26x128xf32>
    %199 = arith.truncf %192 : vector<26x128xf32> to vector<26x128xbf16>
    %200 = arith.truncf %195 : vector<26x128xf32> to vector<26x128xbf16>
    %201 = arith.truncf %198 : vector<26x128xf32> to vector<26x128xbf16>
    %202 = vector.extract_strided_slice %199 {offsets = [0, 0], sizes = [26, 32], strides = [1, 1]} : vector<26x128xbf16> to vector<26x32xbf16>
    %203 = vector.extract_strided_slice %200 {offsets = [0, 0], sizes = [26, 32], strides = [1, 1]} : vector<26x128xbf16> to vector<26x32xbf16>
    %cst_79 = arith.constant dense<0.000000e+00> : vector<26x26xf32>
    %204 = tpu.matmul %202, %203, %cst_79 {dimension_numbers = #tpu.dot_dimension_numbers<[1], [1], [0], [0], [0, 0, 1, 0], [], []>} : vector<26x32xbf16>, vector<26x32xbf16>, vector<26x26xf32> -> vector<26x26xf32>
    %cst_80 = arith.constant 0.176776692 : f32
    %205 = vector.broadcast %cst_80 : f32 to vector<26x26xf32>
    %206 = arith.mulf %204, %205 : vector<26x26xf32>
    %207 = vector.broadcast %3 : vector<1x26xf32> to vector<26x26xf32>
    %208 = arith.addf %206, %207 : vector<26x26xf32>
    %cst_81 = arith.constant dense<0xFF800000> : vector<26xf32>
    %209 = vector.multi_reduction <maximumf>, %208, %cst_81 [1] : vector<26x26xf32> to vector<26xf32>
    %210 = vector.shape_cast %209 : vector<26xf32> to vector<26x1xf32>
    %211 = vector.broadcast %210 : vector<26x1xf32> to vector<26x26xf32>
    %212 = arith.subf %208, %211 : vector<26x26xf32>
    %213 = math.exp %212 : vector<26x26xf32>
    %cst_82 = arith.constant dense<0.000000e+00> : vector<26xf32>
    %214 = vector.multi_reduction <add>, %213, %cst_82 [1] : vector<26x26xf32> to vector<26xf32>
    %215 = vector.shape_cast %214 : vector<26xf32> to vector<26x1xf32>
    %216 = tpu.reciprocal %215 {approx = true} : vector<26x1xf32> -> vector<26x1xf32>
    %217 = vector.broadcast %216 : vector<26x1xf32> to vector<26x26xf32>
    %218 = arith.mulf %213, %217 : vector<26x26xf32>
    %219 = arith.truncf %218 : vector<26x26xf32> to vector<26x26xbf16>
    %220 = vector.extract_strided_slice %201 {offsets = [0, 0], sizes = [26, 32], strides = [1, 1]} : vector<26x128xbf16> to vector<26x32xbf16>
    %cst_83 = arith.constant dense<0.000000e+00> : vector<26x32xf32>
    %221 = tpu.matmul %219, %220, %cst_83 {dimension_numbers = #tpu.dot_dimension_numbers<[1], [0], [0], [1], [0, 0, 1, 1], [], []>} : vector<26x26xbf16>, vector<26x32xbf16>, vector<26x32xf32> -> vector<26x32xf32>
    %222 = vector.extract_strided_slice %199 {offsets = [0, 32], sizes = [26, 32], strides = [1, 1]} : vector<26x128xbf16> to vector<26x32xbf16>
    %223 = vector.extract_strided_slice %200 {offsets = [0, 32], sizes = [26, 32], strides = [1, 1]} : vector<26x128xbf16> to vector<26x32xbf16>
    %cst_84 = arith.constant dense<0.000000e+00> : vector<26x26xf32>
    %224 = tpu.matmul %222, %223, %cst_84 {dimension_numbers = #tpu.dot_dimension_numbers<[1], [1], [0], [0], [0, 0, 1, 0], [], []>} : vector<26x32xbf16>, vector<26x32xbf16>, vector<26x26xf32> -> vector<26x26xf32>
    %cst_85 = arith.constant 0.176776692 : f32
    %225 = vector.broadcast %cst_85 : f32 to vector<26x26xf32>
    %226 = arith.mulf %224, %225 : vector<26x26xf32>
    %227 = vector.broadcast %3 : vector<1x26xf32> to vector<26x26xf32>
    %228 = arith.addf %226, %227 : vector<26x26xf32>
    %cst_86 = arith.constant dense<0xFF800000> : vector<26xf32>
    %229 = vector.multi_reduction <maximumf>, %228, %cst_86 [1] : vector<26x26xf32> to vector<26xf32>
    %230 = vector.shape_cast %229 : vector<26xf32> to vector<26x1xf32>
    %231 = vector.broadcast %230 : vector<26x1xf32> to vector<26x26xf32>
    %232 = arith.subf %228, %231 : vector<26x26xf32>
    %233 = math.exp %232 : vector<26x26xf32>
    %cst_87 = arith.constant dense<0.000000e+00> : vector<26xf32>
    %234 = vector.multi_reduction <add>, %233, %cst_87 [1] : vector<26x26xf32> to vector<26xf32>
    %235 = vector.shape_cast %234 : vector<26xf32> to vector<26x1xf32>
    %236 = tpu.reciprocal %235 {approx = true} : vector<26x1xf32> -> vector<26x1xf32>
    %237 = vector.broadcast %236 : vector<26x1xf32> to vector<26x26xf32>
    %238 = arith.mulf %233, %237 : vector<26x26xf32>
    %239 = arith.truncf %238 : vector<26x26xf32> to vector<26x26xbf16>
    %240 = vector.extract_strided_slice %201 {offsets = [0, 32], sizes = [26, 32], strides = [1, 1]} : vector<26x128xbf16> to vector<26x32xbf16>
    %cst_88 = arith.constant dense<0.000000e+00> : vector<26x32xf32>
    %241 = tpu.matmul %239, %240, %cst_88 {dimension_numbers = #tpu.dot_dimension_numbers<[1], [0], [0], [1], [0, 0, 1, 1], [], []>} : vector<26x26xbf16>, vector<26x32xbf16>, vector<26x32xf32> -> vector<26x32xf32>
    %242 = vector.extract_strided_slice %199 {offsets = [0, 64], sizes = [26, 32], strides = [1, 1]} : vector<26x128xbf16> to vector<26x32xbf16>
    %243 = vector.extract_strided_slice %200 {offsets = [0, 64], sizes = [26, 32], strides = [1, 1]} : vector<26x128xbf16> to vector<26x32xbf16>
    %cst_89 = arith.constant dense<0.000000e+00> : vector<26x26xf32>
    %244 = tpu.matmul %242, %243, %cst_89 {dimension_numbers = #tpu.dot_dimension_numbers<[1], [1], [0], [0], [0, 0, 1, 0], [], []>} : vector<26x32xbf16>, vector<26x32xbf16>, vector<26x26xf32> -> vector<26x26xf32>
    %cst_90 = arith.constant 0.176776692 : f32
    %245 = vector.broadcast %cst_90 : f32 to vector<26x26xf32>
    %246 = arith.mulf %244, %245 : vector<26x26xf32>
    %247 = vector.broadcast %3 : vector<1x26xf32> to vector<26x26xf32>
    %248 = arith.addf %246, %247 : vector<26x26xf32>
    %cst_91 = arith.constant dense<0xFF800000> : vector<26xf32>
    %249 = vector.multi_reduction <maximumf>, %248, %cst_91 [1] : vector<26x26xf32> to vector<26xf32>
    %250 = vector.shape_cast %249 : vector<26xf32> to vector<26x1xf32>
    %251 = vector.broadcast %250 : vector<26x1xf32> to vector<26x26xf32>
    %252 = arith.subf %248, %251 : vector<26x26xf32>
    %253 = math.exp %252 : vector<26x26xf32>
    %cst_92 = arith.constant dense<0.000000e+00> : vector<26xf32>
    %254 = vector.multi_reduction <add>, %253, %cst_92 [1] : vector<26x26xf32> to vector<26xf32>
    %255 = vector.shape_cast %254 : vector<26xf32> to vector<26x1xf32>
    %256 = tpu.reciprocal %255 {approx = true} : vector<26x1xf32> -> vector<26x1xf32>
    %257 = vector.broadcast %256 : vector<26x1xf32> to vector<26x26xf32>
    %258 = arith.mulf %253, %257 : vector<26x26xf32>
    %259 = arith.truncf %258 : vector<26x26xf32> to vector<26x26xbf16>
    %260 = vector.extract_strided_slice %201 {offsets = [0, 64], sizes = [26, 32], strides = [1, 1]} : vector<26x128xbf16> to vector<26x32xbf16>
    %cst_93 = arith.constant dense<0.000000e+00> : vector<26x32xf32>
    %261 = tpu.matmul %259, %260, %cst_93 {dimension_numbers = #tpu.dot_dimension_numbers<[1], [0], [0], [1], [0, 0, 1, 1], [], []>} : vector<26x26xbf16>, vector<26x32xbf16>, vector<26x32xf32> -> vector<26x32xf32>
    %262 = vector.extract_strided_slice %199 {offsets = [0, 96], sizes = [26, 32], strides = [1, 1]} : vector<26x128xbf16> to vector<26x32xbf16>
    %263 = vector.extract_strided_slice %200 {offsets = [0, 96], sizes = [26, 32], strides = [1, 1]} : vector<26x128xbf16> to vector<26x32xbf16>
    %cst_94 = arith.constant dense<0.000000e+00> : vector<26x26xf32>
    %264 = tpu.matmul %262, %263, %cst_94 {dimension_numbers = #tpu.dot_dimension_numbers<[1], [1], [0], [0], [0, 0, 1, 0], [], []>} : vector<26x32xbf16>, vector<26x32xbf16>, vector<26x26xf32> -> vector<26x26xf32>
    %cst_95 = arith.constant 0.176776692 : f32
    %265 = vector.broadcast %cst_95 : f32 to vector<26x26xf32>
    %266 = arith.mulf %264, %265 : vector<26x26xf32>
    %267 = vector.broadcast %3 : vector<1x26xf32> to vector<26x26xf32>
    %268 = arith.addf %266, %267 : vector<26x26xf32>
    %cst_96 = arith.constant dense<0xFF800000> : vector<26xf32>
    %269 = vector.multi_reduction <maximumf>, %268, %cst_96 [1] : vector<26x26xf32> to vector<26xf32>
    %270 = vector.shape_cast %269 : vector<26xf32> to vector<26x1xf32>
    %271 = vector.broadcast %270 : vector<26x1xf32> to vector<26x26xf32>
    %272 = arith.subf %268, %271 : vector<26x26xf32>
    %273 = math.exp %272 : vector<26x26xf32>
    %cst_97 = arith.constant dense<0.000000e+00> : vector<26xf32>
    %274 = vector.multi_reduction <add>, %273, %cst_97 [1] : vector<26x26xf32> to vector<26xf32>
    %275 = vector.shape_cast %274 : vector<26xf32> to vector<26x1xf32>
    %276 = tpu.reciprocal %275 {approx = true} : vector<26x1xf32> -> vector<26x1xf32>
    %277 = vector.broadcast %276 : vector<26x1xf32> to vector<26x26xf32>
    %278 = arith.mulf %273, %277 : vector<26x26xf32>
    %279 = arith.truncf %278 : vector<26x26xf32> to vector<26x26xbf16>
    %280 = vector.extract_strided_slice %201 {offsets = [0, 96], sizes = [26, 32], strides = [1, 1]} : vector<26x128xbf16> to vector<26x32xbf16>
    %cst_98 = arith.constant dense<0.000000e+00> : vector<26x32xf32>
    %281 = tpu.matmul %279, %280, %cst_98 {dimension_numbers = #tpu.dot_dimension_numbers<[1], [0], [0], [1], [0, 0, 1, 1], [], []>} : vector<26x26xbf16>, vector<26x32xbf16>, vector<26x32xf32> -> vector<26x32xf32>
    %282 = tpu.concatenate %221, %241, %261, %281 in 1 : vector<26x32xf32>, vector<26x32xf32>, vector<26x32xf32>, vector<26x32xf32> -> vector<26x128xf32>
    %283 = arith.truncf %282 : vector<26x128xf32> to vector<26x128xbf16>
    %cst_99 = arith.constant dense<0.000000e+00> : vector<26x128xf32>
    %284 = tpu.matmul %283, %10, %cst_99 {dimension_numbers = #tpu.dot_dimension_numbers<[1], [0], [0], [1], [0, 0, 1, 1], [], []>} : vector<26x128xbf16>, vector<128x128xbf16>, vector<26x128xf32> -> vector<26x128xf32>
    %285 = vector.broadcast %11 : vector<1x128xf32> to vector<26x128xf32>
    %286 = arith.addf %284, %285 : vector<26x128xf32>
    %287 = arith.addf %188, %286 : vector<26x128xf32>
    %cst_100 = arith.constant dense<0.000000e+00> : vector<26xf32>
    %288 = vector.multi_reduction <add>, %287, %cst_100 [1] : vector<26x128xf32> to vector<26xf32>
    %289 = vector.shape_cast %288 : vector<26xf32> to vector<26x1xf32>
    %cst_101 = arith.constant 1.280000e+02 : f32
    %290 = vector.broadcast %cst_101 : f32 to vector<26x1xf32>
    %291 = arith.divf %289, %290 : vector<26x1xf32>
    %292 = vector.broadcast %291 : vector<26x1xf32> to vector<26x128xf32>
    %293 = arith.subf %287, %292 : vector<26x128xf32>
    %294 = vector.broadcast %291 : vector<26x1xf32> to vector<26x128xf32>
    %295 = arith.subf %287, %294 : vector<26x128xf32>
    %296 = arith.mulf %293, %295 : vector<26x128xf32>
    %cst_102 = arith.constant dense<0.000000e+00> : vector<26xf32>
    %297 = vector.multi_reduction <add>, %296, %cst_102 [1] : vector<26x128xf32> to vector<26xf32>
    %298 = vector.shape_cast %297 : vector<26xf32> to vector<26x1xf32>
    %cst_103 = arith.constant 1.280000e+02 : f32
    %299 = vector.broadcast %cst_103 : f32 to vector<26x1xf32>
    %300 = arith.divf %298, %299 : vector<26x1xf32>
    %301 = vector.broadcast %291 : vector<26x1xf32> to vector<26x128xf32>
    %302 = arith.subf %287, %301 : vector<26x128xf32>
    %cst_104 = arith.constant 9.99999974E-6 : f32
    %303 = vector.broadcast %cst_104 : f32 to vector<26x1xf32>
    %304 = arith.addf %300, %303 : vector<26x1xf32>
    %305 = math.rsqrt %304 : vector<26x1xf32>
    %306 = vector.broadcast %305 : vector<26x1xf32> to vector<26x128xf32>
    %307 = arith.mulf %302, %306 : vector<26x128xf32>
    %308 = vector.broadcast %16 : vector<1x128xf32> to vector<26x128xf32>
    %309 = arith.mulf %307, %308 : vector<26x128xf32>
    %310 = vector.broadcast %17 : vector<1x128xf32> to vector<26x128xf32>
    %311 = arith.addf %309, %310 : vector<26x128xf32>
    %312 = arith.truncf %311 : vector<26x128xf32> to vector<26x128xbf16>
    %cst_105 = arith.constant dense<0.000000e+00> : vector<26x512xf32>
    %313 = tpu.matmul %312, %12, %cst_105 {dimension_numbers = #tpu.dot_dimension_numbers<[1], [0], [0], [1], [0, 0, 1, 1], [], []>} : vector<26x128xbf16>, vector<128x512xbf16>, vector<26x512xf32> -> vector<26x512xf32>
    %314 = vector.broadcast %13 : vector<1x512xf32> to vector<26x512xf32>
    %315 = arith.addf %313, %314 : vector<26x512xf32>
    %316 = arith.mulf %315, %315 : vector<26x512xf32>
    %317 = arith.mulf %315, %316 : vector<26x512xf32>
    %cst_106 = arith.constant 4.471500e-02 : f32
    %318 = vector.broadcast %cst_106 : f32 to vector<26x512xf32>
    %319 = arith.mulf %318, %317 : vector<26x512xf32>
    %320 = arith.addf %315, %319 : vector<26x512xf32>
    %cst_107 = arith.constant 0.797884583 : f32
    %321 = vector.broadcast %cst_107 : f32 to vector<26x512xf32>
    %322 = arith.mulf %321, %320 : vector<26x512xf32>
    %323 = math.tanh %322 : vector<26x512xf32>
    %cst_108 = arith.constant 1.000000e+00 : f32
    %324 = vector.broadcast %cst_108 : f32 to vector<26x512xf32>
    %325 = arith.addf %324, %323 : vector<26x512xf32>
    %cst_109 = arith.constant 5.000000e-01 : f32
    %326 = vector.broadcast %cst_109 : f32 to vector<26x512xf32>
    %327 = arith.mulf %326, %325 : vector<26x512xf32>
    %328 = arith.mulf %315, %327 : vector<26x512xf32>
    %329 = arith.truncf %328 : vector<26x512xf32> to vector<26x512xbf16>
    %cst_110 = arith.constant dense<0.000000e+00> : vector<26x128xf32>
    %330 = tpu.matmul %329, %14, %cst_110 {dimension_numbers = #tpu.dot_dimension_numbers<[1], [0], [0], [1], [0, 0, 1, 1], [], []>} : vector<26x512xbf16>, vector<512x128xbf16>, vector<26x128xf32> -> vector<26x128xf32>
    %331 = vector.broadcast %15 : vector<1x128xf32> to vector<26x128xf32>
    %332 = arith.addf %330, %331 : vector<26x128xf32>
    %333 = arith.addf %311, %332 : vector<26x128xf32>
    %cst_111 = arith.constant dense<0.000000e+00> : vector<26xf32>
    %334 = vector.multi_reduction <add>, %333, %cst_111 [1] : vector<26x128xf32> to vector<26xf32>
    %335 = vector.shape_cast %334 : vector<26xf32> to vector<26x1xf32>
    %cst_112 = arith.constant 1.280000e+02 : f32
    %336 = vector.broadcast %cst_112 : f32 to vector<26x1xf32>
    %337 = arith.divf %335, %336 : vector<26x1xf32>
    %338 = vector.broadcast %337 : vector<26x1xf32> to vector<26x128xf32>
    %339 = arith.subf %333, %338 : vector<26x128xf32>
    %340 = vector.broadcast %337 : vector<26x1xf32> to vector<26x128xf32>
    %341 = arith.subf %333, %340 : vector<26x128xf32>
    %342 = arith.mulf %339, %341 : vector<26x128xf32>
    %cst_113 = arith.constant dense<0.000000e+00> : vector<26xf32>
    %343 = vector.multi_reduction <add>, %342, %cst_113 [1] : vector<26x128xf32> to vector<26xf32>
    %344 = vector.shape_cast %343 : vector<26xf32> to vector<26x1xf32>
    %cst_114 = arith.constant 1.280000e+02 : f32
    %345 = vector.broadcast %cst_114 : f32 to vector<26x1xf32>
    %346 = arith.divf %344, %345 : vector<26x1xf32>
    %347 = vector.broadcast %337 : vector<26x1xf32> to vector<26x128xf32>
    %348 = arith.subf %333, %347 : vector<26x128xf32>
    %cst_115 = arith.constant 9.99999974E-6 : f32
    %349 = vector.broadcast %cst_115 : f32 to vector<26x1xf32>
    %350 = arith.addf %346, %349 : vector<26x1xf32>
    %351 = math.rsqrt %350 : vector<26x1xf32>
    %352 = vector.broadcast %351 : vector<26x1xf32> to vector<26x128xf32>
    %353 = arith.mulf %348, %352 : vector<26x128xf32>
    %354 = vector.broadcast %18 : vector<1x128xf32> to vector<26x128xf32>
    %355 = arith.mulf %353, %354 : vector<26x128xf32>
    %356 = vector.broadcast %19 : vector<1x128xf32> to vector<26x128xf32>
    %357 = arith.addf %355, %356 : vector<26x128xf32>
    %358 = vector.extract_strided_slice %357 {offsets = [16, 0], sizes = [10, 128], strides = [1, 1]} : vector<26x128xf32> to vector<10x128xf32>
    %359 = arith.truncf %358 : vector<10x128xf32> to vector<10x128xbf16>
    %c0_116 = arith.constant 0 : index
    %c0_117 = arith.constant 0 : index
    %360 = vector.load %arg19[%c0_116, %c0_117] : memref<128x1024xbf16, #tpu.memory_space<vmem>>, vector<128x1024xbf16>
    %cst_118 = arith.constant dense<0.000000e+00> : vector<10x1024xf32>
    %361 = tpu.matmul %359, %360, %cst_118 {dimension_numbers = #tpu.dot_dimension_numbers<[1], [0], [0], [1], [0, 0, 1, 1], [], []>} : vector<10x128xbf16>, vector<128x1024xbf16>, vector<10x1024xf32> -> vector<10x1024xf32>
    %c0_119 = arith.constant 0 : index
    %c0_120 = arith.constant 0 : index
    %c0_121 = arith.constant 0 : index
    %362 = vector.load %arg20[%c0_119, %c0_120, %c0_121] : memref<1x10x1xi32, #tpu.memory_space<vmem>>, vector<1x10x1xi32>
    %363 = vector.shape_cast %362 : vector<1x10x1xi32> to vector<10x1xi32>
    %364 = tpu.iota {dimensions = array<i32: 1>} : vector<10x1024xi32>
    %365 = vector.broadcast %363 : vector<10x1xi32> to vector<10x1024xi32>
    %366 = arith.cmpi eq, %364, %365 : vector<10x1024xi32>
    %367 = arith.extui %366 : vector<10x1024xi1> to vector<10x1024xi32>
    %368 = arith.sitofp %367 : vector<10x1024xi32> to vector<10x1024xf32>
    %cst_122 = arith.constant dense<0xFF800000> : vector<10xf32>
    %369 = vector.multi_reduction <maximumf>, %361, %cst_122 [1] : vector<10x1024xf32> to vector<10xf32>
    %370 = vector.shape_cast %369 : vector<10xf32> to vector<10x1xf32>
    %371 = vector.broadcast %370 : vector<10x1xf32> to vector<10x1024xf32>
    %372 = arith.subf %361, %371 : vector<10x1024xf32>
    %373 = math.exp %372 : vector<10x1024xf32>
    %cst_123 = arith.constant dense<0.000000e+00> : vector<10xf32>
    %374 = vector.multi_reduction <add>, %373, %cst_123 [1] : vector<10x1024xf32> to vector<10xf32>
    %375 = vector.shape_cast %374 : vector<10xf32> to vector<10x1xf32>
    %376 = math.log %375 : vector<10x1xf32>
    %377 = arith.addf %370, %376 : vector<10x1xf32>
    %378 = arith.mulf %361, %368 : vector<10x1024xf32>
    %cst_124 = arith.constant dense<0.000000e+00> : vector<10xf32>
    %379 = vector.multi_reduction <add>, %378, %cst_124 [1] : vector<10x1024xf32> to vector<10xf32>
    %380 = vector.shape_cast %379 : vector<10xf32> to vector<10x1xf32>
    %c-100_i32 = arith.constant -100 : i32
    %381 = vector.broadcast %c-100_i32 : i32 to vector<10x1xi32>
    %382 = arith.cmpi ne, %363, %381 : vector<10x1xi32>
    %383 = arith.extui %382 : vector<10x1xi1> to vector<10x1xi32>
    %384 = arith.sitofp %383 : vector<10x1xi32> to vector<10x1xf32>
    %385 = arith.subf %377, %380 : vector<10x1xf32>
    %386 = arith.mulf %384, %385 : vector<10x1xf32>
    %387 = vector.shape_cast %386 : vector<10x1xf32> to vector<1x10x1xf32>
    %cst_125 = arith.constant dense<0.000000e+00> : vector<1xf32>
    %388 = vector.multi_reduction <add>, %387, %cst_125 [1, 2] : vector<1x10x1xf32> to vector<1xf32>
    %389 = vector.shape_cast %388 : vector<1xf32> to vector<1x1x1xf32>
    %390 = vector.extract %389[0, 0, 0] : f32 from vector<1x1x1xf32>
    %391 = vector.broadcast %390 : f32 to vector<1x1xf32>
    %c0_126 = arith.constant 0 : index
    %c0_127 = arith.constant 0 : index
    %c0_128 = arith.constant 0 : index
    %392 = vector.load %arg21[%c0_126, %c0_127, %c0_128] : memref<1x1x1xf32, #tpu.memory_space<vmem>>, vector<1x1x1xf32>
    %393 = vector.shape_cast %392 : vector<1x1x1xf32> to vector<1x1xf32>
    %394 = vector.shape_cast %391 : vector<1x1xf32> to vector<1x1x1xf32>
    tpu.vector_store %arg21[%c0_126, %c0_127, %c0_128], %394 {strides = array<i32>} : memref<1x1x1xf32, #tpu.memory_space<vmem>>, vector<1x1x1xf32>,
    %395 = vector.shape_cast %384 : vector<10x1xf32> to vector<1x10x1xf32>
    %cst_129 = arith.constant dense<0.000000e+00> : vector<1xf32>
    %396 = vector.multi_reduction <add>, %395, %cst_129 [1, 2] : vector<1x10x1xf32> to vector<1xf32>
    %397 = vector.shape_cast %396 : vector<1xf32> to vector<1x1x1xf32>
    %398 = vector.extract %397[0, 0, 0] : f32 from vector<1x1x1xf32>
    %399 = vector.broadcast %398 : f32 to vector<1x1xf32>
    %c0_130 = arith.constant 0 : index
    %c0_131 = arith.constant 0 : index
    %c0_132 = arith.constant 0 : index
    %400 = vector.load %arg22[%c0_130, %c0_131, %c0_132] : memref<1x1x1xf32, #tpu.memory_space<vmem>>, vector<1x1x1xf32>
    %401 = vector.shape_cast %400 : vector<1x1x1xf32> to vector<1x1xf32>
    %402 = vector.shape_cast %399 : vector<1x1xf32> to vector<1x1x1xf32>
    tpu.vector_store %arg22[%c0_130, %c0_131, %c0_132], %402 {strides = array<i32>} : memref<1x1x1xf32, #tpu.memory_space<vmem>>, vector<1x1x1xf32>,
    return
  }
  func.func @transform_0(%arg0: i32) -> (i32, i32, i32) {
    %c0_i32 = arith.constant 0 : i32
    %c0_i32_0 = arith.constant 0 : i32
    %c0_i32_1 = arith.constant 0 : i32
    return %arg0, %c0_i32, %c0_i32_0 : i32, i32, i32
  }
  func.func @transform_1(%arg0: i32) -> (i32, i32, i32) {
    %c0_i32 = arith.constant 0 : i32
    %c0_i32_0 = arith.constant 0 : i32
    %c0_i32_1 = arith.constant 0 : i32
    return %arg0, %c0_i32, %c0_i32_0 : i32, i32, i32
  }
  func.func @transform_2(%arg0: i32) -> (i32, i32) {
    %c0_i32 = arith.constant 0 : i32
    %c0_i32_0 = arith.constant 0 : i32
    %c0_i32_1 = arith.constant 0 : i32
    return %c0_i32, %c0_i32_0 : i32, i32
  }
  func.func @transform_3(%arg0: i32) -> (i32, i32) {
    %c0_i32 = arith.constant 0 : i32
    %c0_i32_0 = arith.constant 0 : i32
    %c0_i32_1 = arith.constant 0 : i32
    return %c0_i32, %c0_i32_0 : i32, i32
  }
  func.func @transform_4(%arg0: i32) -> (i32, i32) {
    %c0_i32 = arith.constant 0 : i32
    %c0_i32_0 = arith.constant 0 : i32
    %c0_i32_1 = arith.constant 0 : i32
    return %c0_i32, %c0_i32_0 : i32, i32
  }
  func.func @transform_5(%arg0: i32) -> (i32, i32) {
    %c0_i32 = arith.constant 0 : i32
    %c0_i32_0 = arith.constant 0 : i32
    %c0_i32_1 = arith.constant 0 : i32
    return %c0_i32, %c0_i32_0 : i32, i32
  }
  func.func @transform_6(%arg0: i32) -> (i32, i32) {
    %c0_i32 = arith.constant 0 : i32
    %c0_i32_0 = arith.constant 0 : i32
    %c0_i32_1 = arith.constant 0 : i32
    return %c0_i32, %c0_i32_0 : i32, i32
  }
  func.func @transform_7(%arg0: i32) -> (i32, i32) {
    %c0_i32 = arith.constant 0 : i32
    %c0_i32_0 = arith.constant 0 : i32
    %c0_i32_1 = arith.constant 0 : i32
    return %c0_i32, %c0_i32_0 : i32, i32
  }
  func.func @transform_8(%arg0: i32) -> (i32, i32) {
    %c0_i32 = arith.constant 0 : i32
    %c0_i32_0 = arith.constant 0 : i32
    %c0_i32_1 = arith.constant 0 : i32
    return %c0_i32, %c0_i32_0 : i32, i32
  }
  func.func @transform_9(%arg0: i32) -> (i32, i32) {
    %c0_i32 = arith.constant 0 : i32
    %c0_i32_0 = arith.constant 0 : i32
    %c0_i32_1 = arith.constant 0 : i32
    return %c0_i32, %c0_i32_0 : i32, i32
  }
  func.func @transform_10(%arg0: i32) -> (i32, i32) {
    %c0_i32 = arith.constant 0 : i32
    %c0_i32_0 = arith.constant 0 : i32
    %c0_i32_1 = arith.constant 0 : i32
    return %c0_i32, %c0_i32_0 : i32, i32
  }
  func.func @transform_11(%arg0: i32) -> (i32, i32) {
    %c0_i32 = arith.constant 0 : i32
    %c0_i32_0 = arith.constant 0 : i32
    %c0_i32_1 = arith.constant 0 : i32
    return %c0_i32, %c0_i32_0 : i32, i32
  }
  func.func @transform_12(%arg0: i32) -> (i32, i32) {
    %c0_i32 = arith.constant 0 : i32
    %c0_i32_0 = arith.constant 0 : i32
    %c0_i32_1 = arith.constant 0 : i32
    return %c0_i32, %c0_i32_0 : i32, i32
  }
  func.func @transform_13(%arg0: i32) -> (i32, i32) {
    %c0_i32 = arith.constant 0 : i32
    %c0_i32_0 = arith.constant 0 : i32
    %c0_i32_1 = arith.constant 0 : i32
    return %c0_i32, %c0_i32_0 : i32, i32
  }
  func.func @transform_14(%arg0: i32) -> (i32, i32) {
    %c0_i32 = arith.constant 0 : i32
    %c0_i32_0 = arith.constant 0 : i32
    %c0_i32_1 = arith.constant 0 : i32
    return %c0_i32, %c0_i32_0 : i32, i32
  }
  func.func @transform_15(%arg0: i32) -> (i32, i32) {
    %c0_i32 = arith.constant 0 : i32
    %c0_i32_0 = arith.constant 0 : i32
    %c0_i32_1 = arith.constant 0 : i32
    return %c0_i32, %c0_i32_0 : i32, i32
  }
  func.func @transform_16(%arg0: i32) -> (i32, i32) {
    %c0_i32 = arith.constant 0 : i32
    %c0_i32_0 = arith.constant 0 : i32
    %c0_i32_1 = arith.constant 0 : i32
    return %c0_i32, %c0_i32_0 : i32, i32
  }
  func.func @transform_17(%arg0: i32) -> (i32, i32) {
    %c0_i32 = arith.constant 0 : i32
    %c0_i32_0 = arith.constant 0 : i32
    %c0_i32_1 = arith.constant 0 : i32
    return %c0_i32, %c0_i32_0 : i32, i32
  }
  func.func @transform_18(%arg0: i32) -> (i32, i32) {
    %c0_i32 = arith.constant 0 : i32
    %c0_i32_0 = arith.constant 0 : i32
    %c0_i32_1 = arith.constant 0 : i32
    return %c0_i32, %c0_i32_0 : i32, i32
  }
  func.func @transform_19(%arg0: i32) -> (i32, i32, i32) {
    %c0_i32 = arith.constant 0 : i32
    %c0_i32_0 = arith.constant 0 : i32
    %c0_i32_1 = arith.constant 0 : i32
    return %arg0, %c0_i32, %c0_i32_0 : i32, i32, i32
  }
  func.func @transform_20(%arg0: i32) -> (i32, i32, i32) {
    %c0_i32 = arith.constant 0 : i32
    %c0_i32_0 = arith.constant 0 : i32
    %c0_i32_1 = arith.constant 0 : i32
    return %arg0, %c0_i32, %c0_i32_0 : i32, i32, i32
  }
  func.func @transform_21(%arg0: i32) -> (i32, i32, i32) {
    %c0_i32 = arith.constant 0 : i32
    %c0_i32_0 = arith.constant 0 : i32
    %c0_i32_1 = arith.constant 0 : i32
    return %arg0, %c0_i32, %c0_i32_0 : i32, i32, i32
  }
}

</mosaic_0001>

<llo_original>
// kernel: tpu_custom_call.1
$region0: #{tpu_custom_call.1}
  #allocation0 [shape = 'u32[]', space=smem, size = 0x4, offset = 0x4, fixed_abs, tag = 'smem constant byte address 0x4 - core index']
  #allocation1 [shape = 'u32[144,128]{1,0:T(1,128)}', space=vmem, size = 0x12000, scoped, tag = 'internal scratch']
  %s0 = inlined_call_operand.vmem [shape: f32[2,26,128], index: 0, kind: input, shape index: {}]
  %s1 = inlined_call_operand.vmem [shape: f32[2,1,26], index: 1, kind: input, shape index: {}]
  %s2 = inlined_call_operand.vmem [shape: bf16[128,128], index: 2, kind: input, shape index: {}]
  %s3 = inlined_call_operand.vmem [shape: bf16[128,128], index: 3, kind: input, shape index: {}]
  %s4 = inlined_call_operand.hbm [shape: bf16[128,128], index: 4, kind: input, shape index: {}]
  %s5 = inlined_call_operand.vmem [shape: f32[1,128], index: 5, kind: input, shape index: {}]
  %s6 = inlined_call_operand.vmem [shape: f32[1,128], index: 6, kind: input, shape index: {}]
  %s7 = inlined_call_operand.vmem [shape: f32[1,128], index: 7, kind: input, shape index: {}]
  %s8 = inlined_call_operand.hbm [shape: bf16[128,128], index: 8, kind: input, shape index: {}]
  %s9 = inlined_call_operand.vmem [shape: f32[1,128], index: 9, kind: input, shape index: {}]
  %s10 = inlined_call_operand.hbm [shape: bf16[128,512], index: 10, kind: input, shape index: {}]
  %s11 = inlined_call_operand.vmem [shape: f32[1,512], index: 11, kind: input, shape index: {}]
  %s12 = inlined_call_operand.hbm [shape: bf16[512,128], index: 12, kind: input, shape index: {}]
  %s13 = inlined_call_operand.vmem [shape: f32[1,128], index: 13, kind: input, shape index: {}]
  %s14 = inlined_call_operand.vmem [shape: f32[1,128], index: 14, kind: input, shape index: {}]
  %s15 = inlined_call_operand.vmem [shape: f32[1,128], index: 15, kind: input, shape index: {}]
  %s16 = inlined_call_operand.vmem [shape: f32[1,128], index: 16, kind: input, shape index: {}]
  %s17 = inlined_call_operand.vmem [shape: f32[1,128], index: 17, kind: input, shape index: {}]
  %s18 = inlined_call_operand.hbm [shape: bf16[128,1024], index: 18, kind: input, shape index: {}]
  %s19 = inlined_call_operand.vmem [shape: s32[2,10,1], index: 19, kind: input, shape index: {}]
  %s20 = inlined_call_operand.vmem [shape: f32[2,1,1], index: 20, kind: output, shape index: {0}]
  %s21 = inlined_call_operand.vmem [shape: f32[2,1,1], index: 21, kind: output, shape index: {1}]
  %22 = xla_tuple %s20, %s21
  %s23 = sld [smem:[#allocation0]]
  $region141: #{tpu_custom_call.1} parent=0
    _
  %s25 = ssub.s32 1, %s23
  %s26 = scalar_select 0, %s25, %s23
  $region1: #{tpu_custom_call.1} parent=0
    #allocation2 [shape = 'u8[32768]{0}', space=vmem, size = 0x8000, scoped, tag = 'input window, operand 4, single buffered']
    #allocation3 [shape = 's32[2]{0}', space=sflag, size = 0x8, scoped, tag = 'scoped memory for tpu_custom_call.1']
    #allocation4 [shape = 'u8[32768]{0}', space=vmem, size = 0x8000, scoped, tag = 'input window, operand 8, single buffered']
    #allocation5 [shape = 's32[1]{0}', space=sflag, size = 0x4, scoped, tag = 'scoped memory for tpu_custom_call.1']
    #allocation6 [shape = 'u8[131072]{0}', space=vmem, size = 0x20000, scoped, tag = 'input window, operand 10, single buffered']
    #allocation7 [shape = 'u8[131072]{0}', space=vmem, size = 0x20000, scoped, tag = 'input window, operand 12, single buffered']
    #allocation8 [shape = 's32[1]{0}', space=sflag, size = 0x4, scoped, tag = 'scoped memory for tpu_custom_call.1']
    #allocation9 [shape = 'u8[262144]{0}', space=vmem, size = 0x40000, scoped, tag = 'input window, operand 18, single buffered']
    %27 = vsyncpa [#allocation3], 0
    %28 = vsyncpa [#allocation5], 0
    %29 = vsyncpa [#allocation8], 0
    loop: start=0, step=1, limit=4
    $region2: #{tpu_custom_call.1} parent=1 // loop_pre_header
      _
    $region3: #{tpu_custom_call.1} parent=1 // loop_header
      %s31 = sphi 0, %s35
      %p32 = scmp.ge.s32.totalorder %s31, 4
      %s41 = sphi 0, %s43
      %s44 = sphi 0, %s41
      %s45 = sphi 0, %s44
      %s61 = sphi 0, %s45
      %s67 = sphi 0, %s69
      %s70 = sphi 0, %s67
      %s71 = sphi 0, %s70
      %s87 = sphi 0, %s71
      %s91 = sphi 0, %s91
      %s93 = sphi 0, %s91
      %s94 = sphi 0, %s93
      %s108 = sphi 0, %s94
      %s112 = sphi 0, %s112
      %s114 = sphi 0, %s112
      %s115 = sphi 0, %s114
      %s129 = sphi 0, %s115
      %s133 = sphi 0, %s133
      %s135 = sphi 0, %s133
      %s136 = sphi 0, %s135
      %s150 = sphi 0, %s136
      %s154 = sphi 0, %s154
      %s156 = sphi 0, %s154
      %s157 = sphi 0, %s156
      %s171 = sphi 0, %s157
      %s175 = sphi 0, %s175
      %s177 = sphi 0, %s175
      %s178 = sphi 0, %s177
      %s192 = sphi 0, %s178
      %s196 = sphi 0, %s196
      %s198 = sphi 0, %s196
      %s199 = sphi 0, %s198
      %s213 = sphi 0, %s199
      %s217 = sphi 0, %s217
      %s219 = sphi 0, %s217
      %s220 = sphi 0, %s219
      %s234 = sphi 0, %s220
      %s238 = sphi 0, %s238
      %s240 = sphi 0, %s238
      %s241 = sphi 0, %s240
      %s255 = sphi 0, %s241
      %s259 = sphi 0, %s259
      %s261 = sphi 0, %s259
      %s262 = sphi 0, %s261
      %s276 = sphi 0, %s262
      %s280 = sphi 0, %s280
      %s282 = sphi 0, %s280
      %s283 = sphi 0, %s282
      %s297 = sphi 0, %s283
      %s301 = sphi 0, %s301
      %s303 = sphi 0, %s301
      %s304 = sphi 0, %s303
      %s318 = sphi 0, %s304
      %s322 = sphi 0, %s322
      %s324 = sphi 0, %s322
      %s325 = sphi 0, %s324
      %s339 = sphi 0, %s325
      %s343 = sphi 0, %s343
      %s345 = sphi 0, %s343
      %s346 = sphi 0, %s345
      %s360 = sphi 0, %s346
      %s364 = sphi 0, %s364
      %s366 = sphi 0, %s364
      %s367 = sphi 0, %s366
      %s381 = sphi 0, %s367
      %s385 = sphi 0, %s385
      %s387 = sphi 0, %s385
      %s388 = sphi 0, %s387
      %s402 = sphi 0, %s388
      %s406 = sphi 0, %s406
      %s408 = sphi 0, %s406
      %s409 = sphi 0, %s408
      %s423 = sphi 0, %s409
      %s427 = sphi 0, %s427
      %s429 = sphi 0, %s427
      %s430 = sphi 0, %s429
      %s444 = sphi 0, %s430
      %s450 = sphi 0, %s452
      %s453 = sphi 0, %s450
      %s454 = sphi 0, %s453
      %s470 = sphi 0, %s454
      %s476 = sphi 0, %s478
      %s479 = sphi 0, %s476
      %s480 = sphi 0, %s479
      %s496 = sphi 0, %s480
      %s502 = sphi 0, %s504
      %s505 = sphi 0, %s502
      %s506 = sphi 0, %s505
      %s522 = sphi 0, %s506
    $region4: #{tpu_custom_call.1} parent=1 // loop_header_branch
      %34 = sbr.rel (%p32) target = $region8
    $region5: #{tpu_custom_call.1} parent=1 // loop_body
      %s36 = ssub.s32 %s31, 1
      %s37 = ssub.s32 %s31, 2
      %s38 = sadd.s32 %s31, 1
      %s39 = ssub.s32 %s31, %s38
      %p40 = scmp.eq.s32.totalorder %s39, 0
      %s42 = sadd.s32 %s41, 1
      %s43 = scalar_select %p40, %s41, %s42
      %p46 = pneg %p40
      %p47 = scmp.eq.s32.totalorder %s31, 1
      %p48 = por %p46, %p47
      %p49 = scmp.ne.s32.totalorder %s41, %s44
      %p50 = scmp.eq.s32.totalorder %s31, 0
      %p51 = por %p49, %p50
      %p52 = scmp.ne.s32.totalorder %s41, %s44
      %p53 = scmp.eq.s32.totalorder %s36, 1
      %p54 = por %p52, %p53
      %p55 = scmp.ne.s32.totalorder %s44, %s45
      %p56 = scmp.eq.s32.totalorder %s36, 0
      %p57 = por %p55, %p56
      %p58 = scmp.ne.s32.totalorder %s44, %s45
      %p59 = scmp.eq.s32.totalorder %s37, 1
      %p60 = por %p58, %p59
      %p62 = scmp.ne.s32.totalorder %s45, %s61
      %p63 = scmp.eq.s32.totalorder %s37, 0
      %p64 = por %p62, %p63
      %s65 = ssub.s32 %s31, %s38
      %p66 = scmp.eq.s32.totalorder %s65, 0
      %s68 = sadd.s32 %s67, 1
      %s69 = scalar_select %p66, %s67, %s68
      %p72 = pneg %p66
      %p73 = scmp.eq.s32.totalorder %s31, 1
      %p74 = por %p72, %p73
      %p75 = scmp.ne.s32.totalorder %s67, %s70
      %p76 = scmp.eq.s32.totalorder %s31, 0
      %p77 = por %p75, %p76
      %p78 = scmp.ne.s32.totalorder %s67, %s70
      %p79 = scmp.eq.s32.totalorder %s36, 1
      %p80 = por %p78, %p79
      %p81 = scmp.ne.s32.totalorder %s70, %s71
      %p82 = scmp.eq.s32.totalorder %s36, 0
      %p83 = por %p81, %p82
      %p84 = scmp.ne.s32.totalorder %s70, %s71
      %p85 = scmp.eq.s32.totalorder %s37, 1
      %p86 = por %p84, %p85
      %p88 = scmp.ne.s32.totalorder %s71, %s87
      %p89 = scmp.eq.s32.totalorder %s37, 0
      %p90 = por %p88, %p89
      %s92 = sadd.s32 %s91, 1
      %p95 = scmp.eq.s32.totalorder %s31, 1
      %p96 = scmp.ne.s32.totalorder %s91, %s93
      %p97 = scmp.eq.s32.totalorder %s31, 0
      %p98 = por %p96, %p97
      %p99 = scmp.ne.s32.totalorder %s91, %s93
      %p100 = scmp.eq.s32.totalorder %s36, 1
      %p101 = por %p99, %p100
      %p102 = scmp.ne.s32.totalorder %s93, %s94
      %p103 = scmp.eq.s32.totalorder %s36, 0
      %p104 = por %p102, %p103
      %p105 = scmp.ne.s32.totalorder %s93, %s94
      %p106 = scmp.eq.s32.totalorder %s37, 1
      %p107 = por %p105, %p106
      %p109 = scmp.ne.s32.totalorder %s94, %s108
      %p110 = scmp.eq.s32.totalorder %s37, 0
      %p111 = por %p109, %p110
      %s113 = sadd.s32 %s112, 1
      %p116 = scmp.eq.s32.totalorder %s31, 1
      %p117 = scmp.ne.s32.totalorder %s112, %s114
      %p118 = scmp.eq.s32.totalorder %s31, 0
      %p119 = por %p117, %p118
      %p120 = scmp.ne.s32.totalorder %s112, %s114
      %p121 = scmp.eq.s32.totalorder %s36, 1
      %p122 = por %p120, %p121
      %p123 = scmp.ne.s32.totalorder %s114, %s115
      %p124 = scmp.eq.s32.totalorder %s36, 0
      %p125 = por %p123, %p124
      %p126 = scmp.ne.s32.totalorder %s114, %s115
      %p127 = scmp.eq.s32.totalorder %s37, 1
      %p128 = por %p126, %p127
      %p130 = scmp.ne.s32.totalorder %s115, %s129
      %p131 = scmp.eq.s32.totalorder %s37, 0
      %p132 = por %p130, %p131
      %s134 = sadd.s32 %s133, 1
      %p137 = scmp.eq.s32.totalorder %s31, 1
      %p138 = scmp.ne.s32.totalorder %s133, %s135
      %p139 = scmp.eq.s32.totalorder %s31, 0
      %p140 = por %p138, %p139
      %p141 = scmp.ne.s32.totalorder %s133, %s135
      %p142 = scmp.eq.s32.totalorder %s36, 1
      %p143 = por %p141, %p142
      %p144 = scmp.ne.s32.totalorder %s135, %s136
      %p145 = scmp.eq.s32.totalorder %s36, 0
      %p146 = por %p144, %p145
      %p147 = scmp.ne.s32.totalorder %s135, %s136
      %p148 = scmp.eq.s32.totalorder %s37, 1
      %p149 = por %p147, %p148
      %p151 = scmp.ne.s32.totalorder %s136, %s150
      %p152 = scmp.eq.s32.totalorder %s37, 0
      %p153 = por %p151, %p152
      %s155 = sadd.s32 %s154, 1
      %p158 = scmp.eq.s32.totalorder %s31, 1
      %p159 = scmp.ne.s32.totalorder %s154, %s156
      %p160 = scmp.eq.s32.totalorder %s31, 0
      %p161 = por %p159, %p160
      %p162 = scmp.ne.s32.totalorder %s154, %s156
      %p163 = scmp.eq.s32.totalorder %s36, 1
      %p164 = por %p162, %p163
      %p165 = scmp.ne.s32.totalorder %s156, %s157
      %p166 = scmp.eq.s32.totalorder %s36, 0
      %p167 = por %p165, %p166
      %p168 = scmp.ne.s32.totalorder %s156, %s157
      %p169 = scmp.eq.s32.totalorder %s37, 1
      %p170 = por %p168, %p169
      %p172 = scmp.ne.s32.totalorder %s157, %s171
      %p173 = scmp.eq.s32.totalorder %s37, 0
      %p174 = por %p172, %p173
      %s176 = sadd.s32 %s175, 1
      %p179 = scmp.eq.s32.totalorder %s31, 1
      %p180 = scmp.ne.s32.totalorder %s175, %s177
      %p181 = scmp.eq.s32.totalorder %s31, 0
      %p182 = por %p180, %p181
      %p183 = scmp.ne.s32.totalorder %s175, %s177
      %p184 = scmp.eq.s32.totalorder %s36, 1
      %p185 = por %p183, %p184
      %p186 = scmp.ne.s32.totalorder %s177, %s178
      %p187 = scmp.eq.s32.totalorder %s36, 0
      %p188 = por %p186, %p187
      %p189 = scmp.ne.s32.totalorder %s177, %s178
      %p190 = scmp.eq.s32.totalorder %s37, 1
      %p191 = por %p189, %p190
      %p193 = scmp.ne.s32.totalorder %s178, %s192
      %p194 = scmp.eq.s32.totalorder %s37, 0
      %p195 = por %p193, %p194
      %s197 = sadd.s32 %s196, 1
      %p200 = scmp.eq.s32.totalorder %s31, 1
      %p201 = scmp.ne.s32.totalorder %s196, %s198
      %p202 = scmp.eq.s32.totalorder %s31, 0
      %p203 = por %p201, %p202
      %p204 = scmp.ne.s32.totalorder %s196, %s198
      %p205 = scmp.eq.s32.totalorder %s36, 1
      %p206 = por %p204, %p205
      %p207 = scmp.ne.s32.totalorder %s198, %s199
      %p208 = scmp.eq.s32.totalorder %s36, 0
      %p209 = por %p207, %p208
      %p210 = scmp.ne.s32.totalorder %s198, %s199
      %p211 = scmp.eq.s32.totalorder %s37, 1
      %p212 = por %p210, %p211
      %p214 = scmp.ne.s32.totalorder %s199, %s213
      %p215 = scmp.eq.s32.totalorder %s37, 0
      %p216 = por %p214, %p215
      %s218 = sadd.s32 %s217, 1
      %p221 = scmp.eq.s32.totalorder %s31, 1
      %p222 = scmp.ne.s32.totalorder %s217, %s219
      %p223 = scmp.eq.s32.totalorder %s31, 0
      %p224 = por %p222, %p223
      %p225 = scmp.ne.s32.totalorder %s217, %s219
      %p226 = scmp.eq.s32.totalorder %s36, 1
      %p227 = por %p225, %p226
      %p228 = scmp.ne.s32.totalorder %s219, %s220
      %p229 = scmp.eq.s32.totalorder %s36, 0
      %p230 = por %p228, %p229
      %p231 = scmp.ne.s32.totalorder %s219, %s220
      %p232 = scmp.eq.s32.totalorder %s37, 1
      %p233 = por %p231, %p232
      %p235 = scmp.ne.s32.totalorder %s220, %s234
      %p236 = scmp.eq.s32.totalorder %s37, 0
      %p237 = por %p235, %p236
      %s239 = sadd.s32 %s238, 1
      %p242 = scmp.eq.s32.totalorder %s31, 1
      %p243 = scmp.ne.s32.totalorder %s238, %s240
      %p244 = scmp.eq.s32.totalorder %s31, 0
      %p245 = por %p243, %p244
      %p246 = scmp.ne.s32.totalorder %s238, %s240
      %p247 = scmp.eq.s32.totalorder %s36, 1
      %p248 = por %p246, %p247
      %p249 = scmp.ne.s32.totalorder %s240, %s241
      %p250 = scmp.eq.s32.totalorder %s36, 0
      %p251 = por %p249, %p250
      %p252 = scmp.ne.s32.totalorder %s240, %s241
      %p253 = scmp.eq.s32.totalorder %s37, 1
      %p254 = por %p252, %p253
      %p256 = scmp.ne.s32.totalorder %s241, %s255
      %p257 = scmp.eq.s32.totalorder %s37, 0
      %p258 = por %p256, %p257
      %s260 = sadd.s32 %s259, 1
      %p263 = scmp.eq.s32.totalorder %s31, 1
      %p264 = scmp.ne.s32.totalorder %s259, %s261
      %p265 = scmp.eq.s32.totalorder %s31, 0
      %p266 = por %p264, %p265
      %p267 = scmp.ne.s32.totalorder %s259, %s261
      %p268 = scmp.eq.s32.totalorder %s36, 1
      %p269 = por %p267, %p268
      %p270 = scmp.ne.s32.totalorder %s261, %s262
      %p271 = scmp.eq.s32.totalorder %s36, 0
      %p272 = por %p270, %p271
      %p273 = scmp.ne.s32.totalorder %s261, %s262
      %p274 = scmp.eq.s32.totalorder %s37, 1
      %p275 = por %p273, %p274
      %p277 = scmp.ne.s32.totalorder %s262, %s276
      %p278 = scmp.eq.s32.totalorder %s37, 0
      %p279 = por %p277, %p278
      %s281 = sadd.s32 %s280, 1
      %p284 = scmp.eq.s32.totalorder %s31, 1
      %p285 = scmp.ne.s32.totalorder %s280, %s282
      %p286 = scmp.eq.s32.totalorder %s31, 0
      %p287 = por %p285, %p286
      %p288 = scmp.ne.s32.totalorder %s280, %s282
      %p289 = scmp.eq.s32.totalorder %s36, 1
      %p290 = por %p288, %p289
      %p291 = scmp.ne.s32.totalorder %s282, %s283
      %p292 = scmp.eq.s32.totalorder %s36, 0
      %p293 = por %p291, %p292
      %p294 = scmp.ne.s32.totalorder %s282, %s283
      %p295 = scmp.eq.s32.totalorder %s37, 1
      %p296 = por %p294, %p295
      %p298 = scmp.ne.s32.totalorder %s283, %s297
      %p299 = scmp.eq.s32.totalorder %s37, 0
      %p300 = por %p298, %p299
      %s302 = sadd.s32 %s301, 1
      %p305 = scmp.eq.s32.totalorder %s31, 1
      %p306 = scmp.ne.s32.totalorder %s301, %s303
      %p307 = scmp.eq.s32.totalorder %s31, 0
      %p308 = por %p306, %p307
      %p309 = scmp.ne.s32.totalorder %s301, %s303
      %p310 = scmp.eq.s32.totalorder %s36, 1
      %p311 = por %p309, %p310
      %p312 = scmp.ne.s32.totalorder %s303, %s304
      %p313 = scmp.eq.s32.totalorder %s36, 0
      %p314 = por %p312, %p313
      %p315 = scmp.ne.s32.totalorder %s303, %s304
      %p316 = scmp.eq.s32.totalorder %s37, 1
      %p317 = por %p315, %p316
      %p319 = scmp.ne.s32.totalorder %s304, %s318
      %p320 = scmp.eq.s32.totalorder %s37, 0
      %p321 = por %p319, %p320
      %s323 = sadd.s32 %s322, 1
      %p326 = scmp.eq.s32.totalorder %s31, 1
      %p327 = scmp.ne.s32.totalorder %s322, %s324
      %p328 = scmp.eq.s32.totalorder %s31, 0
      %p329 = por %p327, %p328
      %p330 = scmp.ne.s32.totalorder %s322, %s324
      %p331 = scmp.eq.s32.totalorder %s36, 1
      %p332 = por %p330, %p331
      %p333 = scmp.ne.s32.totalorder %s324, %s325
      %p334 = scmp.eq.s32.totalorder %s36, 0
      %p335 = por %p333, %p334
      %p336 = scmp.ne.s32.totalorder %s324, %s325
      %p337 = scmp.eq.s32.totalorder %s37, 1
      %p338 = por %p336, %p337
      %p340 = scmp.ne.s32.totalorder %s325, %s339
      %p341 = scmp.eq.s32.totalorder %s37, 0
      %p342 = por %p340, %p341
      %s344 = sadd.s32 %s343, 1
      %p347 = scmp.eq.s32.totalorder %s31, 1
      %p348 = scmp.ne.s32.totalorder %s343, %s345
      %p349 = scmp.eq.s32.totalorder %s31, 0
      %p350 = por %p348, %p349
      %p351 = scmp.ne.s32.totalorder %s343, %s345
      %p352 = scmp.eq.s32.totalorder %s36, 1
      %p353 = por %p351, %p352
      %p354 = scmp.ne.s32.totalorder %s345, %s346
      %p355 = scmp.eq.s32.totalorder %s36, 0
      %p356 = por %p354, %p355
      %p357 = scmp.ne.s32.totalorder %s345, %s346
      %p358 = scmp.eq.s32.totalorder %s37, 1
      %p359 = por %p357, %p358
      %p361 = scmp.ne.s32.totalorder %s346, %s360
      %p362 = scmp.eq.s32.totalorder %s37, 0
      %p363 = por %p361, %p362
      %s365 = sadd.s32 %s364, 1
      %p368 = scmp.eq.s32.totalorder %s31, 1
      %p369 = scmp.ne.s32.totalorder %s364, %s366
      %p370 = scmp.eq.s32.totalorder %s31, 0
      %p371 = por %p369, %p370
      %p372 = scmp.ne.s32.totalorder %s364, %s366
      %p373 = scmp.eq.s32.totalorder %s36, 1
      %p374 = por %p372, %p373
      %p375 = scmp.ne.s32.totalorder %s366, %s367
      %p376 = scmp.eq.s32.totalorder %s36, 0
      %p377 = por %p375, %p376
      %p378 = scmp.ne.s32.totalorder %s366, %s367
      %p379 = scmp.eq.s32.totalorder %s37, 1
      %p380 = por %p378, %p379
      %p382 = scmp.ne.s32.totalorder %s367, %s381
      %p383 = scmp.eq.s32.totalorder %s37, 0
      %p384 = por %p382, %p383
      %s386 = sadd.s32 %s385, 1
      %p389 = scmp.eq.s32.totalorder %s31, 1
      %p390 = scmp.ne.s32.totalorder %s385, %s387
      %p391 = scmp.eq.s32.totalorder %s31, 0
      %p392 = por %p390, %p391
      %p393 = scmp.ne.s32.totalorder %s385, %s387
      %p394 = scmp.eq.s32.totalorder %s36, 1
      %p395 = por %p393, %p394
      %p396 = scmp.ne.s32.totalorder %s387, %s388
      %p397 = scmp.eq.s32.totalorder %s36, 0
      %p398 = por %p396, %p397
      %p399 = scmp.ne.s32.totalorder %s387, %s388
      %p400 = scmp.eq.s32.totalorder %s37, 1
      %p401 = por %p399, %p400
      %p403 = scmp.ne.s32.totalorder %s388, %s402
      %p404 = scmp.eq.s32.totalorder %s37, 0
      %p405 = por %p403, %p404
      %s407 = sadd.s32 %s406, 1
      %p410 = scmp.eq.s32.totalorder %s31, 1
      %p411 = scmp.ne.s32.totalorder %s406, %s408
      %p412 = scmp.eq.s32.totalorder %s31, 0
      %p413 = por %p411, %p412
      %p414 = scmp.ne.s32.totalorder %s406, %s408
      %p415 = scmp.eq.s32.totalorder %s36, 1
      %p416 = por %p414, %p415
      %p417 = scmp.ne.s32.totalorder %s408, %s409
      %p418 = scmp.eq.s32.totalorder %s36, 0
      %p419 = por %p417, %p418
      %p420 = scmp.ne.s32.totalorder %s408, %s409
      %p421 = scmp.eq.s32.totalorder %s37, 1
      %p422 = por %p420, %p421
      %p424 = scmp.ne.s32.totalorder %s409, %s423
      %p425 = scmp.eq.s32.totalorder %s37, 0
      %p426 = por %p424, %p425
      %s428 = sadd.s32 %s427, 1
      %p431 = scmp.eq.s32.totalorder %s31, 1
      %p432 = scmp.ne.s32.totalorder %s427, %s429
      %p433 = scmp.eq.s32.totalorder %s31, 0
      %p434 = por %p432, %p433
      %p435 = scmp.ne.s32.totalorder %s427, %s429
      %p436 = scmp.eq.s32.totalorder %s36, 1
      %p437 = por %p435, %p436
      %p438 = scmp.ne.s32.totalorder %s429, %s430
      %p439 = scmp.eq.s32.totalorder %s36, 0
      %p440 = por %p438, %p439
      %p441 = scmp.ne.s32.totalorder %s429, %s430
      %p442 = scmp.eq.s32.totalorder %s37, 1
      %p443 = por %p441, %p442
      %p445 = scmp.ne.s32.totalorder %s430, %s444
      %p446 = scmp.eq.s32.totalorder %s37, 0
      %p447 = por %p445, %p446
      %s448 = ssub.s32 %s31, %s38
      %p449 = scmp.eq.s32.totalorder %s448, 0
      %s451 = sadd.s32 %s450, 1
      %s452 = scalar_select %p449, %s450, %s451
      %p455 = pneg %p449
      %p456 = scmp.eq.s32.totalorder %s31, 1
      %p457 = por %p455, %p456
      %p458 = scmp.ne.s32.totalorder %s450, %s453
      %p459 = scmp.eq.s32.totalorder %s31, 0
      %p460 = por %p458, %p459
      %p461 = scmp.ne.s32.totalorder %s450, %s453
      %p462 = scmp.eq.s32.totalorder %s36, 1
      %p463 = por %p461, %p462
      %p464 = scmp.ne.s32.totalorder %s453, %s454
      %p465 = scmp.eq.s32.totalorder %s36, 0
      %p466 = por %p464, %p465
      %p467 = scmp.ne.s32.totalorder %s453, %s454
      %p468 = scmp.eq.s32.totalorder %s37, 1
      %p469 = por %p467, %p468
      %p471 = scmp.ne.s32.totalorder %s454, %s470
      %p472 = scmp.eq.s32.totalorder %s37, 0
      %p473 = por %p471, %p472
      %s474 = ssub.s32 %s31, %s38
      %p475 = scmp.eq.s32.totalorder %s474, 0
      %s477 = sadd.s32 %s476, 1
      %s478 = scalar_select %p475, %s476, %s477
      %p481 = pneg %p475
      %p482 = scmp.eq.s32.totalorder %s31, 1
      %p483 = por %p481, %p482
      %p484 = scmp.ne.s32.totalorder %s476, %s479
      %p485 = scmp.eq.s32.totalorder %s31, 0
      %p486 = por %p484, %p485
      %p487 = scmp.ne.s32.totalorder %s476, %s479
      %p488 = scmp.eq.s32.totalorder %s36, 1
      %p489 = por %p487, %p488
      %p490 = scmp.ne.s32.totalorder %s479, %s480
      %p491 = scmp.eq.s32.totalorder %s36, 0
      %p492 = por %p490, %p491
      %p493 = scmp.ne.s32.totalorder %s479, %s480
      %p494 = scmp.eq.s32.totalorder %s37, 1
      %p495 = por %p493, %p494
      %p497 = scmp.ne.s32.totalorder %s480, %s496
      %p498 = scmp.eq.s32.totalorder %s37, 0
      %p499 = por %p497, %p498
      %s500 = ssub.s32 %s31, %s38
      %p501 = scmp.eq.s32.totalorder %s500, 0
      %s503 = sadd.s32 %s502, 1
      %s504 = scalar_select %p501, %s502, %s503
      %p507 = pneg %p501
      %p508 = scmp.eq.s32.totalorder %s31, 1
      %p509 = por %p507, %p508
      %p510 = scmp.ne.s32.totalorder %s502, %s505
      %p511 = scmp.eq.s32.totalorder %s31, 0
      %p512 = por %p510, %p511
      %p513 = scmp.ne.s32.totalorder %s502, %s505
      %p514 = scmp.eq.s32.totalorder %s36, 1
      %p515 = por %p513, %p514
      %p516 = scmp.ne.s32.totalorder %s505, %s506
      %p517 = scmp.eq.s32.totalorder %s36, 0
      %p518 = por %p516, %p517
      %p519 = scmp.ne.s32.totalorder %s505, %s506
      %p520 = scmp.eq.s32.totalorder %s37, 1
      %p521 = por %p519, %p520
      %p523 = scmp.ne.s32.totalorder %s506, %s522
      %p524 = scmp.eq.s32.totalorder %s37, 0
      %p525 = por %p523, %p524
      %p526 = scmp.le.s32.totalorder 1, %s31
      %p527 = scmp.lt.s32.totalorder %s31, 3
      %p528 = pnand %p526, %p527
      %p529 = pneg %p528
      // Predicated region
      $region9: #{tpu_custom_call.1} parent=5 // pred_check
        _
      $region10: #{tpu_custom_call.1} parent=5 // pred_check_branch
        %531 = sbr.rel (%p528) target = $region12
      $region11: #{tpu_custom_call.1} parent=5 // pred_region
        %s532 = ssub.s32 %s31, 1
        // Predicated region
        $region13: #{tpu_custom_call.1} parent=11 // pred_check
          %p533 = pneg %p104
        $region14: #{tpu_custom_call.1} parent=11 // pred_check_branch
          %535 = sbr.rel (%p533) target = $region16
        $region15: #{tpu_custom_call.1} parent=11 // pred_region
          _
        $region16: #{tpu_custom_call.1} parent=11 // pred_fallthru
          _
        // Predicated region
        $region17: #{tpu_custom_call.1} parent=11 // pred_check
          %p536 = pneg %p125
        $region18: #{tpu_custom_call.1} parent=11 // pred_check_branch
          %538 = sbr.rel (%p536) target = $region20
        $region19: #{tpu_custom_call.1} parent=11 // pred_region
          _
        $region20: #{tpu_custom_call.1} parent=11 // pred_fallthru
          _
        // Predicated region
        $region21: #{tpu_custom_call.1} parent=11 // pred_check
          %p539 = pneg %p146
        $region22: #{tpu_custom_call.1} parent=11 // pred_check_branch
          %541 = sbr.rel (%p539) target = $region24
        $region23: #{tpu_custom_call.1} parent=11 // pred_region
          %s543 = ssub.s32 1024, 1024
          %544 = vsyncadd [#allocation3], %s543
          %s545 = sshll.u32 [#allocation2], 4
          %s546 = int_to_ptr.vmem [resolvable:$true] %s545
          %551 = dma.hbm_to_vmem [thread:$0]  %s4, 1024, %s546, [#allocation3], 64, 64, 4
        $region24: #{tpu_custom_call.1} parent=11 // pred_fallthru
          _
        // Predicated region
        $region25: #{tpu_custom_call.1} parent=11 // pred_check
          %p552 = pneg %p167
        $region26: #{tpu_custom_call.1} parent=11 // pred_check_branch
          %554 = sbr.rel (%p552) target = $region28
        $region27: #{tpu_custom_call.1} parent=11 // pred_region
          _
        $region28: #{tpu_custom_call.1} parent=11 // pred_fallthru
          _
        // Predicated region
        $region29: #{tpu_custom_call.1} parent=11 // pred_check
          %p555 = pneg %p188
        $region30: #{tpu_custom_call.1} parent=11 // pred_check_branch
          %557 = sbr.rel (%p555) target = $region32
        $region31: #{tpu_custom_call.1} parent=11 // pred_region
          _
        $region32: #{tpu_custom_call.1} parent=11 // pred_fallthru
          _
        // Predicated region
        $region33: #{tpu_custom_call.1} parent=11 // pred_check
          %p558 = pneg %p209
        $region34: #{tpu_custom_call.1} parent=11 // pred_check_branch
          %560 = sbr.rel (%p558) target = $region36
        $region35: #{tpu_custom_call.1} parent=11 // pred_region
          _
        $region36: #{tpu_custom_call.1} parent=11 // pred_fallthru
          _
        // Predicated region
        $region37: #{tpu_custom_call.1} parent=11 // pred_check
          %p561 = pneg %p230
        $region38: #{tpu_custom_call.1} parent=11 // pred_check_branch
          %563 = sbr.rel (%p561) target = $region40
        $region39: #{tpu_custom_call.1} parent=11 // pred_region
          %s565 = ssub.s32 1024, 1024
          %566 = vsyncadd [#allocation5], %s565
          %s567 = sshll.u32 [#allocation4], 4
          %s568 = int_to_ptr.vmem [resolvable:$true] %s567
          %573 = dma.hbm_to_vmem [thread:$0]  %s8, 1024, %s568, [#allocation5], 64, 64, 4
        $region40: #{tpu_custom_call.1} parent=11 // pred_fallthru
          _
        // Predicated region
        $region41: #{tpu_custom_call.1} parent=11 // pred_check
          %p574 = pneg %p251
        $region42: #{tpu_custom_call.1} parent=11 // pred_check_branch
          %576 = sbr.rel (%p574) target = $region44
        $region43: #{tpu_custom_call.1} parent=11 // pred_region
          _
        $region44: #{tpu_custom_call.1} parent=11 // pred_fallthru
          _
        // Predicated region
        $region45: #{tpu_custom_call.1} parent=11 // pred_check
          %p577 = pneg %p272
        $region46: #{tpu_custom_call.1} parent=11 // pred_check_branch
          %579 = sbr.rel (%p577) target = $region48
        $region47: #{tpu_custom_call.1} parent=11 // pred_region
          %s581 = ssub.s32 4096, 4096
          %582 = vsyncadd [#allocation5], %s581
          %s583 = sshll.u32 [#allocation6], 4
          %s584 = int_to_ptr.vmem [resolvable:$true] %s583
          %589 = dma.hbm_to_vmem [thread:$0]  %s10, 4096, %s584, [#allocation5], 256, 256, 16
        $region48: #{tpu_custom_call.1} parent=11 // pred_fallthru
          _
        // Predicated region
        $region49: #{tpu_custom_call.1} parent=11 // pred_check
          %p590 = pneg %p293
        $region50: #{tpu_custom_call.1} parent=11 // pred_check_branch
          %592 = sbr.rel (%p590) target = $region52
        $region51: #{tpu_custom_call.1} parent=11 // pred_region
          _
        $region52: #{tpu_custom_call.1} parent=11 // pred_fallthru
          _
        // Predicated region
        $region53: #{tpu_custom_call.1} parent=11 // pred_check
          %p593 = pneg %p314
        $region54: #{tpu_custom_call.1} parent=11 // pred_check_branch
          %595 = sbr.rel (%p593) target = $region56
        $region55: #{tpu_custom_call.1} parent=11 // pred_region
          %s597 = ssub.s32 4096, 4096
          %598 = vsyncadd [#allocation8], %s597
          %s599 = sshll.u32 [#allocation7], 4
          %s600 = int_to_ptr.vmem [resolvable:$true] %s599
          %605 = dma.hbm_to_vmem [thread:$0]  %s12, 4096, %s600, [#allocation8], 64, 64, 4
        $region56: #{tpu_custom_call.1} parent=11 // pred_fallthru
          _
        // Predicated region
        $region57: #{tpu_custom_call.1} parent=11 // pred_check
          %p606 = pneg %p335
        $region58: #{tpu_custom_call.1} parent=11 // pred_check_branch
          %608 = sbr.rel (%p606) target = $region60
        $region59: #{tpu_custom_call.1} parent=11 // pred_region
          _
        $region60: #{tpu_custom_call.1} parent=11 // pred_fallthru
          _
        // Predicated region
        $region61: #{tpu_custom_call.1} parent=11 // pred_check
          %p609 = pneg %p356
        $region62: #{tpu_custom_call.1} parent=11 // pred_check_branch
          %611 = sbr.rel (%p609) target = $region64
        $region63: #{tpu_custom_call.1} parent=11 // pred_region
          _
        $region64: #{tpu_custom_call.1} parent=11 // pred_fallthru
          _
        // Predicated region
        $region65: #{tpu_custom_call.1} parent=11 // pred_check
          %p612 = pneg %p377
        $region66: #{tpu_custom_call.1} parent=11 // pred_check_branch
          %614 = sbr.rel (%p612) target = $region68
        $region67: #{tpu_custom_call.1} parent=11 // pred_region
          _
        $region68: #{tpu_custom_call.1} parent=11 // pred_fallthru
          _
        // Predicated region
        $region69: #{tpu_custom_call.1} parent=11 // pred_check
          %p615 = pneg %p398
        $region70: #{tpu_custom_call.1} parent=11 // pred_check_branch
          %617 = sbr.rel (%p615) target = $region72
        $region71: #{tpu_custom_call.1} parent=11 // pred_region
          _
        $region72: #{tpu_custom_call.1} parent=11 // pred_fallthru
          _
        // Predicated region
        $region73: #{tpu_custom_call.1} parent=11 // pred_check
          %p618 = pneg %p419
        $region74: #{tpu_custom_call.1} parent=11 // pred_check_branch
          %620 = sbr.rel (%p618) target = $region76
        $region75: #{tpu_custom_call.1} parent=11 // pred_region
          _
        $region76: #{tpu_custom_call.1} parent=11 // pred_fallthru
          _
        // Predicated region
        $region77: #{tpu_custom_call.1} parent=11 // pred_check
          %p621 = pneg %p440
        $region78: #{tpu_custom_call.1} parent=11 // pred_check_branch
          %623 = sbr.rel (%p621) target = $region80
        $region79: #{tpu_custom_call.1} parent=11 // pred_region
          %s625 = ssub.s32 8192, 8192
          %626 = vsyncadd [#allocation8], %s625
          %s627 = sshll.u32 [#allocation9], 4
          %s628 = int_to_ptr.vmem [resolvable:$true] %s627
          %633 = dma.hbm_to_vmem [thread:$0]  %s18, 8192, %s628, [#allocation8], 512, 512, 32
        $region80: #{tpu_custom_call.1} parent=11 // pred_fallthru
          _
      $region12: #{tpu_custom_call.1} parent=5 // pred_fallthru
        _
      %p634 = scmp.lt.s32.totalorder %s31, 2
      // Predicated region
      $region81: #{tpu_custom_call.1} parent=5 // pred_check
        %p635 = pneg %p634
      $region82: #{tpu_custom_call.1} parent=5 // pred_check_branch
        %637 = sbr.rel (%p635) target = $region84
      $region83: #{tpu_custom_call.1} parent=5 // pred_region
        // Predicated region
        $region85: #{tpu_custom_call.1} parent=83 // pred_check
          %p638 = pneg %p51
        $region86: #{tpu_custom_call.1} parent=83 // pred_check_branch
          %640 = sbr.rel (%p638) target = $region88
        $region87: #{tpu_custom_call.1} parent=83 // pred_region
          %p641 = scmp.lt.s32.totalorder %s31, 1
          %s642 = scalar_select %p641, %s31, 1
          %s643 = smul.addr %s642, 4
          %s644 = smul.addr %s643, 8
          %s645 = scalar_lea.vmem %s0, %s644
        $region88: #{tpu_custom_call.1} parent=83 // pred_fallthru
          _
        // Predicated region
        $region89: #{tpu_custom_call.1} parent=83 // pred_check
          %p646 = pneg %p77
        $region90: #{tpu_custom_call.1} parent=83 // pred_check_branch
          %648 = sbr.rel (%p646) target = $region92
        $region91: #{tpu_custom_call.1} parent=83 // pred_region
          %p649 = scmp.lt.s32.totalorder %s31, 1
          %s650 = scalar_select %p649, %s31, 1
          %s651 = scalar_lea.vmem %s1, %s650
        $region92: #{tpu_custom_call.1} parent=83 // pred_fallthru
          _
        // Predicated region
        $region93: #{tpu_custom_call.1} parent=83 // pred_check
          %p652 = pneg %p460
        $region94: #{tpu_custom_call.1} parent=83 // pred_check_branch
          %654 = sbr.rel (%p652) target = $region96
        $region95: #{tpu_custom_call.1} parent=83 // pred_region
          %p655 = scmp.lt.s32.totalorder %s31, 1
          %s656 = scalar_select %p655, %s31, 1
          %s657 = smul.addr %s656, 2
          %s658 = smul.addr %s657, 8
          %s659 = scalar_lea.vmem %s19, %s658
        $region96: #{tpu_custom_call.1} parent=83 // pred_fallthru
          _
      $region84: #{tpu_custom_call.1} parent=5 // pred_fallthru
        _
      %p660 = scmp.le.s32.totalorder 1, %s31
      %p661 = scmp.lt.s32.totalorder %s31, 3
      %p662 = pnand %p660, %p661
      %p663 = pneg %p662
      // Predicated region
      $region97: #{tpu_custom_call.1} parent=5 // pred_check
        _
      $region98: #{tpu_custom_call.1} parent=5 // pred_check_branch
        %665 = sbr.rel (%p662) target = $region100
      $region99: #{tpu_custom_call.1} parent=5 // pred_region
        %s666 = ssub.s32 %s31, 1
        // Predicated region
        $region101: #{tpu_custom_call.1} parent=99 // pred_check
          %p667 = pneg %p146
        $region102: #{tpu_custom_call.1} parent=99 // pred_check_branch
          %669 = sbr.rel (%p667) target = $region104
        $region103: #{tpu_custom_call.1} parent=99 // pred_region
          %670 = dma.done [#allocation3], 1024
        $region104: #{tpu_custom_call.1} parent=99 // pred_fallthru
          _
        // Predicated region
        $region105: #{tpu_custom_call.1} parent=99 // pred_check
          %p671 = pneg %p230
        $region106: #{tpu_custom_call.1} parent=99 // pred_check_branch
          %673 = sbr.rel (%p671) target = $region108
        $region107: #{tpu_custom_call.1} parent=99 // pred_region
          %674 = dma.done [#allocation5], 1024
        $region108: #{tpu_custom_call.1} parent=99 // pred_fallthru
          _
        // Predicated region
        $region109: #{tpu_custom_call.1} parent=99 // pred_check
          %p675 = pneg %p272
        $region110: #{tpu_custom_call.1} parent=99 // pred_check_branch
          %677 = sbr.rel (%p675) target = $region112
        $region111: #{tpu_custom_call.1} parent=99 // pred_region
          %678 = dma.done [#allocation5], 4096
        $region112: #{tpu_custom_call.1} parent=99 // pred_fallthru
          _
        // Predicated region
        $region113: #{tpu_custom_call.1} parent=99 // pred_check
          %p679 = pneg %p314
        $region114: #{tpu_custom_call.1} parent=99 // pred_check_branch
          %681 = sbr.rel (%p679) target = $region116
        $region115: #{tpu_custom_call.1} parent=99 // pred_region
          %682 = dma.done [#allocation8], 4096
        $region116: #{tpu_custom_call.1} parent=99 // pred_fallthru
          _
        // Predicated region
        $region117: #{tpu_custom_call.1} parent=99 // pred_check
          %p683 = pneg %p440
        $region118: #{tpu_custom_call.1} parent=99 // pred_check_branch
          %685 = sbr.rel (%p683) target = $region120
        $region119: #{tpu_custom_call.1} parent=99 // pred_region
          %686 = dma.done [#allocation8], 8192
        $region120: #{tpu_custom_call.1} parent=99 // pred_fallthru
          _
        %p687 = scmp.lt.s32.totalorder %s36, 1
        %s688 = scalar_select %p687, %s36, 1
        %s689 = smul.addr %s688, 4
        %s690 = smul.addr %s689, 8
        %s691 = scalar_lea.vmem %s0, %s690
        %p692 = pneg %p57
        %p693 = pneg %p54
        %p694 = scmp.lt.s32.totalorder %s36, 1
        %s695 = scalar_select %p694, %s36, 1
        %s696 = scalar_lea.vmem %s1, %s695
        %p697 = pneg %p83
        %p698 = pneg %p80
        %p699 = pneg %p104
        %p700 = pneg %p101
        %p701 = pneg %p125
        %p702 = pneg %p122
        %p703 = pneg %p146
        %p704 = pneg %p143
        %p705 = pneg %p167
        %p706 = pneg %p164
        %p707 = pneg %p188
        %p708 = pneg %p185
        %p709 = pneg %p209
        %p710 = pneg %p206
        %p711 = pneg %p230
        %p712 = pneg %p227
        %p713 = pneg %p251
        %p714 = pneg %p248
        %p715 = pneg %p272
        %p716 = pneg %p269
        %p717 = pneg %p293
        %p718 = pneg %p290
        %p719 = pneg %p314
        %p720 = pneg %p311
        %p721 = pneg %p335
        %p722 = pneg %p332
        %p723 = pneg %p356
        %p724 = pneg %p353
        %p725 = pneg %p377
        %p726 = pneg %p374
        %p727 = pneg %p398
        %p728 = pneg %p395
        %p729 = pneg %p419
        %p730 = pneg %p416
        %p731 = pneg %p440
        %p732 = pneg %p437
        %p733 = scmp.lt.s32.totalorder %s36, 1
        %s734 = scalar_select %p733, %s36, 1
        %s735 = smul.addr %s734, 2
        %s736 = smul.addr %s735, 8
        %s737 = scalar_lea.vmem %s19, %s736
        %p738 = pneg %p466
        %p739 = pneg %p463
        %p740 = pneg %p492
        %p741 = pneg %p489
        %p742 = scmp.lt.s32.totalorder %s36, 1
        %s743 = scalar_select %p742, %s36, 1
        %s744 = scalar_lea.vmem %s20, %s743
        %p745 = pneg %p518
        %p746 = pneg %p515
        %p747 = scmp.lt.s32.totalorder %s36, 1
        %s748 = scalar_select %p747, %s36, 1
        %s749 = scalar_lea.vmem %s21, %s748
        %p750 = scmp.lt.s32.totalorder %s36, 1
        %s751 = scalar_select %p750, %s36, 1
        %s752 = smul.addr %s751, 4
        %s753 = smul.addr %s752, 8
        %s754 = scalar_lea.vmem %s0, %s753
        %p755 = scmp.lt.s32.totalorder %s36, 1
        %s756 = scalar_select %p755, %s36, 1
        %s757 = scalar_lea.vmem %s1, %s756
        %p758 = scmp.lt.s32.totalorder %s36, 1
        %s759 = scalar_select %p758, %s36, 1
        %s760 = smul.addr %s759, 2
        %s761 = smul.addr %s760, 8
        %s762 = scalar_lea.vmem %s19, %s761
        %p763 = scmp.lt.s32.totalorder %s36, 1
        %s764 = scalar_select %p763, %s36, 1
        %s765 = scalar_lea.vmem %s20, %s764
        %p766 = scmp.lt.s32.totalorder %s36, 1
        %s767 = scalar_select %p766, %s36, 1
        %s768 = scalar_lea.vmem %s21, %s767
        %v770 = vld [vmem:[%s754] sm:$0xff]
        %v771 = vld [vmem:[%s754 + $0x8] sm:$0xff]
        %v772 = vld [vmem:[%s754 + $0x10] sm:$0xff]
        %v773 = vld [vmem:[%s754 + $0x18] sm:$0x3]
        %v774 = vld [vmem:[%s757] sm:$0x1]
        %v775 = vld [vmem:[%s2] sm:$0xf]
        %v776 = vld [vmem:[%s2 + $0x4] sm:$0xf]
        %v777 = vld [vmem:[%s2 + $0x8] sm:$0xf]
        %v778 = vld [vmem:[%s2 + $0xc] sm:$0xf]
        %v779 = vld [vmem:[%s2 + $0x10] sm:$0xf]
        %v780 = vld [vmem:[%s2 + $0x14] sm:$0xf]
        %v781 = vld [vmem:[%s2 + $0x18] sm:$0xf]
        %v782 = vld [vmem:[%s2 + $0x1c] sm:$0xf]
        %v783 = vld [vmem:[%s2 + $0x20] sm:$0xf]
        %v784 = vld [vmem:[%s2 + $0x24] sm:$0xf]
        %v785 = vld [vmem:[%s2 + $0x28] sm:$0xf]
        %v786 = vld [vmem:[%s2 + $0x2c] sm:$0xf]
        %v787 = vld [vmem:[%s2 + $0x30] sm:$0xf]
        %v788 = vld [vmem:[%s2 + $0x34] sm:$0xf]
        %v789 = vld [vmem:[%s2 + $0x38] sm:$0xf]
        %v790 = vld [vmem:[%s2 + $0x3c] sm:$0xf]
        %v791 = vld [vmem:[%s3] sm:$0xf]
        %v792 = vld [vmem:[%s3 + $0x4] sm:$0xf]
        %v793 = vld [vmem:[%s3 + $0x8] sm:$0xf]
        %v794 = vld [vmem:[%s3 + $0xc] sm:$0xf]
        %v795 = vld [vmem:[%s3 + $0x10] sm:$0xf]
        %v796 = vld [vmem:[%s3 + $0x14] sm:$0xf]
        %v797 = vld [vmem:[%s3 + $0x18] sm:$0xf]
        %v798 = vld [vmem:[%s3 + $0x1c] sm:$0xf]
        %v799 = vld [vmem:[%s3 + $0x20] sm:$0xf]
        %v800 = vld [vmem:[%s3 + $0x24] sm:$0xf]
        %v801 = vld [vmem:[%s3 + $0x28] sm:$0xf]
        %v802 = vld [vmem:[%s3 + $0x2c] sm:$0xf]
        %v803 = vld [vmem:[%s3 + $0x30] sm:$0xf]
        %v804 = vld [vmem:[%s3 + $0x34] sm:$0xf]
        %v805 = vld [vmem:[%s3 + $0x38] sm:$0xf]
        %v806 = vld [vmem:[%s3 + $0x3c] sm:$0xf]
        %v807 = vld [vmem:[#allocation2] sm:$0xf]
        %v808 = vld [vmem:[#allocation2 + $0x4] sm:$0xf]
        %v809 = vld [vmem:[#allocation2 + $0x8] sm:$0xf]
        %v810 = vld [vmem:[#allocation2 + $0xc] sm:$0xf]
        %v811 = vld [vmem:[#allocation2 + $0x10] sm:$0xf]
        %v812 = vld [vmem:[#allocation2 + $0x14] sm:$0xf]
        %v813 = vld [vmem:[#allocation2 + $0x18] sm:$0xf]
        %v814 = vld [vmem:[#allocation2 + $0x1c] sm:$0xf]
        %v815 = vld [vmem:[#allocation2 + $0x20] sm:$0xf]
        %v816 = vld [vmem:[#allocation2 + $0x24] sm:$0xf]
        %v817 = vld [vmem:[#allocation2 + $0x28] sm:$0xf]
        %v818 = vld [vmem:[#allocation2 + $0x2c] sm:$0xf]
        %v819 = vld [vmem:[#allocation2 + $0x30] sm:$0xf]
        %v820 = vld [vmem:[#allocation2 + $0x34] sm:$0xf]
        %v821 = vld [vmem:[#allocation2 + $0x38] sm:$0xf]
        %v822 = vld [vmem:[#allocation2 + $0x3c] sm:$0xf]
        %v823 = vld [vmem:[%s5] sm:$0x1]
        %v824 = vld [vmem:[%s6] sm:$0x1]
        %v825 = vld [vmem:[%s7] sm:$0x1]
        %v826 = vld [vmem:[#allocation4] sm:$0xf]
        %v827 = vld [vmem:[#allocation4 + $0x4] sm:$0xf]
        %v828 = vld [vmem:[#allocation4 + $0x8] sm:$0xf]
        %v829 = vld [vmem:[#allocation4 + $0xc] sm:$0xf]
        %v830 = vld [vmem:[#allocation4 + $0x10] sm:$0xf]
        %v831 = vld [vmem:[#allocation4 + $0x14] sm:$0xf]
        %v832 = vld [vmem:[#allocation4 + $0x18] sm:$0xf]
        %v833 = vld [vmem:[#allocation4 + $0x1c] sm:$0xf]
        %v834 = vld [vmem:[#allocation4 + $0x20] sm:$0xf]
        %v835 = vld [vmem:[#allocation4 + $0x24] sm:$0xf]
        %v836 = vld [vmem:[#allocation4 + $0x28] sm:$0xf]
        %v837 = vld [vmem:[#allocation4 + $0x2c] sm:$0xf]
        %v838 = vld [vmem:[#allocation4 + $0x30] sm:$0xf]
        %v839 = vld [vmem:[#allocation4 + $0x34] sm:$0xf]
        %v840 = vld [vmem:[#allocation4 + $0x38] sm:$0xf]
        %v841 = vld [vmem:[#allocation4 + $0x3c] sm:$0xf]
        %v842 = vld [vmem:[%s9] sm:$0x1]
        %v843 = vld [vmem:[#allocation6] sm:$0xff]
        %v844 = vld [vmem:[#allocation6 + $0x8] sm:$0xff]
        %v845 = vld [vmem:[#allocation6 + $0x10] sm:$0xff]
        %v846 = vld [vmem:[#allocation6 + $0x18] sm:$0xff]
        %v847 = vld [vmem:[#allocation6 + $0x20] sm:$0xff]
        %v848 = vld [vmem:[#allocation6 + $0x28] sm:$0xff]
        %v849 = vld [vmem:[#allocation6 + $0x30] sm:$0xff]
        %v850 = vld [vmem:[#allocation6 + $0x38] sm:$0xff]
        %v851 = vld [vmem:[#allocation6 + $0x40] sm:$0xff]
        %v852 = vld [vmem:[#allocation6 + $0x48] sm:$0xff]
        %v853 = vld [vmem:[#allocation6 + $0x50] sm:$0xff]
        %v854 = vld [vmem:[#allocation6 + $0x58] sm:$0xff]
        %v855 = vld [vmem:[#allocation6 + $0x60] sm:$0xff]
        %v856 = vld [vmem:[#allocation6 + $0x68] sm:$0xff]
        %v857 = vld [vmem:[#allocation6 + $0x70] sm:$0xff]
        %v858 = vld [vmem:[#allocation6 + $0x78] sm:$0xff]
        %v859 = vld [vmem:[#allocation6 + $0x80] sm:$0xff]
        %v860 = vld [vmem:[#allocation6 + $0x88] sm:$0xff]
        %v861 = vld [vmem:[#allocation6 + $0x90] sm:$0xff]
        %v862 = vld [vmem:[#allocation6 + $0x98] sm:$0xff]
        %v863 = vld [vmem:[#allocation6 + $0xa0] sm:$0xff]
        %v864 = vld [vmem:[#allocation6 + $0xa8] sm:$0xff]
        %v865 = vld [vmem:[#allocation6 + $0xb0] sm:$0xff]
        %v866 = vld [vmem:[#allocation6 + $0xb8] sm:$0xff]
        %v867 = vld [vmem:[#allocation6 + $0xc0] sm:$0xff]
        %v868 = vld [vmem:[#allocation6 + $0xc8] sm:$0xff]
        %v869 = vld [vmem:[#allocation6 + $0xd0] sm:$0xff]
        %v870 = vld [vmem:[#allocation6 + $0xd8] sm:$0xff]
        %v871 = vld [vmem:[#allocation6 + $0xe0] sm:$0xff]
        %v872 = vld [vmem:[#allocation6 + $0xe8] sm:$0xff]
        %v873 = vld [vmem:[#allocation6 + $0xf0] sm:$0xff]
        %v874 = vld [vmem:[#allocation6 + $0xf8] sm:$0xff]
        %v875 = vld [vmem:[%s11] sm:$0xf]
        %v876 = vld [vmem:[#allocation7] sm:$0xf]
        %v877 = vld [vmem:[#allocation7 + $0x4] sm:$0xf]
        %v878 = vld [vmem:[#allocation7 + $0x8] sm:$0xf]
        %v879 = vld [vmem:[#allocation7 + $0xc] sm:$0xf]
        %v880 = vld [vmem:[#allocation7 + $0x10] sm:$0xf]
        %v881 = vld [vmem:[#allocation7 + $0x14] sm:$0xf]
        %v882 = vld [vmem:[#allocation7 + $0x18] sm:$0xf]
        %v883 = vld [vmem:[#allocation7 + $0x1c] sm:$0xf]
        %v884 = vld [vmem:[#allocation7 + $0x20] sm:$0xf]
        %v885 = vld [vmem:[#allocation7 + $0x24] sm:$0xf]
        %v886 = vld [vmem:[#allocation7 + $0x28] sm:$0xf]
        %v887 = vld [vmem:[#allocation7 + $0x2c] sm:$0xf]
        %v888 = vld [vmem:[#allocation7 + $0x30] sm:$0xf]
        %v889 = vld [vmem:[#allocation7 + $0x34] sm:$0xf]
        %v890 = vld [vmem:[#allocation7 + $0x38] sm:$0xf]
        %v891 = vld [vmem:[#allocation7 + $0x3c] sm:$0xf]
        %v892 = vld [vmem:[#allocation7 + $0x40] sm:$0xf]
        %v893 = vld [vmem:[#allocation7 + $0x44] sm:$0xf]
        %v894 = vld [vmem:[#allocation7 + $0x48] sm:$0xf]
        %v895 = vld [vmem:[#allocation7 + $0x4c] sm:$0xf]
        %v896 = vld [vmem:[#allocation7 + $0x50] sm:$0xf]
        %v897 = vld [vmem:[#allocation7 + $0x54] sm:$0xf]
        %v898 = vld [vmem:[#allocation7 + $0x58] sm:$0xf]
        %v899 = vld [vmem:[#allocation7 + $0x5c] sm:$0xf]
        %v900 = vld [vmem:[#allocation7 + $0x60] sm:$0xf]
        %v901 = vld [vmem:[#allocation7 + $0x64] sm:$0xf]
        %v902 = vld [vmem:[#allocation7 + $0x68] sm:$0xf]
        %v903 = vld [vmem:[#allocation7 + $0x6c] sm:$0xf]
        %v904 = vld [vmem:[#allocation7 + $0x70] sm:$0xf]
        %v905 = vld [vmem:[#allocation7 + $0x74] sm:$0xf]
        %v906 = vld [vmem:[#allocation7 + $0x78] sm:$0xf]
        %v907 = vld [vmem:[#allocation7 + $0x7c] sm:$0xf]
        %v908 = vld [vmem:[#allocation7 + $0x80] sm:$0xf]
        %v909 = vld [vmem:[#allocation7 + $0x84] sm:$0xf]
        %v910 = vld [vmem:[#allocation7 + $0x88] sm:$0xf]
        %v911 = vld [vmem:[#allocation7 + $0x8c] sm:$0xf]
        %v912 = vld [vmem:[#allocation7 + $0x90] sm:$0xf]
        %v913 = vld [vmem:[#allocation7 + $0x94] sm:$0xf]
        %v914 = vld [vmem:[#allocation7 + $0x98] sm:$0xf]
        %v915 = vld [vmem:[#allocation7 + $0x9c] sm:$0xf]
        %v916 = vld [vmem:[#allocation7 + $0xa0] sm:$0xf]
        %v917 = vld [vmem:[#allocation7 + $0xa4] sm:$0xf]
        %v918 = vld [vmem:[#allocation7 + $0xa8] sm:$0xf]
        %v919 = vld [vmem:[#allocation7 + $0xac] sm:$0xf]
        %v920 = vld [vmem:[#allocation7 + $0xb0] sm:$0xf]
        %v921 = vld [vmem:[#allocation7 + $0xb4] sm:$0xf]
        %v922 = vld [vmem:[#allocation7 + $0xb8] sm:$0xf]
        %v923 = vld [vmem:[#allocation7 + $0xbc] sm:$0xf]
        %v924 = vld [vmem:[#allocation7 + $0xc0] sm:$0xf]
        %v925 = vld [vmem:[#allocation7 + $0xc4] sm:$0xf]
        %v926 = vld [vmem:[#allocation7 + $0xc8] sm:$0xf]
        %v927 = vld [vmem:[#allocation7 + $0xcc] sm:$0xf]
        %v928 = vld [vmem:[#allocation7 + $0xd0] sm:$0xf]
        %v929 = vld [vmem:[#allocation7 + $0xd4] sm:$0xf]
        %v930 = vld [vmem:[#allocation7 + $0xd8] sm:$0xf]
        %v931 = vld [vmem:[#allocation7 + $0xdc] sm:$0xf]
        %v932 = vld [vmem:[#allocation7 + $0xe0] sm:$0xf]
        %v933 = vld [vmem:[#allocation7 + $0xe4] sm:$0xf]
        %v934 = vld [vmem:[#allocation7 + $0xe8] sm:$0xf]
        %v935 = vld [vmem:[#allocation7 + $0xec] sm:$0xf]
        %v936 = vld [vmem:[#allocation7 + $0xf0] sm:$0xf]
        %v937 = vld [vmem:[#allocation7 + $0xf4] sm:$0xf]
        %v938 = vld [vmem:[#allocation7 + $0xf8] sm:$0xf]
        %v939 = vld [vmem:[#allocation7 + $0xfc] sm:$0xf]
        %v940 = vld [vmem:[%s13] sm:$0x1]
        %v941 = vld [vmem:[%s14] sm:$0x1]
        %v942 = vld [vmem:[%s15] sm:$0x1]
        %v943 = vld [vmem:[%s16] sm:$0x1]
        %v944 = vld [vmem:[%s17] sm:$0x1]
        %v945 = vpack.c.bf16 %v771, %v770
        %v946 = vpack.c.bf16 %v773, %v772
        %v948 = vlaneseq
        %v949 = vshrl.u32 %v948, 7
        %v950 = vsub.s32 0, %v949
        %v951 = vrot.slane %v823, %v950
        %v969 = vunpack.c.l.b16 %v775
        %v970 = vunpack.c.l.b16 %v776
        %v971 = vunpack.c.l.b16 %v777
        %v972 = vunpack.c.l.b16 %v778
        %v973 = vunpack.c.l.b16 %v779
        %v974 = vunpack.c.l.b16 %v780
        %v975 = vunpack.c.l.b16 %v781
        %v976 = vunpack.c.l.b16 %v782
        %v977 = vunpack.c.l.b16 %v783
        %v978 = vunpack.c.l.b16 %v784
        %v979 = vunpack.c.l.b16 %v785
        %v980 = vunpack.c.l.b16 %v786
        %v981 = vunpack.c.l.b16 %v787
        %v982 = vunpack.c.l.b16 %v788
        %v983 = vunpack.c.l.b16 %v789
        %v984 = vunpack.c.l.b16 %v790
        %v985 = vpack.c.b16 %v970, %v969
        %v986 = vpack.c.b16 %v972, %v971
        %v987 = vpack.c.b16 %v974, %v973
        %v988 = vpack.c.b16 %v976, %v975
        %v989 = vpack.c.b16 %v978, %v977
        %v990 = vpack.c.b16 %v980, %v979
        %v991 = vpack.c.b16 %v982, %v981
        %v992 = vpack.c.b16 %v984, %v983
        %1001 = vmatprep.subr.bf16.mxu0 0
        %1002 = vmatpush1.bf16.msra.mxu0 %v992
        %1003 = vmatprep.subr.bf16.mxu0 0
        %1004 = vmatpush1.bf16.msra.mxu0 %v991
        %1005 = vmatprep.subr.bf16.mxu0 0
        %1006 = vmatpush1.bf16.msra.mxu0 %v990
        %1007 = vmatprep.subr.bf16.mxu0 0
        %1008 = vmatpush1.bf16.msra.mxu0 %v989
        %1009 = vmatprep.subr.bf16.mxu0 0
        %1010 = vmatpush1.bf16.msra.mxu0 %v988
        %1011 = vmatprep.subr.bf16.mxu0 0
        %1012 = vmatpush1.bf16.msra.mxu0 %v987
        %1013 = vmatprep.subr.bf16.mxu0 0
        %1014 = vmatpush1.bf16.msra.mxu0 %v986
        %1015 = vmatprep.subr.bf16.mxu0 0
        %1016 = vmatpush1.bf16.msra.mxu0 %v985
        %1017 = vmatprep.subr.bf16.mxu0 0
        %1018 = vmatpush2.bf16.msra.mxu0 0
        %1019 = vmatprep.subr.bf16.mxu0 0
        %1020 = vmatpush2.bf16.msra.mxu0 0
        %1021 = vmatprep.subr.bf16.mxu0 0
        %1022 = vmatpush2.bf16.msra.mxu0 0
        %1023 = vmatprep.subr.bf16.mxu0 0
        %1024 = vmatpush2.bf16.msra.mxu0 0
        %1025 = vmatprep.subr.bf16.mxu0 0
        %1026 = vmatpush2.bf16.msra.mxu0 0
        %1027 = vmatprep.subr.bf16.mxu0 0
        %1028 = vmatpush2.bf16.msra.mxu0 0
        %1029 = vmatprep.subr.bf16.mxu0 0
        %1030 = vmatpush2.bf16.msra.mxu0 0
        %1031 = vmatprep.subr.bf16.mxu0 0
        %1032 = vmatpush2.bf16.msra.mxu0 0
        %1033 = vmatprep.mubr.bf16.mxu0 0
        %1034 = vmatmul.mubr.bf16.gmra.mxu0 %v945
        %v1035 = vpop.f32.mrf.mxu0
        %v1036 = vadd.f32 %v951, %v1035
        %v1037 = vpop.f32.mrf.mxu0
        %v1038 = vpop.f32.mrf.mxu0
        %v1039 = vadd.f32 %v951, %v1038
        %v1040 = vpop.f32.mrf.mxu0
        %1041 = vmatprep.mubr.bf16.mxu0 0
        %1042 = vmatmul.mubr.bf16.gmra.mxu0 %v946
        %v1043 = vpop.f32.mrf.mxu0
        %v1044 = vadd.f32 %v951, %v1043
        %v1045 = vpop.f32.mrf.mxu0
        %v1046 = vpop.f32.mrf.mxu0
        %v1047 = vadd.f32 %v951, %v1046
        %v1048 = vpop.f32.mrf.mxu0
        %1049 = vdwg.mxu0
        %v1051 = vlaneseq
        %v1052 = vshrl.u32 %v1051, 7
        %v1053 = vsub.s32 0, %v1052
        %v1054 = vrot.slane %v824, %v1053
        %v1072 = vunpack.c.l.b16 %v791
        %v1073 = vunpack.c.l.b16 %v792
        %v1074 = vunpack.c.l.b16 %v793
        %v1075 = vunpack.c.l.b16 %v794
        %v1076 = vunpack.c.l.b16 %v795
        %v1077 = vunpack.c.l.b16 %v796
        %v1078 = vunpack.c.l.b16 %v797
        %v1079 = vunpack.c.l.b16 %v798
        %v1080 = vunpack.c.l.b16 %v799
        %v1081 = vunpack.c.l.b16 %v800
        %v1082 = vunpack.c.l.b16 %v801
        %v1083 = vunpack.c.l.b16 %v802
        %v1084 = vunpack.c.l.b16 %v803
        %v1085 = vunpack.c.l.b16 %v804
        %v1086 = vunpack.c.l.b16 %v805
        %v1087 = vunpack.c.l.b16 %v806
        %v1088 = vpack.c.b16 %v1073, %v1072
        %v1089 = vpack.c.b16 %v1075, %v1074
        %v1090 = vpack.c.b16 %v1077, %v1076
        %v1091 = vpack.c.b16 %v1079, %v1078
        %v1092 = vpack.c.b16 %v1081, %v1080
        %v1093 = vpack.c.b16 %v1083, %v1082
        %v1094 = vpack.c.b16 %v1085, %v1084
        %v1095 = vpack.c.b16 %v1087, %v1086
        %1104 = vmatprep.subr.bf16.mxu0 0
        %1105 = vmatpush1.bf16.msra.mxu0 %v1095
        %1106 = vmatprep.subr.bf16.mxu0 0
        %1107 = vmatpush1.bf16.msra.mxu0 %v1094
        %1108 = vmatprep.subr.bf16.mxu0 0
        %1109 = vmatpush1.bf16.msra.mxu0 %v1093
        %1110 = vmatprep.subr.bf16.mxu0 0
        %1111 = vmatpush1.bf16.msra.mxu0 %v1092
        %1112 = vmatprep.subr.bf16.mxu0 0
        %1113 = vmatpush1.bf16.msra.mxu0 %v1091
        %1114 = vmatprep.subr.bf16.mxu0 0
        %1115 = vmatpush1.bf16.msra.mxu0 %v1090
        %1116 = vmatprep.subr.bf16.mxu0 0
        %1117 = vmatpush1.bf16.msra.mxu0 %v1089
        %1118 = vmatprep.subr.bf16.mxu0 0
        %1119 = vmatpush1.bf16.msra.mxu0 %v1088
        %1120 = vmatprep.subr.bf16.mxu0 0
        %1121 = vmatpush2.bf16.msra.mxu0 0
        %1122 = vmatprep.subr.bf16.mxu0 0
        %1123 = vmatpush2.bf16.msra.mxu0 0
        %1124 = vmatprep.subr.bf16.mxu0 0
        %1125 = vmatpush2.bf16.msra.mxu0 0
        %1126 = vmatprep.subr.bf16.mxu0 0
        %1127 = vmatpush2.bf16.msra.mxu0 0
        %1128 = vmatprep.subr.bf16.mxu0 0
        %1129 = vmatpush2.bf16.msra.mxu0 0
        %1130 = vmatprep.subr.bf16.mxu0 0
        %1131 = vmatpush2.bf16.msra.mxu0 0
        %1132 = vmatprep.subr.bf16.mxu0 0
        %1133 = vmatpush2.bf16.msra.mxu0 0
        %1134 = vmatprep.subr.bf16.mxu0 0
        %1135 = vmatpush2.bf16.msra.mxu0 0
        %1136 = vmatprep.mubr.bf16.mxu0 0
        %1137 = vmatmul.mubr.bf16.gmra.mxu0 %v945
        %v1138 = vpop.f32.mrf.mxu0
        %v1139 = vadd.f32 %v1054, %v1138
        %v1140 = vpop.f32.mrf.mxu0
        %v1141 = vpop.f32.mrf.mxu0
        %v1142 = vadd.f32 %v1054, %v1141
        %v1143 = vpop.f32.mrf.mxu0
        %1144 = vmatprep.mubr.bf16.mxu0 0
        %1145 = vmatmul.mubr.bf16.gmra.mxu0 %v946
        %v1146 = vpop.f32.mrf.mxu0
        %v1147 = vadd.f32 %v1054, %v1146
        %v1148 = vpop.f32.mrf.mxu0
        %v1149 = vpop.f32.mrf.mxu0
        %v1150 = vadd.f32 %v1054, %v1149
        %v1151 = vpop.f32.mrf.mxu0
        %1152 = vdwg.mxu0
        %v1154 = vlaneseq
        %v1155 = vshrl.u32 %v1154, 7
        %v1156 = vsub.s32 0, %v1155
        %v1157 = vrot.slane %v825, %v1156
        %v1175 = vunpack.c.l.b16 %v807
        %v1176 = vunpack.c.l.b16 %v808
        %v1177 = vunpack.c.l.b16 %v809
        %v1178 = vunpack.c.l.b16 %v810
        %v1179 = vunpack.c.l.b16 %v811
        %v1180 = vunpack.c.l.b16 %v812
        %v1181 = vunpack.c.l.b16 %v813
        %v1182 = vunpack.c.l.b16 %v814
        %v1183 = vunpack.c.l.b16 %v815
        %v1184 = vunpack.c.l.b16 %v816
        %v1185 = vunpack.c.l.b16 %v817
        %v1186 = vunpack.c.l.b16 %v818
        %v1187 = vunpack.c.l.b16 %v819
        %v1188 = vunpack.c.l.b16 %v820
        %v1189 = vunpack.c.l.b16 %v821
        %v1190 = vunpack.c.l.b16 %v822
        %v1191 = vpack.c.b16 %v1176, %v1175
        %v1192 = vpack.c.b16 %v1178, %v1177
        %v1193 = vpack.c.b16 %v1180, %v1179
        %v1194 = vpack.c.b16 %v1182, %v1181
        %v1195 = vpack.c.b16 %v1184, %v1183
        %v1196 = vpack.c.b16 %v1186, %v1185
        %v1197 = vpack.c.b16 %v1188, %v1187
        %v1198 = vpack.c.b16 %v1190, %v1189
        %1207 = vmatprep.subr.bf16.mxu0 0
        %1208 = vmatpush1.bf16.msra.mxu0 %v1198
        %1209 = vmatprep.subr.bf16.mxu0 0
        %1210 = vmatpush1.bf16.msra.mxu0 %v1197
        %1211 = vmatprep.subr.bf16.mxu0 0
        %1212 = vmatpush1.bf16.msra.mxu0 %v1196
        %1213 = vmatprep.subr.bf16.mxu0 0
        %1214 = vmatpush1.bf16.msra.mxu0 %v1195
        %1215 = vmatprep.subr.bf16.mxu0 0
        %1216 = vmatpush1.bf16.msra.mxu0 %v1194
        %1217 = vmatprep.subr.bf16.mxu0 0
        %1218 = vmatpush1.bf16.msra.mxu0 %v1193
        %1219 = vmatprep.subr.bf16.mxu0 0
        %1220 = vmatpush1.bf16.msra.mxu0 %v1192
        %1221 = vmatprep.subr.bf16.mxu0 0
        %1222 = vmatpush1.bf16.msra.mxu0 %v1191
        %1223 = vmatprep.subr.bf16.mxu0 0
        %1224 = vmatpush2.bf16.msra.mxu0 0
        %1225 = vmatprep.subr.bf16.mxu0 0
        %1226 = vmatpush2.bf16.msra.mxu0 0
        %1227 = vmatprep.subr.bf16.mxu0 0
        %1228 = vmatpush2.bf16.msra.mxu0 0
        %1229 = vmatprep.subr.bf16.mxu0 0
        %1230 = vmatpush2.bf16.msra.mxu0 0
        %1231 = vmatprep.subr.bf16.mxu0 0
        %1232 = vmatpush2.bf16.msra.mxu0 0
        %1233 = vmatprep.subr.bf16.mxu0 0
        %1234 = vmatpush2.bf16.msra.mxu0 0
        %1235 = vmatprep.subr.bf16.mxu0 0
        %1236 = vmatpush2.bf16.msra.mxu0 0
        %1237 = vmatprep.subr.bf16.mxu0 0
        %1238 = vmatpush2.bf16.msra.mxu0 0
        %1239 = vmatprep.mubr.bf16.mxu0 0
        %1240 = vmatmul.mubr.bf16.gmra.mxu0 %v945
        %v1241 = vpop.f32.mrf.mxu0
        %v1242 = vadd.f32 %v1157, %v1241
        %v1243 = vpop.f32.mrf.mxu0
        %v1244 = vpop.f32.mrf.mxu0
        %v1245 = vadd.f32 %v1157, %v1244
        %v1246 = vpop.f32.mrf.mxu0
        %1247 = vmatprep.mubr.bf16.mxu0 0
        %1248 = vmatmul.mubr.bf16.gmra.mxu0 %v946
        %v1249 = vpop.f32.mrf.mxu0
        %v1250 = vadd.f32 %v1157, %v1249
        %v1251 = vpop.f32.mrf.mxu0
        %v1252 = vpop.f32.mrf.mxu0
        %v1253 = vadd.f32 %v1157, %v1252
        %v1254 = vpop.f32.mrf.mxu0
        %1255 = vdwg.mxu0
        %v1256 = vpack.c.bf16 %v1039, %v1036
        %v1257 = vpack.c.bf16 %v1047, %v1044
        %v1258 = vpack.c.bf16 %v1142, %v1139
        %v1259 = vpack.c.bf16 %v1150, %v1147
        %v1260 = vpack.c.bf16 %v1245, %v1242
        %v1261 = vpack.c.bf16 %v1253, %v1250
        %vm1262 = vcmask 261120
        %v1264 = vsel %vm1262, %v1256, 0
        %v1267 = vsel %vm1262, %v1257, 0
        %v1270 = vsel %vm1262, %v1258, 0
        %v1273 = vsel %vm1262, %v1259, 0
        %1275 = vmatprep.subr.bf16.mxu0 0
        %1276 = vmatpush1.bf16.xpose.msra.mxu0 0
        %1277 = vmatprep.subr.bf16.mxu0 0
        %1278 = vmatpush1.bf16.xpose.msra.mxu0 0
        %1279 = vmatprep.subr.bf16.mxu0 0
        %1280 = vmatpush1.bf16.xpose.msra.mxu0 0
        %1281 = vmatprep.subr.bf16.mxu0 0
        %1282 = vmatpush1.bf16.xpose.msra.mxu0 0
        %1283 = vmatprep.subr.bf16.mxu0 0
        %1284 = vmatpush1.bf16.xpose.msra.mxu0 0
        %1285 = vmatprep.subr.bf16.mxu0 0
        %1286 = vmatpush1.bf16.xpose.msra.mxu0 0
        %1287 = vmatprep.subr.bf16.mxu0 0
        %1288 = vmatpush1.bf16.xpose.msra.mxu0 %v1273
        %1289 = vmatprep.subr.bf16.mxu0 0
        %1290 = vmatpush1.bf16.xpose.msra.mxu0 %v1270
        %1291 = vmatprep.subr.bf16.mxu0 0
        %1292 = vmatpush2.bf16.xpose.msra.mxu0 0
        %1293 = vmatprep.subr.bf16.mxu0 0
        %1294 = vmatpush2.bf16.xpose.msra.mxu0 0
        %1295 = vmatprep.subr.bf16.mxu0 0
        %1296 = vmatpush2.bf16.xpose.msra.mxu0 0
        %1297 = vmatprep.subr.bf16.mxu0 0
        %1298 = vmatpush2.bf16.xpose.msra.mxu0 0
        %1299 = vmatprep.subr.bf16.mxu0 0
        %1300 = vmatpush2.bf16.xpose.msra.mxu0 0
        %1301 = vmatprep.subr.bf16.mxu0 0
        %1302 = vmatpush2.bf16.xpose.msra.mxu0 0
        %1303 = vmatprep.subr.bf16.mxu0 0
        %1304 = vmatpush2.bf16.xpose.msra.mxu0 0
        %1305 = vmatprep.subr.bf16.mxu0 0
        %1306 = vmatpush2.bf16.xpose.msra.mxu0 0
        %1307 = vmatprep.mubr.bf16.mxu0 0
        %1308 = vmatmul.mubr.bf16.gmra.mxu0 %v1264
        %v1309 = vpop.f32.mrf.mxu0
        %v1310 = vadd.f32 0.0, %v1309
        %v1311 = vpop.f32.mrf.mxu0
        %v1312 = vpop.f32.mrf.mxu0
        %v1313 = vadd.f32 0.0, %v1312
        %v1314 = vpop.f32.mrf.mxu0
        %1315 = vmatprep.mubr.bf16.mxu0 0
        %1316 = vmatmul.mubr.bf16.gmra.mxu0 %v1267
        %v1317 = vpop.f32.mrf.mxu0
        %v1318 = vadd.f32 0.0, %v1317
        %v1319 = vpop.f32.mrf.mxu0
        %v1320 = vpop.f32.mrf.mxu0
        %v1321 = vadd.f32 0.0, %v1320
        %v1322 = vpop.f32.mrf.mxu0
        %1323 = vdwg.mxu0
        %v1324 = vmul.f32 %v1310, 0.17677669
        %v1325 = vmul.f32 %v1313, 0.17677669
        %v1326 = vmul.f32 %v1318, 0.17677669
        %v1327 = vmul.f32 %v1321, 0.17677669
        %v1329 = vlaneseq
        %v1330 = vshrl.u32 %v1329, 7
        %v1331 = vsub.s32 0, %v1330
        %v1332 = vrot.slane %v774, %v1331
        %v1334 = vadd.f32 %v1324, %v1332
        %v1335 = vadd.f32 %v1325, %v1332
        %v1336 = vadd.f32 %v1326, %v1332
        %v1337 = vadd.f32 %v1327, %v1332
        %vm1338 = vcmask 211968
        %v1339 = vsel %vm1338, %v1334, -inf
        %1340 = vmax.xlane.f32.xlu0 %v1339
        %v1341 = vpop.xlane.xlu0 %1340
        %v1342 = vsel %vm1338, %v1335, -inf
        %1343 = vmax.xlane.f32.xlu0 %v1342
        %v1344 = vpop.xlane.xlu0 %1343
        %v1345 = vsel %vm1338, %v1336, -inf
        %1346 = vmax.xlane.f32.xlu0 %v1345
        %v1347 = vpop.xlane.xlu0 %1346
        %vm1348 = vcmask 205824
        %v1349 = vsel %vm1348, %v1337, -inf
        %1350 = vmax.xlane.f32.xlu0 %v1349
        %v1351 = vpop.xlane.xlu0 %1350
        %v1352 = vsub.f32 %v1334, %v1341
        %v1353 = vsub.f32 %v1335, %v1344
        %v1354 = vsub.f32 %v1336, %v1347
        %v1355 = vsub.f32 %v1337, %v1351
        %v1356 = vmul.f32 %v1352, 1.442695
        %v1357 = vpow.pop %v1356
        %v1358 = vmul.f32 %v1353, 1.442695
        %v1359 = vpow.pop %v1358
        %v1360 = vmul.f32 %v1354, 1.442695
        %v1361 = vpow.pop %v1360
        %v1362 = vmul.f32 %v1355, 1.442695
        %v1363 = vpow.pop %v1362
        %v1364 = vsel %vm1338, %v1357, 0.0
        %1365 = vadd.xlane.f32.xlu0 %v1364
        %v1366 = vpop.xlane.xlu0 %1365
        %v1367 = vsel %vm1338, %v1359, 0.0
        %1368 = vadd.xlane.f32.xlu0 %v1367
        %v1369 = vpop.xlane.xlu0 %1368
        %v1370 = vsel %vm1338, %v1361, 0.0
        %1371 = vadd.xlane.f32.xlu0 %v1370
        %v1372 = vpop.xlane.xlu0 %1371
        %v1373 = vsel %vm1348, %v1363, 0.0
        %1374 = vadd.xlane.f32.xlu0 %v1373
        %v1375 = vpop.xlane.xlu0 %1374
        %v1376 = vrcp.pop %v1366
        %v1377 = vrcp.pop %v1369
        %v1378 = vrcp.pop %v1372
        %v1379 = vrcp.pop %v1375
        %v1380 = vmul.f32 %v1357, %v1376
        %v1381 = vmul.f32 %v1359, %v1377
        %v1382 = vmul.f32 %v1361, %v1378
        %v1383 = vmul.f32 %v1363, %v1379
        %v1384 = vpack.c.bf16 %v1381, %v1380
        %v1385 = vpack.c.bf16 %v1383, %v1382
        %v1387 = vsel %vm1338, %v1384, 0
        %v1390 = vsel %vm1338, %v1385, 0
        %vm1392 = vcmask 1044480
        %v1394 = vsel %vm1392, %v1261, 0
        %1396 = vmatprep.subr.bf16.mxu0 0
        %1397 = vmatpush1.bf16.msra.mxu0 0
        %1398 = vmatprep.subr.bf16.mxu0 0
        %1399 = vmatpush1.bf16.msra.mxu0 0
        %1400 = vmatprep.subr.bf16.mxu0 0
        %1401 = vmatpush1.bf16.msra.mxu0 0
        %1402 = vmatprep.subr.bf16.mxu0 0
        %1403 = vmatpush1.bf16.msra.mxu0 0
        %1404 = vmatprep.subr.bf16.mxu0 0
        %1405 = vmatpush1.bf16.msra.mxu0 0
        %1406 = vmatprep.subr.bf16.mxu0 0
        %1407 = vmatpush1.bf16.msra.mxu0 0
        %1408 = vmatprep.subr.bf16.mxu0 0
        %1409 = vmatpush1.bf16.msra.mxu0 %v1394
        %1410 = vmatprep.subr.bf16.mxu0 0
        %1411 = vmatpush1.bf16.msra.mxu0 %v1260
        %1412 = vmatprep.subr.bf16.mxu0 0
        %1413 = vmatpush2.bf16.msra.mxu0 0
        %1414 = vmatprep.subr.bf16.mxu0 0
        %1415 = vmatpush2.bf16.msra.mxu0 0
        %1416 = vmatprep.subr.bf16.mxu0 0
        %1417 = vmatpush2.bf16.msra.mxu0 0
        %1418 = vmatprep.subr.bf16.mxu0 0
        %1419 = vmatpush2.bf16.msra.mxu0 0
        %1420 = vmatprep.subr.bf16.mxu0 0
        %1421 = vmatpush2.bf16.msra.mxu0 0
        %1422 = vmatprep.subr.bf16.mxu0 0
        %1423 = vmatpush2.bf16.msra.mxu0 0
        %1424 = vmatprep.subr.bf16.mxu0 0
        %1425 = vmatpush2.bf16.msra.mxu0 0
        %1426 = vmatprep.subr.bf16.mxu0 0
        %1427 = vmatpush2.bf16.msra.mxu0 0
        %1428 = vmatprep.mubr.bf16.mxu0 0
        %1429 = vmatmul.mubr.bf16.gmra.mxu0 %v1387
        %v1430 = vpop.f32.mrf.mxu0
        %v1431 = vadd.f32 0.0, %v1430
        %v1432 = vpop.f32.mrf.mxu0
        %v1433 = vpop.f32.mrf.mxu0
        %v1434 = vadd.f32 0.0, %v1433
        %v1435 = vpop.f32.mrf.mxu0
        %1436 = vmatprep.mubr.bf16.mxu0 0
        %1437 = vmatmul.mubr.bf16.gmra.mxu0 %v1390
        %v1438 = vpop.f32.mrf.mxu0
        %v1439 = vadd.f32 0.0, %v1438
        %v1440 = vpop.f32.mrf.mxu0
        %v1441 = vpop.f32.mrf.mxu0
        %v1442 = vadd.f32 0.0, %v1441
        %v1443 = vpop.f32.mrf.mxu0
        %1444 = vdwg.mxu0
        %1447 = vrot.lane.b32.xlu0 %v1256, 96
        %v1448 = vpop.permute.xlu0 %1447
        %1449 = vrot.lane.b32.xlu0 %v1257, 96
        %v1450 = vpop.permute.xlu0 %1449
        %1453 = vrot.lane.b32.xlu0 %v1258, 96
        %v1454 = vpop.permute.xlu0 %1453
        %1455 = vrot.lane.b32.xlu0 %v1259, 96
        %v1456 = vpop.permute.xlu0 %1455
        %v1458 = vsel %vm1262, %v1448, 0
        %v1461 = vsel %vm1262, %v1450, 0
        %v1464 = vsel %vm1262, %v1454, 0
        %v1467 = vsel %vm1262, %v1456, 0
        %1469 = vmatprep.subr.bf16.mxu0 0
        %1470 = vmatpush1.bf16.xpose.msra.mxu0 0
        %1471 = vmatprep.subr.bf16.mxu0 0
        %1472 = vmatpush1.bf16.xpose.msra.mxu0 0
        %1473 = vmatprep.subr.bf16.mxu0 0
        %1474 = vmatpush1.bf16.xpose.msra.mxu0 0
        %1475 = vmatprep.subr.bf16.mxu0 0
        %1476 = vmatpush1.bf16.xpose.msra.mxu0 0
        %1477 = vmatprep.subr.bf16.mxu0 0
        %1478 = vmatpush1.bf16.xpose.msra.mxu0 0
        %1479 = vmatprep.subr.bf16.mxu0 0
        %1480 = vmatpush1.bf16.xpose.msra.mxu0 0
        %1481 = vmatprep.subr.bf16.mxu0 0
        %1482 = vmatpush1.bf16.xpose.msra.mxu0 %v1467
        %1483 = vmatprep.subr.bf16.mxu0 0
        %1484 = vmatpush1.bf16.xpose.msra.mxu0 %v1464
        %1485 = vmatprep.subr.bf16.mxu0 0
        %1486 = vmatpush2.bf16.xpose.msra.mxu0 0
        %1487 = vmatprep.subr.bf16.mxu0 0
        %1488 = vmatpush2.bf16.xpose.msra.mxu0 0
        %1489 = vmatprep.subr.bf16.mxu0 0
        %1490 = vmatpush2.bf16.xpose.msra.mxu0 0
        %1491 = vmatprep.subr.bf16.mxu0 0
        %1492 = vmatpush2.bf16.xpose.msra.mxu0 0
        %1493 = vmatprep.subr.bf16.mxu0 0
        %1494 = vmatpush2.bf16.xpose.msra.mxu0 0
        %1495 = vmatprep.subr.bf16.mxu0 0
        %1496 = vmatpush2.bf16.xpose.msra.mxu0 0
        %1497 = vmatprep.subr.bf16.mxu0 0
        %1498 = vmatpush2.bf16.xpose.msra.mxu0 0
        %1499 = vmatprep.subr.bf16.mxu0 0
        %1500 = vmatpush2.bf16.xpose.msra.mxu0 0
        %1501 = vmatprep.mubr.bf16.mxu0 0
        %1502 = vmatmul.mubr.bf16.gmra.mxu0 %v1458
        %v1503 = vpop.f32.mrf.mxu0
        %v1504 = vadd.f32 0.0, %v1503
        %v1505 = vpop.f32.mrf.mxu0
        %v1506 = vpop.f32.mrf.mxu0
        %v1507 = vadd.f32 0.0, %v1506
        %v1508 = vpop.f32.mrf.mxu0
        %1509 = vmatprep.mubr.bf16.mxu0 0
        %1510 = vmatmul.mubr.bf16.gmra.mxu0 %v1461
        %v1511 = vpop.f32.mrf.mxu0
        %v1512 = vadd.f32 0.0, %v1511
        %v1513 = vpop.f32.mrf.mxu0
        %v1514 = vpop.f32.mrf.mxu0
        %v1515 = vadd.f32 0.0, %v1514
        %v1516 = vpop.f32.mrf.mxu0
        %1517 = vdwg.mxu0
        %v1518 = vmul.f32 %v1504, 0.17677669
        %v1519 = vmul.f32 %v1507, 0.17677669
        %v1520 = vmul.f32 %v1512, 0.17677669
        %v1521 = vmul.f32 %v1515, 0.17677669
        %v1522 = vadd.f32 %v1518, %v1332
        %v1523 = vadd.f32 %v1519, %v1332
        %v1524 = vadd.f32 %v1520, %v1332
        %v1525 = vadd.f32 %v1521, %v1332
        %v1526 = vsel %vm1338, %v1522, -inf
        %1527 = vmax.xlane.f32.xlu0 %v1526
        %v1528 = vpop.xlane.xlu0 %1527
        %v1529 = vsel %vm1338, %v1523, -inf
        %1530 = vmax.xlane.f32.xlu0 %v1529
        %v1531 = vpop.xlane.xlu0 %1530
        %v1532 = vsel %vm1338, %v1524, -inf
        %1533 = vmax.xlane.f32.xlu0 %v1532
        %v1534 = vpop.xlane.xlu0 %1533
        %v1535 = vsel %vm1348, %v1525, -inf
        %1536 = vmax.xlane.f32.xlu0 %v1535
        %v1537 = vpop.xlane.xlu0 %1536
        %v1538 = vsub.f32 %v1522, %v1528
        %v1539 = vsub.f32 %v1523, %v1531
        %v1540 = vsub.f32 %v1524, %v1534
        %v1541 = vsub.f32 %v1525, %v1537
        %v1542 = vmul.f32 %v1538, 1.442695
        %v1543 = vpow.pop %v1542
        %v1544 = vmul.f32 %v1539, 1.442695
        %v1545 = vpow.pop %v1544
        %v1546 = vmul.f32 %v1540, 1.442695
        %v1547 = vpow.pop %v1546
        %v1548 = vmul.f32 %v1541, 1.442695
        %v1549 = vpow.pop %v1548
        %v1550 = vsel %vm1338, %v1543, 0.0
        %1551 = vadd.xlane.f32.xlu0 %v1550
        %v1552 = vpop.xlane.xlu0 %1551
        %v1553 = vsel %vm1338, %v1545, 0.0
        %1554 = vadd.xlane.f32.xlu0 %v1553
        %v1555 = vpop.xlane.xlu0 %1554
        %v1556 = vsel %vm1338, %v1547, 0.0
        %1557 = vadd.xlane.f32.xlu0 %v1556
        %v1558 = vpop.xlane.xlu0 %1557
        %v1559 = vsel %vm1348, %v1549, 0.0
        %1560 = vadd.xlane.f32.xlu0 %v1559
        %v1561 = vpop.xlane.xlu0 %1560
        %v1562 = vrcp.pop %v1552
        %v1563 = vrcp.pop %v1555
        %v1564 = vrcp.pop %v1558
        %v1565 = vrcp.pop %v1561
        %v1566 = vmul.f32 %v1543, %v1562
        %v1567 = vmul.f32 %v1545, %v1563
        %v1568 = vmul.f32 %v1547, %v1564
        %v1569 = vmul.f32 %v1549, %v1565
        %v1570 = vpack.c.bf16 %v1567, %v1566
        %v1571 = vpack.c.bf16 %v1569, %v1568
        %1574 = vrot.lane.b32.xlu0 %v1260, 96
        %v1575 = vpop.permute.xlu0 %1574
        %1576 = vrot.lane.b32.xlu0 %v1261, 96
        %v1577 = vpop.permute.xlu0 %1576
        %v1580 = vsel %vm1338, %v1570, 0
        %v1583 = vsel %vm1338, %v1571, 0
        %v1586 = vsel %vm1392, %v1577, 0
        %1588 = vmatprep.subr.bf16.mxu0 0
        %1589 = vmatpush1.bf16.msra.mxu0 0
        %1590 = vmatprep.subr.bf16.mxu0 0
        %1591 = vmatpush1.bf16.msra.mxu0 0
        %1592 = vmatprep.subr.bf16.mxu0 0
        %1593 = vmatpush1.bf16.msra.mxu0 0
        %1594 = vmatprep.subr.bf16.mxu0 0
        %1595 = vmatpush1.bf16.msra.mxu0 0
        %1596 = vmatprep.subr.bf16.mxu0 0
        %1597 = vmatpush1.bf16.msra.mxu0 0
        %1598 = vmatprep.subr.bf16.mxu0 0
        %1599 = vmatpush1.bf16.msra.mxu0 0
        %1600 = vmatprep.subr.bf16.mxu0 0
        %1601 = vmatpush1.bf16.msra.mxu0 %v1586
        %1602 = vmatprep.subr.bf16.mxu0 0
        %1603 = vmatpush1.bf16.msra.mxu0 %v1575
        %1604 = vmatprep.subr.bf16.mxu0 0
        %1605 = vmatpush2.bf16.msra.mxu0 0
        %1606 = vmatprep.subr.bf16.mxu0 0
        %1607 = vmatpush2.bf16.msra.mxu0 0
        %1608 = vmatprep.subr.bf16.mxu0 0
        %1609 = vmatpush2.bf16.msra.mxu0 0
        %1610 = vmatprep.subr.bf16.mxu0 0
        %1611 = vmatpush2.bf16.msra.mxu0 0
        %1612 = vmatprep.subr.bf16.mxu0 0
        %1613 = vmatpush2.bf16.msra.mxu0 0
        %1614 = vmatprep.subr.bf16.mxu0 0
        %1615 = vmatpush2.bf16.msra.mxu0 0
        %1616 = vmatprep.subr.bf16.mxu0 0
        %1617 = vmatpush2.bf16.msra.mxu0 0
        %1618 = vmatprep.subr.bf16.mxu0 0
        %1619 = vmatpush2.bf16.msra.mxu0 0
        %1620 = vmatprep.mubr.bf16.mxu0 0
        %1621 = vmatmul.mubr.bf16.gmra.mxu0 %v1580
        %v1622 = vpop.f32.mrf.mxu0
        %v1623 = vadd.f32 0.0, %v1622
        %v1624 = vpop.f32.mrf.mxu0
        %v1625 = vpop.f32.mrf.mxu0
        %v1626 = vadd.f32 0.0, %v1625
        %v1627 = vpop.f32.mrf.mxu0
        %1628 = vmatprep.mubr.bf16.mxu0 0
        %1629 = vmatmul.mubr.bf16.gmra.mxu0 %v1583
        %v1630 = vpop.f32.mrf.mxu0
        %v1631 = vadd.f32 0.0, %v1630
        %v1632 = vpop.f32.mrf.mxu0
        %v1633 = vpop.f32.mrf.mxu0
        %v1634 = vadd.f32 0.0, %v1633
        %v1635 = vpop.f32.mrf.mxu0
        %1636 = vdwg.mxu0
        %1637 = vrot.lane.b32.xlu0 %v1256, 64
        %v1638 = vpop.permute.xlu0 %1637
        %1639 = vrot.lane.b32.xlu0 %v1257, 64
        %v1640 = vpop.permute.xlu0 %1639
        %1641 = vrot.lane.b32.xlu0 %v1258, 64
        %v1642 = vpop.permute.xlu0 %1641
        %1643 = vrot.lane.b32.xlu0 %v1259, 64
        %v1644 = vpop.permute.xlu0 %1643
        %v1646 = vsel %vm1262, %v1638, 0
        %v1649 = vsel %vm1262, %v1640, 0
        %v1652 = vsel %vm1262, %v1642, 0
        %v1655 = vsel %vm1262, %v1644, 0
        %1657 = vmatprep.subr.bf16.mxu0 0
        %1658 = vmatpush1.bf16.xpose.msra.mxu0 0
        %1659 = vmatprep.subr.bf16.mxu0 0
        %1660 = vmatpush1.bf16.xpose.msra.mxu0 0
        %1661 = vmatprep.subr.bf16.mxu0 0
        %1662 = vmatpush1.bf16.xpose.msra.mxu0 0
        %1663 = vmatprep.subr.bf16.mxu0 0
        %1664 = vmatpush1.bf16.xpose.msra.mxu0 0
        %1665 = vmatprep.subr.bf16.mxu0 0
        %1666 = vmatpush1.bf16.xpose.msra.mxu0 0
        %1667 = vmatprep.subr.bf16.mxu0 0
        %1668 = vmatpush1.bf16.xpose.msra.mxu0 0
        %1669 = vmatprep.subr.bf16.mxu0 0
        %1670 = vmatpush1.bf16.xpose.msra.mxu0 %v1655
        %1671 = vmatprep.subr.bf16.mxu0 0
        %1672 = vmatpush1.bf16.xpose.msra.mxu0 %v1652
        %1673 = vmatprep.subr.bf16.mxu0 0
        %1674 = vmatpush2.bf16.xpose.msra.mxu0 0
        %1675 = vmatprep.subr.bf16.mxu0 0
        %1676 = vmatpush2.bf16.xpose.msra.mxu0 0
        %1677 = vmatprep.subr.bf16.mxu0 0
        %1678 = vmatpush2.bf16.xpose.msra.mxu0 0
        %1679 = vmatprep.subr.bf16.mxu0 0
        %1680 = vmatpush2.bf16.xpose.msra.mxu0 0
        %1681 = vmatprep.subr.bf16.mxu0 0
        %1682 = vmatpush2.bf16.xpose.msra.mxu0 0
        %1683 = vmatprep.subr.bf16.mxu0 0
        %1684 = vmatpush2.bf16.xpose.msra.mxu0 0
        %1685 = vmatprep.subr.bf16.mxu0 0
        %1686 = vmatpush2.bf16.xpose.msra.mxu0 0
        %1687 = vmatprep.subr.bf16.mxu0 0
        %1688 = vmatpush2.bf16.xpose.msra.mxu0 0
        %1689 = vmatprep.mubr.bf16.mxu0 0
        %1690 = vmatmul.mubr.bf16.gmra.mxu0 %v1646
        %v1691 = vpop.f32.mrf.mxu0
        %v1692 = vadd.f32 0.0, %v1691
        %v1693 = vpop.f32.mrf.mxu0
        %v1694 = vpop.f32.mrf.mxu0
        %v1695 = vadd.f32 0.0, %v1694
        %v1696 = vpop.f32.mrf.mxu0
        %1697 = vmatprep.mubr.bf16.mxu0 0
        %1698 = vmatmul.mubr.bf16.gmra.mxu0 %v1649
        %v1699 = vpop.f32.mrf.mxu0
        %v1700 = vadd.f32 0.0, %v1699
        %v1701 = vpop.f32.mrf.mxu0
        %v1702 = vpop.f32.mrf.mxu0
        %v1703 = vadd.f32 0.0, %v1702
        %v1704 = vpop.f32.mrf.mxu0
        %1705 = vdwg.mxu0
        %v1706 = vmul.f32 %v1692, 0.17677669
        %v1707 = vmul.f32 %v1695, 0.17677669
        %v1708 = vmul.f32 %v1700, 0.17677669
        %v1709 = vmul.f32 %v1703, 0.17677669
        %v1710 = vadd.f32 %v1706, %v1332
        %v1711 = vadd.f32 %v1707, %v1332
        %v1712 = vadd.f32 %v1708, %v1332
        %v1713 = vadd.f32 %v1709, %v1332
        %v1714 = vsel %vm1338, %v1710, -inf
        %1715 = vmax.xlane.f32.xlu0 %v1714
        %v1716 = vpop.xlane.xlu0 %1715
        %v1717 = vsel %vm1338, %v1711, -inf
        %1718 = vmax.xlane.f32.xlu0 %v1717
        %v1719 = vpop.xlane.xlu0 %1718
        %v1720 = vsel %vm1338, %v1712, -inf
        %1721 = vmax.xlane.f32.xlu0 %v1720
        %v1722 = vpop.xlane.xlu0 %1721
        %v1723 = vsel %vm1348, %v1713, -inf
        %1724 = vmax.xlane.f32.xlu0 %v1723
        %v1725 = vpop.xlane.xlu0 %1724
        %v1726 = vsub.f32 %v1710, %v1716
        %v1727 = vsub.f32 %v1711, %v1719
        %v1728 = vsub.f32 %v1712, %v1722
        %v1729 = vsub.f32 %v1713, %v1725
        %v1730 = vmul.f32 %v1726, 1.442695
        %v1731 = vpow.pop %v1730
        %v1732 = vmul.f32 %v1727, 1.442695
        %v1733 = vpow.pop %v1732
        %v1734 = vmul.f32 %v1728, 1.442695
        %v1735 = vpow.pop %v1734
        %v1736 = vmul.f32 %v1729, 1.442695
        %v1737 = vpow.pop %v1736
        %v1738 = vsel %vm1338, %v1731, 0.0
        %1739 = vadd.xlane.f32.xlu0 %v1738
        %v1740 = vpop.xlane.xlu0 %1739
        %v1741 = vsel %vm1338, %v1733, 0.0
        %1742 = vadd.xlane.f32.xlu0 %v1741
        %v1743 = vpop.xlane.xlu0 %1742
        %v1744 = vsel %vm1338, %v1735, 0.0
        %1745 = vadd.xlane.f32.xlu0 %v1744
        %v1746 = vpop.xlane.xlu0 %1745
        %v1747 = vsel %vm1348, %v1737, 0.0
        %1748 = vadd.xlane.f32.xlu0 %v1747
        %v1749 = vpop.xlane.xlu0 %1748
        %v1750 = vrcp.pop %v1740
        %v1751 = vrcp.pop %v1743
        %v1752 = vrcp.pop %v1746
        %v1753 = vrcp.pop %v1749
        %v1754 = vmul.f32 %v1731, %v1750
        %v1755 = vmul.f32 %v1733, %v1751
        %v1756 = vmul.f32 %v1735, %v1752
        %v1757 = vmul.f32 %v1737, %v1753
        %v1758 = vpack.c.bf16 %v1755, %v1754
        %v1759 = vpack.c.bf16 %v1757, %v1756
        %1760 = vrot.lane.b32.xlu0 %v1260, 64
        %v1761 = vpop.permute.xlu0 %1760
        %1762 = vrot.lane.b32.xlu0 %v1261, 64
        %v1763 = vpop.permute.xlu0 %1762
        %v1766 = vsel %vm1338, %v1758, 0
        %v1769 = vsel %vm1338, %v1759, 0
        %v1772 = vsel %vm1392, %v1763, 0
        %1774 = vmatprep.subr.bf16.mxu0 0
        %1775 = vmatpush1.bf16.msra.mxu0 0
        %1776 = vmatprep.subr.bf16.mxu0 0
        %1777 = vmatpush1.bf16.msra.mxu0 0
        %1778 = vmatprep.subr.bf16.mxu0 0
        %1779 = vmatpush1.bf16.msra.mxu0 0
        %1780 = vmatprep.subr.bf16.mxu0 0
        %1781 = vmatpush1.bf16.msra.mxu0 0
        %1782 = vmatprep.subr.bf16.mxu0 0
        %1783 = vmatpush1.bf16.msra.mxu0 0
        %1784 = vmatprep.subr.bf16.mxu0 0
        %1785 = vmatpush1.bf16.msra.mxu0 0
        %1786 = vmatprep.subr.bf16.mxu0 0
        %1787 = vmatpush1.bf16.msra.mxu0 %v1772
        %1788 = vmatprep.subr.bf16.mxu0 0
        %1789 = vmatpush1.bf16.msra.mxu0 %v1761
        %1790 = vmatprep.subr.bf16.mxu0 0
        %1791 = vmatpush2.bf16.msra.mxu0 0
        %1792 = vmatprep.subr.bf16.mxu0 0
        %1793 = vmatpush2.bf16.msra.mxu0 0
        %1794 = vmatprep.subr.bf16.mxu0 0
        %1795 = vmatpush2.bf16.msra.mxu0 0
        %1796 = vmatprep.subr.bf16.mxu0 0
        %1797 = vmatpush2.bf16.msra.mxu0 0
        %1798 = vmatprep.subr.bf16.mxu0 0
        %1799 = vmatpush2.bf16.msra.mxu0 0
        %1800 = vmatprep.subr.bf16.mxu0 0
        %1801 = vmatpush2.bf16.msra.mxu0 0
        %1802 = vmatprep.subr.bf16.mxu0 0
        %1803 = vmatpush2.bf16.msra.mxu0 0
        %1804 = vmatprep.subr.bf16.mxu0 0
        %1805 = vmatpush2.bf16.msra.mxu0 0
        %1806 = vmatprep.mubr.bf16.mxu0 0
        %1807 = vmatmul.mubr.bf16.gmra.mxu0 %v1766
        %v1808 = vpop.f32.mrf.mxu0
        %v1809 = vadd.f32 0.0, %v1808
        %v1810 = vpop.f32.mrf.mxu0
        %v1811 = vpop.f32.mrf.mxu0
        %v1812 = vadd.f32 0.0, %v1811
        %v1813 = vpop.f32.mrf.mxu0
        %1814 = vmatprep.mubr.bf16.mxu0 0
        %1815 = vmatmul.mubr.bf16.gmra.mxu0 %v1769
        %v1816 = vpop.f32.mrf.mxu0
        %v1817 = vadd.f32 0.0, %v1816
        %v1818 = vpop.f32.mrf.mxu0
        %v1819 = vpop.f32.mrf.mxu0
        %v1820 = vadd.f32 0.0, %v1819
        %v1821 = vpop.f32.mrf.mxu0
        %1822 = vdwg.mxu0
        %1823 = vrot.lane.b32.xlu0 %v1256, 32
        %v1824 = vpop.permute.xlu0 %1823
        %1825 = vrot.lane.b32.xlu0 %v1257, 32
        %v1826 = vpop.permute.xlu0 %1825
        %1827 = vrot.lane.b32.xlu0 %v1258, 32
        %v1828 = vpop.permute.xlu0 %1827
        %1829 = vrot.lane.b32.xlu0 %v1259, 32
        %v1830 = vpop.permute.xlu0 %1829
        %v1832 = vsel %vm1262, %v1824, 0
        %v1835 = vsel %vm1262, %v1826, 0
        %v1838 = vsel %vm1262, %v1828, 0
        %v1841 = vsel %vm1262, %v1830, 0
        %1843 = vmatprep.subr.bf16.mxu0 0
        %1844 = vmatpush1.bf16.xpose.msra.mxu0 0
        %1845 = vmatprep.subr.bf16.mxu0 0
        %1846 = vmatpush1.bf16.xpose.msra.mxu0 0
        %1847 = vmatprep.subr.bf16.mxu0 0
        %1848 = vmatpush1.bf16.xpose.msra.mxu0 0
        %1849 = vmatprep.subr.bf16.mxu0 0
        %1850 = vmatpush1.bf16.xpose.msra.mxu0 0
        %1851 = vmatprep.subr.bf16.mxu0 0
        %1852 = vmatpush1.bf16.xpose.msra.mxu0 0
        %1853 = vmatprep.subr.bf16.mxu0 0
        %1854 = vmatpush1.bf16.xpose.msra.mxu0 0
        %1855 = vmatprep.subr.bf16.mxu0 0
        %1856 = vmatpush1.bf16.xpose.msra.mxu0 %v1841
        %1857 = vmatprep.subr.bf16.mxu0 0
        %1858 = vmatpush1.bf16.xpose.msra.mxu0 %v1838
        %1859 = vmatprep.subr.bf16.mxu0 0
        %1860 = vmatpush2.bf16.xpose.msra.mxu0 0
        %1861 = vmatprep.subr.bf16.mxu0 0
        %1862 = vmatpush2.bf16.xpose.msra.mxu0 0
        %1863 = vmatprep.subr.bf16.mxu0 0
        %1864 = vmatpush2.bf16.xpose.msra.mxu0 0
        %1865 = vmatprep.subr.bf16.mxu0 0
        %1866 = vmatpush2.bf16.xpose.msra.mxu0 0
        %1867 = vmatprep.subr.bf16.mxu0 0
        %1868 = vmatpush2.bf16.xpose.msra.mxu0 0
        %1869 = vmatprep.subr.bf16.mxu0 0
        %1870 = vmatpush2.bf16.xpose.msra.mxu0 0
        %1871 = vmatprep.subr.bf16.mxu0 0
        %1872 = vmatpush2.bf16.xpose.msra.mxu0 0
        %1873 = vmatprep.subr.bf16.mxu0 0
        %1874 = vmatpush2.bf16.xpose.msra.mxu0 0
        %1875 = vmatprep.mubr.bf16.mxu0 0
        %1876 = vmatmul.mubr.bf16.gmra.mxu0 %v1832
        %v1877 = vpop.f32.mrf.mxu0
        %v1878 = vadd.f32 0.0, %v1877
        %v1879 = vpop.f32.mrf.mxu0
        %v1880 = vpop.f32.mrf.mxu0
        %v1881 = vadd.f32 0.0, %v1880
        %v1882 = vpop.f32.mrf.mxu0
        %1883 = vmatprep.mubr.bf16.mxu0 0
        %1884 = vmatmul.mubr.bf16.gmra.mxu0 %v1835
        %v1885 = vpop.f32.mrf.mxu0
        %v1886 = vadd.f32 0.0, %v1885
        %v1887 = vpop.f32.mrf.mxu0
        %v1888 = vpop.f32.mrf.mxu0
        %v1889 = vadd.f32 0.0, %v1888
        %v1890 = vpop.f32.mrf.mxu0
        %1891 = vdwg.mxu0
        %v1892 = vmul.f32 %v1878, 0.17677669
        %v1893 = vmul.f32 %v1881, 0.17677669
        %v1894 = vmul.f32 %v1886, 0.17677669
        %v1895 = vmul.f32 %v1889, 0.17677669
        %v1896 = vadd.f32 %v1892, %v1332
        %v1897 = vadd.f32 %v1893, %v1332
        %v1898 = vadd.f32 %v1894, %v1332
        %v1899 = vadd.f32 %v1895, %v1332
        %v1900 = vsel %vm1338, %v1896, -inf
        %1901 = vmax.xlane.f32.xlu0 %v1900
        %v1902 = vpop.xlane.xlu0 %1901
        %v1903 = vsel %vm1338, %v1897, -inf
        %1904 = vmax.xlane.f32.xlu0 %v1903
        %v1905 = vpop.xlane.xlu0 %1904
        %v1906 = vsel %vm1338, %v1898, -inf
        %1907 = vmax.xlane.f32.xlu0 %v1906
        %v1908 = vpop.xlane.xlu0 %1907
        %v1909 = vsel %vm1348, %v1899, -inf
        %1910 = vmax.xlane.f32.xlu0 %v1909
        %v1911 = vpop.xlane.xlu0 %1910
        %v1912 = vsub.f32 %v1896, %v1902
        %v1913 = vsub.f32 %v1897, %v1905
        %v1914 = vsub.f32 %v1898, %v1908
        %v1915 = vsub.f32 %v1899, %v1911
        %v1916 = vmul.f32 %v1912, 1.442695
        %v1917 = vpow.pop %v1916
        %v1918 = vmul.f32 %v1913, 1.442695
        %v1919 = vpow.pop %v1918
        %v1920 = vmul.f32 %v1914, 1.442695
        %v1921 = vpow.pop %v1920
        %v1922 = vmul.f32 %v1915, 1.442695
        %v1923 = vpow.pop %v1922
        %v1924 = vsel %vm1338, %v1917, 0.0
        %1925 = vadd.xlane.f32.xlu0 %v1924
        %v1926 = vpop.xlane.xlu0 %1925
        %v1927 = vsel %vm1338, %v1919, 0.0
        %1928 = vadd.xlane.f32.xlu0 %v1927
        %v1929 = vpop.xlane.xlu0 %1928
        %v1930 = vsel %vm1338, %v1921, 0.0
        %1931 = vadd.xlane.f32.xlu0 %v1930
        %v1932 = vpop.xlane.xlu0 %1931
        %v1933 = vsel %vm1348, %v1923, 0.0
        %1934 = vadd.xlane.f32.xlu0 %v1933
        %v1935 = vpop.xlane.xlu0 %1934
        %v1936 = vrcp.pop %v1926
        %v1937 = vrcp.pop %v1929
        %v1938 = vrcp.pop %v1932
        %v1939 = vrcp.pop %v1935
        %v1940 = vmul.f32 %v1917, %v1936
        %v1941 = vmul.f32 %v1919, %v1937
        %v1942 = vmul.f32 %v1921, %v1938
        %v1943 = vmul.f32 %v1923, %v1939
        %v1944 = vpack.c.bf16 %v1941, %v1940
        %v1945 = vpack.c.bf16 %v1943, %v1942
        %1946 = vrot.lane.b32.xlu0 %v1260, 32
        %v1947 = vpop.permute.xlu0 %1946
        %1948 = vrot.lane.b32.xlu0 %v1261, 32
        %v1949 = vpop.permute.xlu0 %1948
        %v1952 = vsel %vm1338, %v1944, 0
        %v1955 = vsel %vm1338, %v1945, 0
        %v1958 = vsel %vm1392, %v1949, 0
        %1960 = vmatprep.subr.bf16.mxu0 0
        %1961 = vmatpush1.bf16.msra.mxu0 0
        %1962 = vmatprep.subr.bf16.mxu0 0
        %1963 = vmatpush1.bf16.msra.mxu0 0
        %1964 = vmatprep.subr.bf16.mxu0 0
        %1965 = vmatpush1.bf16.msra.mxu0 0
        %1966 = vmatprep.subr.bf16.mxu0 0
        %1967 = vmatpush1.bf16.msra.mxu0 0
        %1968 = vmatprep.subr.bf16.mxu0 0
        %1969 = vmatpush1.bf16.msra.mxu0 0
        %1970 = vmatprep.subr.bf16.mxu0 0
        %1971 = vmatpush1.bf16.msra.mxu0 0
        %1972 = vmatprep.subr.bf16.mxu0 0
        %1973 = vmatpush1.bf16.msra.mxu0 %v1958
        %1974 = vmatprep.subr.bf16.mxu0 0
        %1975 = vmatpush1.bf16.msra.mxu0 %v1947
        %1976 = vmatprep.subr.bf16.mxu0 0
        %1977 = vmatpush2.bf16.msra.mxu0 0
        %1978 = vmatprep.subr.bf16.mxu0 0
        %1979 = vmatpush2.bf16.msra.mxu0 0
        %1980 = vmatprep.subr.bf16.mxu0 0
        %1981 = vmatpush2.bf16.msra.mxu0 0
        %1982 = vmatprep.subr.bf16.mxu0 0
        %1983 = vmatpush2.bf16.msra.mxu0 0
        %1984 = vmatprep.subr.bf16.mxu0 0
        %1985 = vmatpush2.bf16.msra.mxu0 0
        %1986 = vmatprep.subr.bf16.mxu0 0
        %1987 = vmatpush2.bf16.msra.mxu0 0
        %1988 = vmatprep.subr.bf16.mxu0 0
        %1989 = vmatpush2.bf16.msra.mxu0 0
        %1990 = vmatprep.subr.bf16.mxu0 0
        %1991 = vmatpush2.bf16.msra.mxu0 0
        %1992 = vmatprep.mubr.bf16.mxu0 0
        %1993 = vmatmul.mubr.bf16.gmra.mxu0 %v1952
        %v1994 = vpop.f32.mrf.mxu0
        %v1995 = vadd.f32 0.0, %v1994
        %v1996 = vpop.f32.mrf.mxu0
        %v1997 = vpop.f32.mrf.mxu0
        %v1998 = vadd.f32 0.0, %v1997
        %v1999 = vpop.f32.mrf.mxu0
        %2000 = vmatprep.mubr.bf16.mxu0 0
        %2001 = vmatmul.mubr.bf16.gmra.mxu0 %v1955
        %v2002 = vpop.f32.mrf.mxu0
        %v2003 = vadd.f32 0.0, %v2002
        %v2004 = vpop.f32.mrf.mxu0
        %v2005 = vpop.f32.mrf.mxu0
        %v2006 = vadd.f32 0.0, %v2005
        %v2007 = vpop.f32.mrf.mxu0
        %2008 = vdwg.mxu0
        %2013 = vrot.lane.b32.xlu0 %v1623, 32
        %v2014 = vpop.permute.xlu0 %2013
        %2015 = vrot.lane.b32.xlu0 %v1626, 32
        %v2016 = vpop.permute.xlu0 %2015
        %2017 = vrot.lane.b32.xlu0 %v1631, 32
        %v2018 = vpop.permute.xlu0 %2017
        %2019 = vrot.lane.b32.xlu0 %v1634, 32
        %v2020 = vpop.permute.xlu0 %2019
        %2029 = vrot.lane.b32.xlu0 %v1809, 64
        %v2030 = vpop.permute.xlu0 %2029
        %2031 = vrot.lane.b32.xlu0 %v1812, 64
        %v2032 = vpop.permute.xlu0 %2031
        %2033 = vrot.lane.b32.xlu0 %v1817, 64
        %v2034 = vpop.permute.xlu0 %2033
        %2035 = vrot.lane.b32.xlu0 %v1820, 64
        %v2036 = vpop.permute.xlu0 %2035
        %2045 = vrot.lane.b32.xlu0 %v1995, 96
        %v2046 = vpop.permute.xlu0 %2045
        %2047 = vrot.lane.b32.xlu0 %v1998, 96
        %v2048 = vpop.permute.xlu0 %2047
        %2049 = vrot.lane.b32.xlu0 %v2003, 96
        %v2050 = vpop.permute.xlu0 %2049
        %2051 = vrot.lane.b32.xlu0 %v2006, 96
        %v2052 = vpop.permute.xlu0 %2051
        %v2057 = vsel %vm1262, %v1431, %v2014
        %v2058 = vsel %vm1262, %v1434, %v2016
        %v2059 = vsel %vm1262, %v1439, %v2018
        %v2060 = vsel %vm1262, %v1442, %v2020
        %vm2061 = vcmask 523264
        %v2062 = vsel %vm2061, %v2057, %v2030
        %v2063 = vsel %vm2061, %v2058, %v2032
        %v2064 = vsel %vm2061, %v2059, %v2034
        %v2065 = vsel %vm2061, %v2060, %v2036
        %vm2066 = vcmask 785408
        %v2067 = vsel %vm2066, %v2062, %v2046
        %v2068 = vsel %vm2066, %v2063, %v2048
        %v2069 = vsel %vm2066, %v2064, %v2050
        %v2070 = vsel %vm2066, %v2065, %v2052
        %v2071 = vpack.c.bf16 %v2068, %v2067
        %v2072 = vpack.c.bf16 %v2070, %v2069
        %v2074 = vlaneseq
        %v2075 = vshrl.u32 %v2074, 7
        %v2076 = vsub.s32 0, %v2075
        %v2077 = vrot.slane %v842, %v2076
        %v2095 = vunpack.c.l.b16 %v826
        %v2096 = vunpack.c.l.b16 %v827
        %v2097 = vunpack.c.l.b16 %v828
        %v2098 = vunpack.c.l.b16 %v829
        %v2099 = vunpack.c.l.b16 %v830
        %v2100 = vunpack.c.l.b16 %v831
        %v2101 = vunpack.c.l.b16 %v832
        %v2102 = vunpack.c.l.b16 %v833
        %v2103 = vunpack.c.l.b16 %v834
        %v2104 = vunpack.c.l.b16 %v835
        %v2105 = vunpack.c.l.b16 %v836
        %v2106 = vunpack.c.l.b16 %v837
        %v2107 = vunpack.c.l.b16 %v838
        %v2108 = vunpack.c.l.b16 %v839
        %v2109 = vunpack.c.l.b16 %v840
        %v2110 = vunpack.c.l.b16 %v841
        %v2111 = vpack.c.b16 %v2096, %v2095
        %v2112 = vpack.c.b16 %v2098, %v2097
        %v2113 = vpack.c.b16 %v2100, %v2099
        %v2114 = vpack.c.b16 %v2102, %v2101
        %v2115 = vpack.c.b16 %v2104, %v2103
        %v2116 = vpack.c.b16 %v2106, %v2105
        %v2117 = vpack.c.b16 %v2108, %v2107
        %v2118 = vpack.c.b16 %v2110, %v2109
        %2127 = vmatprep.subr.bf16.mxu0 0
        %2128 = vmatpush1.bf16.msra.mxu0 %v2118
        %2129 = vmatprep.subr.bf16.mxu0 0
        %2130 = vmatpush1.bf16.msra.mxu0 %v2117
        %2131 = vmatprep.subr.bf16.mxu0 0
        %2132 = vmatpush1.bf16.msra.mxu0 %v2116
        %2133 = vmatprep.subr.bf16.mxu0 0
        %2134 = vmatpush1.bf16.msra.mxu0 %v2115
        %2135 = vmatprep.subr.bf16.mxu0 0
        %2136 = vmatpush1.bf16.msra.mxu0 %v2114
        %2137 = vmatprep.subr.bf16.mxu0 0
        %2138 = vmatpush1.bf16.msra.mxu0 %v2113
        %2139 = vmatprep.subr.bf16.mxu0 0
        %2140 = vmatpush1.bf16.msra.mxu0 %v2112
        %2141 = vmatprep.subr.bf16.mxu0 0
        %2142 = vmatpush1.bf16.msra.mxu0 %v2111
        %2143 = vmatprep.subr.bf16.mxu0 0
        %2144 = vmatpush2.bf16.msra.mxu0 0
        %2145 = vmatprep.subr.bf16.mxu0 0
        %2146 = vmatpush2.bf16.msra.mxu0 0
        %2147 = vmatprep.subr.bf16.mxu0 0
        %2148 = vmatpush2.bf16.msra.mxu0 0
        %2149 = vmatprep.subr.bf16.mxu0 0
        %2150 = vmatpush2.bf16.msra.mxu0 0
        %2151 = vmatprep.subr.bf16.mxu0 0
        %2152 = vmatpush2.bf16.msra.mxu0 0
        %2153 = vmatprep.subr.bf16.mxu0 0
        %2154 = vmatpush2.bf16.msra.mxu0 0
        %2155 = vmatprep.subr.bf16.mxu0 0
        %2156 = vmatpush2.bf16.msra.mxu0 0
        %2157 = vmatprep.subr.bf16.mxu0 0
        %2158 = vmatpush2.bf16.msra.mxu0 0
        %2159 = vmatprep.mubr.bf16.mxu0 0
        %2160 = vmatmul.mubr.bf16.gmra.mxu0 %v2071
        %v2161 = vpop.f32.mrf.mxu0
        %v2162 = vadd.f32 %v2077, %v2161
        %v2163 = vpop.f32.mrf.mxu0
        %v2164 = vpop.f32.mrf.mxu0
        %v2165 = vadd.f32 %v2077, %v2164
        %v2166 = vpop.f32.mrf.mxu0
        %2167 = vmatprep.mubr.bf16.mxu0 0
        %2168 = vmatmul.mubr.bf16.gmra.mxu0 %v2072
        %v2169 = vpop.f32.mrf.mxu0
        %v2170 = vadd.f32 %v2077, %v2169
        %v2171 = vpop.f32.mrf.mxu0
        %v2172 = vpop.f32.mrf.mxu0
        %v2173 = vadd.f32 %v2077, %v2172
        %v2174 = vpop.f32.mrf.mxu0
        %2175 = vdwg.mxu0
        %v2176 = vadd.f32 %v770, %v2162
        %v2177 = vadd.f32 %v771, %v2165
        %v2178 = vadd.f32 %v772, %v2170
        %v2179 = vadd.f32 %v773, %v2173
        %2180 = vadd.xlane.f32.xlu0 %v2176
        %v2181 = vpop.xlane.xlu0 %2180
        %2182 = vadd.xlane.f32.xlu0 %v2177
        %v2183 = vpop.xlane.xlu0 %2182
        %2184 = vadd.xlane.f32.xlu0 %v2178
        %v2185 = vpop.xlane.xlu0 %2184
        %vm2186 = vcmask 1041408
        %v2187 = vsel %vm2186, %v2179, 0.0
        %2188 = vadd.xlane.f32.xlu0 %v2187
        %v2189 = vpop.xlane.xlu0 %2188
        %v2190 = vrcp.pop 128.0
        %v2191 = vmul.f32 %v2181, %v2190
        %v2192 = vmul.f32 %v2183, %v2190
        %v2193 = vmul.f32 %v2185, %v2190
        %v2194 = vmul.f32 %v2189, %v2190
        %v2195 = vsub.f32 %v2176, %v2191
        %v2196 = vsub.f32 %v2177, %v2192
        %v2197 = vsub.f32 %v2178, %v2193
        %v2198 = vsub.f32 %v2179, %v2194
        %v2199 = vmul.f32 %v2195, %v2195
        %v2200 = vmul.f32 %v2196, %v2196
        %v2201 = vmul.f32 %v2197, %v2197
        %v2202 = vmul.f32 %v2198, %v2198
        %2203 = vadd.xlane.f32.xlu0 %v2199
        %v2204 = vpop.xlane.xlu0 %2203
        %2205 = vadd.xlane.f32.xlu0 %v2200
        %v2206 = vpop.xlane.xlu0 %2205
        %2207 = vadd.xlane.f32.xlu0 %v2201
        %v2208 = vpop.xlane.xlu0 %2207
        %v2209 = vsel %vm2186, %v2202, 0.0
        %2210 = vadd.xlane.f32.xlu0 %v2209
        %v2211 = vpop.xlane.xlu0 %2210
        %v2212 = vmul.f32 %v2204, %v2190
        %v2213 = vmul.f32 %v2206, %v2190
        %v2214 = vmul.f32 %v2208, %v2190
        %v2215 = vmul.f32 %v2211, %v2190
        %v2216 = vadd.f32 %v2212, 1e-05
        %v2217 = vadd.f32 %v2213, 1e-05
        %v2218 = vadd.f32 %v2214, 1e-05
        %v2219 = vadd.f32 %v2215, 1e-05
        %v2220 = vrsqrt.pop %v2216
        %v2221 = vrsqrt.pop %v2217
        %v2222 = vrsqrt.pop %v2218
        %v2223 = vrsqrt.pop %v2219
        %v2224 = vmul.f32 %v2195, %v2220
        %v2225 = vmul.f32 %v2196, %v2221
        %v2226 = vmul.f32 %v2197, %v2222
        %v2227 = vmul.f32 %v2198, %v2223
        %v2229 = vlaneseq
        %v2230 = vshrl.u32 %v2229, 7
        %v2231 = vsub.s32 0, %v2230
        %v2232 = vrot.slane %v941, %v2231
        %v2234 = vmul.f32 %v2224, %v2232
        %v2235 = vmul.f32 %v2225, %v2232
        %v2236 = vmul.f32 %v2226, %v2232
        %v2237 = vmul.f32 %v2227, %v2232
        %v2239 = vlaneseq
        %v2240 = vshrl.u32 %v2239, 7
        %v2241 = vsub.s32 0, %v2240
        %v2242 = vrot.slane %v942, %v2241
        %v2244 = vadd.f32 %v2234, %v2242
        %v2245 = vadd.f32 %v2235, %v2242
        %v2246 = vadd.f32 %v2236, %v2242
        %v2247 = vadd.f32 %v2237, %v2242
        %v2248 = vpack.c.bf16 %v2245, %v2244
        %v2249 = vpack.c.bf16 %v2247, %v2246
        %v2251 = vlaneseq
        %v2252 = vshrl.u32 %v2251, 7
        %v2253 = vsub.s32 0, %v2252
        %v2254 = vrot.slane %v875, %v2253
        %v2255 = vlaneseq
        %v2256 = vshrl.u32 %v2255, 7
        %v2257 = vsub.s32 1, %v2256
        %v2258 = vrot.slane %v875, %v2257
        %v2259 = vlaneseq
        %v2260 = vshrl.u32 %v2259, 7
        %v2261 = vsub.s32 2, %v2260
        %v2262 = vrot.slane %v875, %v2261
        %v2263 = vlaneseq
        %v2264 = vshrl.u32 %v2263, 7
        %v2265 = vsub.s32 3, %v2264
        %v2266 = vrot.slane %v875, %v2265
        %v2303 = vunpack.c.l.b16 %v843
        %v2304 = vunpack.c.h.b16 %v843
        %v2305 = vunpack.c.l.b16 %v844
        %v2306 = vunpack.c.h.b16 %v844
        %v2307 = vunpack.c.l.b16 %v845
        %v2308 = vunpack.c.h.b16 %v845
        %v2309 = vunpack.c.l.b16 %v846
        %v2310 = vunpack.c.h.b16 %v846
        %v2311 = vunpack.c.l.b16 %v847
        %v2312 = vunpack.c.h.b16 %v847
        %v2313 = vunpack.c.l.b16 %v848
        %v2314 = vunpack.c.h.b16 %v848
        %v2315 = vunpack.c.l.b16 %v849
        %v2316 = vunpack.c.h.b16 %v849
        %v2317 = vunpack.c.l.b16 %v850
        %v2318 = vunpack.c.h.b16 %v850
        %v2319 = vunpack.c.l.b16 %v851
        %v2320 = vunpack.c.h.b16 %v851
        %v2321 = vunpack.c.l.b16 %v852
        %v2322 = vunpack.c.h.b16 %v852
        %v2323 = vunpack.c.l.b16 %v853
        %v2324 = vunpack.c.h.b16 %v853
        %v2325 = vunpack.c.l.b16 %v854
        %v2326 = vunpack.c.h.b16 %v854
        %v2327 = vunpack.c.l.b16 %v855
        %v2328 = vunpack.c.h.b16 %v855
        %v2329 = vunpack.c.l.b16 %v856
        %v2330 = vunpack.c.h.b16 %v856
        %v2331 = vunpack.c.l.b16 %v857
        %v2332 = vunpack.c.h.b16 %v857
        %v2333 = vunpack.c.l.b16 %v858
        %v2334 = vunpack.c.h.b16 %v858
        %v2335 = vunpack.c.l.b16 %v859
        %v2336 = vunpack.c.h.b16 %v859
        %v2337 = vunpack.c.l.b16 %v860
        %v2338 = vunpack.c.h.b16 %v860
        %v2339 = vunpack.c.l.b16 %v861
        %v2340 = vunpack.c.h.b16 %v861
        %v2341 = vunpack.c.l.b16 %v862
        %v2342 = vunpack.c.h.b16 %v862
        %v2343 = vunpack.c.l.b16 %v863
        %v2344 = vunpack.c.h.b16 %v863
        %v2345 = vunpack.c.l.b16 %v864
        %v2346 = vunpack.c.h.b16 %v864
        %v2347 = vunpack.c.l.b16 %v865
        %v2348 = vunpack.c.h.b16 %v865
        %v2349 = vunpack.c.l.b16 %v866
        %v2350 = vunpack.c.h.b16 %v866
        %v2351 = vunpack.c.l.b16 %v867
        %v2352 = vunpack.c.h.b16 %v867
        %v2353 = vunpack.c.l.b16 %v868
        %v2354 = vunpack.c.h.b16 %v868
        %v2355 = vunpack.c.l.b16 %v869
        %v2356 = vunpack.c.h.b16 %v869
        %v2357 = vunpack.c.l.b16 %v870
        %v2358 = vunpack.c.h.b16 %v870
        %v2359 = vunpack.c.l.b16 %v871
        %v2360 = vunpack.c.h.b16 %v871
        %v2361 = vunpack.c.l.b16 %v872
        %v2362 = vunpack.c.h.b16 %v872
        %v2363 = vunpack.c.l.b16 %v873
        %v2364 = vunpack.c.h.b16 %v873
        %v2365 = vunpack.c.l.b16 %v874
        %v2366 = vunpack.c.h.b16 %v874
        %v2367 = vpack.c.b16 %v2307, %v2303
        %v2368 = vpack.c.b16 %v2308, %v2304
        %v2369 = vpack.c.b16 %v2309, %v2305
        %v2370 = vpack.c.b16 %v2310, %v2306
        %v2371 = vpack.c.b16 %v2315, %v2311
        %v2372 = vpack.c.b16 %v2316, %v2312
        %v2373 = vpack.c.b16 %v2317, %v2313
        %v2374 = vpack.c.b16 %v2318, %v2314
        %v2375 = vpack.c.b16 %v2323, %v2319
        %v2376 = vpack.c.b16 %v2324, %v2320
        %v2377 = vpack.c.b16 %v2325, %v2321
        %v2378 = vpack.c.b16 %v2326, %v2322
        %v2379 = vpack.c.b16 %v2331, %v2327
        %v2380 = vpack.c.b16 %v2332, %v2328
        %v2381 = vpack.c.b16 %v2333, %v2329
        %v2382 = vpack.c.b16 %v2334, %v2330
        %v2383 = vpack.c.b16 %v2339, %v2335
        %v2384 = vpack.c.b16 %v2340, %v2336
        %v2385 = vpack.c.b16 %v2341, %v2337
        %v2386 = vpack.c.b16 %v2342, %v2338
        %v2387 = vpack.c.b16 %v2347, %v2343
        %v2388 = vpack.c.b16 %v2348, %v2344
        %v2389 = vpack.c.b16 %v2349, %v2345
        %v2390 = vpack.c.b16 %v2350, %v2346
        %v2391 = vpack.c.b16 %v2355, %v2351
        %v2392 = vpack.c.b16 %v2356, %v2352
        %v2393 = vpack.c.b16 %v2357, %v2353
        %v2394 = vpack.c.b16 %v2358, %v2354
        %v2395 = vpack.c.b16 %v2363, %v2359
        %v2396 = vpack.c.b16 %v2364, %v2360
        %v2397 = vpack.c.b16 %v2365, %v2361
        %v2398 = vpack.c.b16 %v2366, %v2362
        %2431 = vmatprep.subr.bf16.mxu0 %v2396
        %2432 = vmatpush1.bf16.msra.mxu0 %v2395
        %2433 = vmatprep.subr.bf16.mxu0 %v2392
        %2434 = vmatpush1.bf16.msra.mxu0 %v2391
        %2435 = vmatprep.subr.bf16.mxu0 %v2388
        %2436 = vmatpush1.bf16.msra.mxu0 %v2387
        %2437 = vmatprep.subr.bf16.mxu0 %v2384
        %2438 = vmatpush1.bf16.msra.mxu0 %v2383
        %2439 = vmatprep.subr.bf16.mxu0 %v2380
        %2440 = vmatpush1.bf16.msra.mxu0 %v2379
        %2441 = vmatprep.subr.bf16.mxu0 %v2376
        %2442 = vmatpush1.bf16.msra.mxu0 %v2375
        %2443 = vmatprep.subr.bf16.mxu0 %v2372
        %2444 = vmatpush1.bf16.msra.mxu0 %v2371
        %2445 = vmatprep.subr.bf16.mxu0 %v2368
        %2446 = vmatpush1.bf16.msra.mxu0 %v2367
        %2447 = vmatprep.subr.bf16.mxu0 0
        %2448 = vmatpush2.bf16.msra.mxu0 0
        %2449 = vmatprep.subr.bf16.mxu0 0
        %2450 = vmatpush2.bf16.msra.mxu0 0
        %2451 = vmatprep.subr.bf16.mxu0 0
        %2452 = vmatpush2.bf16.msra.mxu0 0
        %2453 = vmatprep.subr.bf16.mxu0 0
        %2454 = vmatpush2.bf16.msra.mxu0 0
        %2455 = vmatprep.subr.bf16.mxu0 0
        %2456 = vmatpush2.bf16.msra.mxu0 0
        %2457 = vmatprep.subr.bf16.mxu0 0
        %2458 = vmatpush2.bf16.msra.mxu0 0
        %2459 = vmatprep.subr.bf16.mxu0 0
        %2460 = vmatpush2.bf16.msra.mxu0 0
        %2461 = vmatprep.subr.bf16.mxu0 0
        %2462 = vmatpush2.bf16.msra.mxu0 0
        %2463 = vmatprep.mubr.bf16.mxu0 0
        %2464 = vmatmul.mubr.bf16.gmra.mxu0 %v2248
        %v2465 = vpop.f32.mrf.mxu0
        %v2466 = vadd.f32 %v2254, %v2465
        %v2467 = vpop.f32.mrf.mxu0
        %v2468 = vadd.f32 %v2258, %v2467
        %v2469 = vpop.f32.mrf.mxu0
        %v2470 = vadd.f32 %v2254, %v2469
        %v2471 = vpop.f32.mrf.mxu0
        %v2472 = vadd.f32 %v2258, %v2471
        %2473 = vmatprep.mubr.bf16.mxu0 0
        %2474 = vmatmul.mubr.bf16.gmra.mxu0 %v2249
        %v2475 = vpop.f32.mrf.mxu0
        %v2476 = vadd.f32 %v2254, %v2475
        %v2477 = vpop.f32.mrf.mxu0
        %v2478 = vadd.f32 %v2258, %v2477
        %v2479 = vpop.f32.mrf.mxu0
        %v2480 = vadd.f32 %v2254, %v2479
        %v2481 = vpop.f32.mrf.mxu0
        %v2482 = vadd.f32 %v2258, %v2481
        %2483 = vdwg.mxu0
        %2484 = vmatprep.subr.bf16.mxu0 %v2398
        %2485 = vmatpush1.bf16.msra.mxu0 %v2397
        %2486 = vmatprep.subr.bf16.mxu0 %v2394
        %2487 = vmatpush1.bf16.msra.mxu0 %v2393
        %2488 = vmatprep.subr.bf16.mxu0 %v2390
        %2489 = vmatpush1.bf16.msra.mxu0 %v2389
        %2490 = vmatprep.subr.bf16.mxu0 %v2386
        %2491 = vmatpush1.bf16.msra.mxu0 %v2385
        %2492 = vmatprep.subr.bf16.mxu0 %v2382
        %2493 = vmatpush1.bf16.msra.mxu0 %v2381
        %2494 = vmatprep.subr.bf16.mxu0 %v2378
        %2495 = vmatpush1.bf16.msra.mxu0 %v2377
        %2496 = vmatprep.subr.bf16.mxu0 %v2374
        %2497 = vmatpush1.bf16.msra.mxu0 %v2373
        %2498 = vmatprep.subr.bf16.mxu0 %v2370
        %2499 = vmatpush1.bf16.msra.mxu0 %v2369
        %2500 = vmatprep.subr.bf16.mxu0 0
        %2501 = vmatpush2.bf16.msra.mxu0 0
        %2502 = vmatprep.subr.bf16.mxu0 0
        %2503 = vmatpush2.bf16.msra.mxu0 0
        %2504 = vmatprep.subr.bf16.mxu0 0
        %2505 = vmatpush2.bf16.msra.mxu0 0
        %2506 = vmatprep.subr.bf16.mxu0 0
        %2507 = vmatpush2.bf16.msra.mxu0 0
        %2508 = vmatprep.subr.bf16.mxu0 0
        %2509 = vmatpush2.bf16.msra.mxu0 0
        %2510 = vmatprep.subr.bf16.mxu0 0
        %2511 = vmatpush2.bf16.msra.mxu0 0
        %2512 = vmatprep.subr.bf16.mxu0 0
        %2513 = vmatpush2.bf16.msra.mxu0 0
        %2514 = vmatprep.subr.bf16.mxu0 0
        %2515 = vmatpush2.bf16.msra.mxu0 0
        %2516 = vmatprep.mubr.bf16.mxu0 0
        %2517 = vmatmul.mubr.bf16.gmra.mxu0 %v2248
        %v2518 = vpop.f32.mrf.mxu0
        %v2519 = vadd.f32 %v2262, %v2518
        %v2520 = vpop.f32.mrf.mxu0
        %v2521 = vadd.f32 %v2266, %v2520
        %v2522 = vpop.f32.mrf.mxu0
        %v2523 = vadd.f32 %v2262, %v2522
        %v2524 = vpop.f32.mrf.mxu0
        %v2525 = vadd.f32 %v2266, %v2524
        %2526 = vmatprep.mubr.bf16.mxu0 0
        %2527 = vmatmul.mubr.bf16.gmra.mxu0 %v2249
        %v2528 = vpop.f32.mrf.mxu0
        %v2529 = vadd.f32 %v2262, %v2528
        %v2530 = vpop.f32.mrf.mxu0
        %v2531 = vadd.f32 %v2266, %v2530
        %v2532 = vpop.f32.mrf.mxu0
        %v2533 = vadd.f32 %v2262, %v2532
        %v2534 = vpop.f32.mrf.mxu0
        %v2535 = vadd.f32 %v2266, %v2534
        %2536 = vdwg.mxu0
        %v2537 = vmul.f32 %v2466, %v2466
        %v2538 = vmul.f32 %v2468, %v2468
        %v2539 = vmul.f32 %v2519, %v2519
        %v2540 = vmul.f32 %v2521, %v2521
        %v2541 = vmul.f32 %v2470, %v2470
        %v2542 = vmul.f32 %v2472, %v2472
        %v2543 = vmul.f32 %v2523, %v2523
        %v2544 = vmul.f32 %v2525, %v2525
        %v2545 = vmul.f32 %v2476, %v2476
        %v2546 = vmul.f32 %v2478, %v2478
        %v2547 = vmul.f32 %v2529, %v2529
        %v2548 = vmul.f32 %v2531, %v2531
        %v2549 = vmul.f32 %v2480, %v2480
        %v2550 = vmul.f32 %v2482, %v2482
        %v2551 = vmul.f32 %v2533, %v2533
        %v2552 = vmul.f32 %v2535, %v2535
        %v2553 = vmul.f32 %v2466, %v2537
        %v2554 = vmul.f32 %v2468, %v2538
        %v2555 = vmul.f32 %v2519, %v2539
        %v2556 = vmul.f32 %v2521, %v2540
        %v2557 = vmul.f32 %v2470, %v2541
        %v2558 = vmul.f32 %v2472, %v2542
        %v2559 = vmul.f32 %v2523, %v2543
        %v2560 = vmul.f32 %v2525, %v2544
        %v2561 = vmul.f32 %v2476, %v2545
        %v2562 = vmul.f32 %v2478, %v2546
        %v2563 = vmul.f32 %v2529, %v2547
        %v2564 = vmul.f32 %v2531, %v2548
        %v2565 = vmul.f32 %v2480, %v2549
        %v2566 = vmul.f32 %v2482, %v2550
        %v2567 = vmul.f32 %v2533, %v2551
        %v2568 = vmul.f32 %v2535, %v2552
        %v2569 = vmul.f32 %v2553, 0.044715
        %v2570 = vmul.f32 %v2554, 0.044715
        %v2571 = vmul.f32 %v2555, 0.044715
        %v2572 = vmul.f32 %v2556, 0.044715
        %v2573 = vmul.f32 %v2557, 0.044715
        %v2574 = vmul.f32 %v2558, 0.044715
        %v2575 = vmul.f32 %v2559, 0.044715
        %v2576 = vmul.f32 %v2560, 0.044715
        %v2577 = vmul.f32 %v2561, 0.044715
        %v2578 = vmul.f32 %v2562, 0.044715
        %v2579 = vmul.f32 %v2563, 0.044715
        %v2580 = vmul.f32 %v2564, 0.044715
        %v2581 = vmul.f32 %v2565, 0.044715
        %v2582 = vmul.f32 %v2566, 0.044715
        %v2583 = vmul.f32 %v2567, 0.044715
        %v2584 = vmul.f32 %v2568, 0.044715
        %v2585 = vadd.f32 %v2466, %v2569
        %v2586 = vadd.f32 %v2468, %v2570
        %v2587 = vadd.f32 %v2519, %v2571
        %v2588 = vadd.f32 %v2521, %v2572
        %v2589 = vadd.f32 %v2470, %v2573
        %v2590 = vadd.f32 %v2472, %v2574
        %v2591 = vadd.f32 %v2523, %v2575
        %v2592 = vadd.f32 %v2525, %v2576
        %v2593 = vadd.f32 %v2476, %v2577
        %v2594 = vadd.f32 %v2478, %v2578
        %v2595 = vadd.f32 %v2529, %v2579
        %v2596 = vadd.f32 %v2531, %v2580
        %v2597 = vadd.f32 %v2480, %v2581
        %v2598 = vadd.f32 %v2482, %v2582
        %v2599 = vadd.f32 %v2533, %v2583
        %v2600 = vadd.f32 %v2535, %v2584
        %v2601 = vmul.f32 %v2585, 0.7978846
        %v2602 = vmul.f32 %v2586, 0.7978846
        %v2603 = vmul.f32 %v2587, 0.7978846
        %v2604 = vmul.f32 %v2588, 0.7978846
        %v2605 = vmul.f32 %v2589, 0.7978846
        %v2606 = vmul.f32 %v2590, 0.7978846
        %v2607 = vmul.f32 %v2591, 0.7978846
        %v2608 = vmul.f32 %v2592, 0.7978846
        %v2609 = vmul.f32 %v2593, 0.7978846
        %v2610 = vmul.f32 %v2594, 0.7978846
        %v2611 = vmul.f32 %v2595, 0.7978846
        %v2612 = vmul.f32 %v2596, 0.7978846
        %v2613 = vmul.f32 %v2597, 0.7978846
        %v2614 = vmul.f32 %v2598, 0.7978846
        %v2615 = vmul.f32 %v2599, 0.7978846
        %v2616 = vmul.f32 %v2600, 0.7978846
        %v2617 = vtanh.pop %v2601
        %v2618 = vtanh.pop %v2602
        %v2619 = vtanh.pop %v2603
        %v2620 = vtanh.pop %v2604
        %v2621 = vtanh.pop %v2605
        %v2622 = vtanh.pop %v2606
        %v2623 = vtanh.pop %v2607
        %v2624 = vtanh.pop %v2608
        %v2625 = vtanh.pop %v2609
        %v2626 = vtanh.pop %v2610
        %v2627 = vtanh.pop %v2611
        %v2628 = vtanh.pop %v2612
        %v2629 = vtanh.pop %v2613
        %v2630 = vtanh.pop %v2614
        %v2631 = vtanh.pop %v2615
        %v2632 = vtanh.pop %v2616
        %v2633 = vadd.f32 %v2617, 1.0
        %v2634 = vadd.f32 %v2618, 1.0
        %v2635 = vadd.f32 %v2619, 1.0
        %v2636 = vadd.f32 %v2620, 1.0
        %v2637 = vadd.f32 %v2621, 1.0
        %v2638 = vadd.f32 %v2622, 1.0
        %v2639 = vadd.f32 %v2623, 1.0
        %v2640 = vadd.f32 %v2624, 1.0
        %v2641 = vadd.f32 %v2625, 1.0
        %v2642 = vadd.f32 %v2626, 1.0
        %v2643 = vadd.f32 %v2627, 1.0
        %v2644 = vadd.f32 %v2628, 1.0
        %v2645 = vadd.f32 %v2629, 1.0
        %v2646 = vadd.f32 %v2630, 1.0
        %v2647 = vadd.f32 %v2631, 1.0
        %v2648 = vadd.f32 %v2632, 1.0
        %v2649 = vmul.f32 %v2633, 0.5
        %v2650 = vmul.f32 %v2634, 0.5
        %v2651 = vmul.f32 %v2635, 0.5
        %v2652 = vmul.f32 %v2636, 0.5
        %v2653 = vmul.f32 %v2637, 0.5
        %v2654 = vmul.f32 %v2638, 0.5
        %v2655 = vmul.f32 %v2639, 0.5
        %v2656 = vmul.f32 %v2640, 0.5
        %v2657 = vmul.f32 %v2641, 0.5
        %v2658 = vmul.f32 %v2642, 0.5
        %v2659 = vmul.f32 %v2643, 0.5
        %v2660 = vmul.f32 %v2644, 0.5
        %v2661 = vmul.f32 %v2645, 0.5
        %v2662 = vmul.f32 %v2646, 0.5
        %v2663 = vmul.f32 %v2647, 0.5
        %v2664 = vmul.f32 %v2648, 0.5
        %v2665 = vmul.f32 %v2466, %v2649
        %v2666 = vmul.f32 %v2468, %v2650
        %v2667 = vmul.f32 %v2519, %v2651
        %v2668 = vmul.f32 %v2521, %v2652
        %v2669 = vmul.f32 %v2470, %v2653
        %v2670 = vmul.f32 %v2472, %v2654
        %v2671 = vmul.f32 %v2523, %v2655
        %v2672 = vmul.f32 %v2525, %v2656
        %v2673 = vmul.f32 %v2476, %v2657
        %v2674 = vmul.f32 %v2478, %v2658
        %v2675 = vmul.f32 %v2529, %v2659
        %v2676 = vmul.f32 %v2531, %v2660
        %v2677 = vmul.f32 %v2480, %v2661
        %v2678 = vmul.f32 %v2482, %v2662
        %v2679 = vmul.f32 %v2533, %v2663
        %v2680 = vmul.f32 %v2535, %v2664
        %v2681 = vpack.c.bf16 %v2669, %v2665
        %v2682 = vpack.c.bf16 %v2670, %v2666
        %v2683 = vpack.c.bf16 %v2671, %v2667
        %v2684 = vpack.c.bf16 %v2672, %v2668
        %v2685 = vpack.c.bf16 %v2677, %v2673
        %v2686 = vpack.c.bf16 %v2678, %v2674
        %v2687 = vpack.c.bf16 %v2679, %v2675
        %v2688 = vpack.c.bf16 %v2680, %v2676
        %v2690 = vlaneseq
        %v2691 = vshrl.u32 %v2690, 7
        %v2692 = vsub.s32 0, %v2691
        %v2693 = vrot.slane %v940, %v2692
        %v2759 = vunpack.c.l.b16 %v876
        %v2760 = vunpack.c.l.b16 %v877
        %v2761 = vunpack.c.l.b16 %v878
        %v2762 = vunpack.c.l.b16 %v879
        %v2763 = vunpack.c.l.b16 %v880
        %v2764 = vunpack.c.l.b16 %v881
        %v2765 = vunpack.c.l.b16 %v882
        %v2766 = vunpack.c.l.b16 %v883
        %v2767 = vunpack.c.l.b16 %v884
        %v2768 = vunpack.c.l.b16 %v885
        %v2769 = vunpack.c.l.b16 %v886
        %v2770 = vunpack.c.l.b16 %v887
        %v2771 = vunpack.c.l.b16 %v888
        %v2772 = vunpack.c.l.b16 %v889
        %v2773 = vunpack.c.l.b16 %v890
        %v2774 = vunpack.c.l.b16 %v891
        %v2775 = vunpack.c.l.b16 %v892
        %v2776 = vunpack.c.l.b16 %v893
        %v2777 = vunpack.c.l.b16 %v894
        %v2778 = vunpack.c.l.b16 %v895
        %v2779 = vunpack.c.l.b16 %v896
        %v2780 = vunpack.c.l.b16 %v897
        %v2781 = vunpack.c.l.b16 %v898
        %v2782 = vunpack.c.l.b16 %v899
        %v2783 = vunpack.c.l.b16 %v900
        %v2784 = vunpack.c.l.b16 %v901
        %v2785 = vunpack.c.l.b16 %v902
        %v2786 = vunpack.c.l.b16 %v903
        %v2787 = vunpack.c.l.b16 %v904
        %v2788 = vunpack.c.l.b16 %v905
        %v2789 = vunpack.c.l.b16 %v906
        %v2790 = vunpack.c.l.b16 %v907
        %v2791 = vunpack.c.l.b16 %v908
        %v2792 = vunpack.c.l.b16 %v909
        %v2793 = vunpack.c.l.b16 %v910
        %v2794 = vunpack.c.l.b16 %v911
        %v2795 = vunpack.c.l.b16 %v912
        %v2796 = vunpack.c.l.b16 %v913
        %v2797 = vunpack.c.l.b16 %v914
        %v2798 = vunpack.c.l.b16 %v915
        %v2799 = vunpack.c.l.b16 %v916
        %v2800 = vunpack.c.l.b16 %v917
        %v2801 = vunpack.c.l.b16 %v918
        %v2802 = vunpack.c.l.b16 %v919
        %v2803 = vunpack.c.l.b16 %v920
        %v2804 = vunpack.c.l.b16 %v921
        %v2805 = vunpack.c.l.b16 %v922
        %v2806 = vunpack.c.l.b16 %v923
        %v2807 = vunpack.c.l.b16 %v924
        %v2808 = vunpack.c.l.b16 %v925
        %v2809 = vunpack.c.l.b16 %v926
        %v2810 = vunpack.c.l.b16 %v927
        %v2811 = vunpack.c.l.b16 %v928
        %v2812 = vunpack.c.l.b16 %v929
        %v2813 = vunpack.c.l.b16 %v930
        %v2814 = vunpack.c.l.b16 %v931
        %v2815 = vunpack.c.l.b16 %v932
        %v2816 = vunpack.c.l.b16 %v933
        %v2817 = vunpack.c.l.b16 %v934
        %v2818 = vunpack.c.l.b16 %v935
        %v2819 = vunpack.c.l.b16 %v936
        %v2820 = vunpack.c.l.b16 %v937
        %v2821 = vunpack.c.l.b16 %v938
        %v2822 = vunpack.c.l.b16 %v939
        %v2823 = vpack.c.b16 %v2760, %v2759
        %v2824 = vpack.c.b16 %v2762, %v2761
        %v2825 = vpack.c.b16 %v2764, %v2763
        %v2826 = vpack.c.b16 %v2766, %v2765
        %v2827 = vpack.c.b16 %v2768, %v2767
        %v2828 = vpack.c.b16 %v2770, %v2769
        %v2829 = vpack.c.b16 %v2772, %v2771
        %v2830 = vpack.c.b16 %v2774, %v2773
        %v2831 = vpack.c.b16 %v2776, %v2775
        %v2832 = vpack.c.b16 %v2778, %v2777
        %v2833 = vpack.c.b16 %v2780, %v2779
        %v2834 = vpack.c.b16 %v2782, %v2781
        %v2835 = vpack.c.b16 %v2784, %v2783
        %v2836 = vpack.c.b16 %v2786, %v2785
        %v2837 = vpack.c.b16 %v2788, %v2787
        %v2838 = vpack.c.b16 %v2790, %v2789
        %v2839 = vpack.c.b16 %v2792, %v2791
        %v2840 = vpack.c.b16 %v2794, %v2793
        %v2841 = vpack.c.b16 %v2796, %v2795
        %v2842 = vpack.c.b16 %v2798, %v2797
        %v2843 = vpack.c.b16 %v2800, %v2799
        %v2844 = vpack.c.b16 %v2802, %v2801
        %v2845 = vpack.c.b16 %v2804, %v2803
        %v2846 = vpack.c.b16 %v2806, %v2805
        %v2847 = vpack.c.b16 %v2808, %v2807
        %v2848 = vpack.c.b16 %v2810, %v2809
        %v2849 = vpack.c.b16 %v2812, %v2811
        %v2850 = vpack.c.b16 %v2814, %v2813
        %v2851 = vpack.c.b16 %v2816, %v2815
        %v2852 = vpack.c.b16 %v2818, %v2817
        %v2853 = vpack.c.b16 %v2820, %v2819
        %v2854 = vpack.c.b16 %v2822, %v2821
        %2887 = vmatprep.subr.bf16.mxu0 0
        %2888 = vmatpush1.bf16.msra.mxu0 %v2830
        %2889 = vmatprep.subr.bf16.mxu0 0
        %2890 = vmatpush1.bf16.msra.mxu0 %v2829
        %2891 = vmatprep.subr.bf16.mxu0 0
        %2892 = vmatpush1.bf16.msra.mxu0 %v2828
        %2893 = vmatprep.subr.bf16.mxu0 0
        %2894 = vmatpush1.bf16.msra.mxu0 %v2827
        %2895 = vmatprep.subr.bf16.mxu0 0
        %2896 = vmatpush1.bf16.msra.mxu0 %v2826
        %2897 = vmatprep.subr.bf16.mxu0 0
        %2898 = vmatpush1.bf16.msra.mxu0 %v2825
        %2899 = vmatprep.subr.bf16.mxu0 0
        %2900 = vmatpush1.bf16.msra.mxu0 %v2824
        %2901 = vmatprep.subr.bf16.mxu0 0
        %2902 = vmatpush1.bf16.msra.mxu0 %v2823
        %2903 = vmatprep.subr.bf16.mxu0 0
        %2904 = vmatpush2.bf16.msra.mxu0 %v2838
        %2905 = vmatprep.subr.bf16.mxu0 0
        %2906 = vmatpush2.bf16.msra.mxu0 %v2837
        %2907 = vmatprep.subr.bf16.mxu0 0
        %2908 = vmatpush2.bf16.msra.mxu0 %v2836
        %2909 = vmatprep.subr.bf16.mxu0 0
        %2910 = vmatpush2.bf16.msra.mxu0 %v2835
        %2911 = vmatprep.subr.bf16.mxu0 0
        %2912 = vmatpush2.bf16.msra.mxu0 %v2834
        %2913 = vmatprep.subr.bf16.mxu0 0
        %2914 = vmatpush2.bf16.msra.mxu0 %v2833
        %2915 = vmatprep.subr.bf16.mxu0 0
        %2916 = vmatpush2.bf16.msra.mxu0 %v2832
        %2917 = vmatprep.subr.bf16.mxu0 0
        %2918 = vmatpush2.bf16.msra.mxu0 %v2831
        %2919 = vmatprep.mubr.bf16.mxu0 %v2682
        %2920 = vmatmul.mubr.bf16.gmra.mxu0 %v2681
        %v2921 = vpop.f32.mrf.mxu0
        %v2922 = vadd.f32 %v2693, %v2921
        %v2923 = vpop.f32.mrf.mxu0
        %v2924 = vpop.f32.mrf.mxu0
        %v2925 = vadd.f32 %v2693, %v2924
        %v2926 = vpop.f32.mrf.mxu0
        %2927 = vmatprep.mubr.bf16.mxu0 %v2686
        %2928 = vmatmul.mubr.bf16.gmra.mxu0 %v2685
        %v2929 = vpop.f32.mrf.mxu0
        %v2930 = vadd.f32 %v2693, %v2929
        %v2931 = vpop.f32.mrf.mxu0
        %v2932 = vpop.f32.mrf.mxu0
        %v2933 = vadd.f32 %v2693, %v2932
        %v2934 = vpop.f32.mrf.mxu0
        %2935 = vdwg.mxu0
        %2936 = vmatprep.subr.bf16.mxu0 0
        %2937 = vmatpush1.bf16.msra.mxu0 %v2846
        %2938 = vmatprep.subr.bf16.mxu0 0
        %2939 = vmatpush1.bf16.msra.mxu0 %v2845
        %2940 = vmatprep.subr.bf16.mxu0 0
        %2941 = vmatpush1.bf16.msra.mxu0 %v2844
        %2942 = vmatprep.subr.bf16.mxu0 0
        %2943 = vmatpush1.bf16.msra.mxu0 %v2843
        %2944 = vmatprep.subr.bf16.mxu0 0
        %2945 = vmatpush1.bf16.msra.mxu0 %v2842
        %2946 = vmatprep.subr.bf16.mxu0 0
        %2947 = vmatpush1.bf16.msra.mxu0 %v2841
        %2948 = vmatprep.subr.bf16.mxu0 0
        %2949 = vmatpush1.bf16.msra.mxu0 %v2840
        %2950 = vmatprep.subr.bf16.mxu0 0
        %2951 = vmatpush1.bf16.msra.mxu0 %v2839
        %2952 = vmatprep.subr.bf16.mxu0 0
        %2953 = vmatpush2.bf16.msra.mxu0 %v2854
        %2954 = vmatprep.subr.bf16.mxu0 0
        %2955 = vmatpush2.bf16.msra.mxu0 %v2853
        %2956 = vmatprep.subr.bf16.mxu0 0
        %2957 = vmatpush2.bf16.msra.mxu0 %v2852
        %2958 = vmatprep.subr.bf16.mxu0 0
        %2959 = vmatpush2.bf16.msra.mxu0 %v2851
        %2960 = vmatprep.subr.bf16.mxu0 0
        %2961 = vmatpush2.bf16.msra.mxu0 %v2850
        %2962 = vmatprep.subr.bf16.mxu0 0
        %2963 = vmatpush2.bf16.msra.mxu0 %v2849
        %2964 = vmatprep.subr.bf16.mxu0 0
        %2965 = vmatpush2.bf16.msra.mxu0 %v2848
        %2966 = vmatprep.subr.bf16.mxu0 0
        %2967 = vmatpush2.bf16.msra.mxu0 %v2847
        %2968 = vmatprep.mubr.bf16.mxu0 %v2684
        %2969 = vmatmul.mubr.bf16.gmra.mxu0 %v2683
        %v2970 = vpop.f32.mrf.mxu0
        %v2971 = vadd.f32 %v2922, %v2970
        %v2972 = vpop.f32.mrf.mxu0
        %v2973 = vpop.f32.mrf.mxu0
        %v2974 = vadd.f32 %v2925, %v2973
        %v2975 = vpop.f32.mrf.mxu0
        %2976 = vmatprep.mubr.bf16.mxu0 %v2688
        %2977 = vmatmul.mubr.bf16.gmra.mxu0 %v2687
        %v2978 = vpop.f32.mrf.mxu0
        %v2979 = vadd.f32 %v2930, %v2978
        %v2980 = vpop.f32.mrf.mxu0
        %v2981 = vpop.f32.mrf.mxu0
        %v2982 = vadd.f32 %v2933, %v2981
        %v2983 = vpop.f32.mrf.mxu0
        %2984 = vdwg.mxu0
        %v2985 = vadd.f32 %v2244, %v2971
        %v2986 = vadd.f32 %v2245, %v2974
        %v2987 = vadd.f32 %v2246, %v2979
        %v2988 = vadd.f32 %v2247, %v2982
        %2989 = vadd.xlane.f32.xlu0 %v2985
        %v2990 = vpop.xlane.xlu0 %2989
        %2991 = vadd.xlane.f32.xlu0 %v2986
        %v2992 = vpop.xlane.xlu0 %2991
        %2993 = vadd.xlane.f32.xlu0 %v2987
        %v2994 = vpop.xlane.xlu0 %2993
        %v2995 = vsel %vm2186, %v2988, 0.0
        %2996 = vadd.xlane.f32.xlu0 %v2995
        %v2997 = vpop.xlane.xlu0 %2996
        %v2998 = vmul.f32 %v2990, %v2190
        %v2999 = vmul.f32 %v2992, %v2190
        %v3000 = vmul.f32 %v2994, %v2190
        %v3001 = vmul.f32 %v2997, %v2190
        %v3002 = vsub.f32 %v2985, %v2998
        %v3003 = vsub.f32 %v2986, %v2999
        %v3004 = vsub.f32 %v2987, %v3000
        %v3005 = vsub.f32 %v2988, %v3001
        %v3006 = vmul.f32 %v3002, %v3002
        %v3007 = vmul.f32 %v3003, %v3003
        %v3008 = vmul.f32 %v3004, %v3004
        %v3009 = vmul.f32 %v3005, %v3005
        %3010 = vadd.xlane.f32.xlu0 %v3006
        %v3011 = vpop.xlane.xlu0 %3010
        %3012 = vadd.xlane.f32.xlu0 %v3007
        %v3013 = vpop.xlane.xlu0 %3012
        %3014 = vadd.xlane.f32.xlu0 %v3008
        %v3015 = vpop.xlane.xlu0 %3014
        %v3016 = vsel %vm2186, %v3009, 0.0
        %3017 = vadd.xlane.f32.xlu0 %v3016
        %v3018 = vpop.xlane.xlu0 %3017
        %v3019 = vmul.f32 %v3011, %v2190
        %v3020 = vmul.f32 %v3013, %v2190
        %v3021 = vmul.f32 %v3015, %v2190
        %v3022 = vmul.f32 %v3018, %v2190
        %v3023 = vadd.f32 %v3019, 1e-05
        %v3024 = vadd.f32 %v3020, 1e-05
        %v3025 = vadd.f32 %v3021, 1e-05
        %v3026 = vadd.f32 %v3022, 1e-05
        %v3027 = vrsqrt.pop %v3023
        %v3028 = vrsqrt.pop %v3024
        %v3029 = vrsqrt.pop %v3025
        %v3030 = vrsqrt.pop %v3026
        %v3031 = vmul.f32 %v3002, %v3027
        %v3032 = vmul.f32 %v3003, %v3028
        %v3033 = vmul.f32 %v3004, %v3029
        %v3034 = vmul.f32 %v3005, %v3030
        %v3036 = vlaneseq
        %v3037 = vshrl.u32 %v3036, 7
        %v3038 = vsub.s32 0, %v3037
        %v3039 = vrot.slane %v943, %v3038
        %v3041 = vmul.f32 %v3031, %v3039
        %v3042 = vmul.f32 %v3032, %v3039
        %v3043 = vmul.f32 %v3033, %v3039
        %v3044 = vmul.f32 %v3034, %v3039
        %v3046 = vlaneseq
        %v3047 = vshrl.u32 %v3046, 7
        %v3048 = vsub.s32 0, %v3047
        %v3049 = vrot.slane %v944, %v3048
        %v3051 = vadd.f32 %v3041, %v3049
        %v3052 = vadd.f32 %v3042, %v3049
        %v3053 = vadd.f32 %v3043, %v3049
        %v3054 = vadd.f32 %v3044, %v3049
        %v3055 = vpack.c.bf16 %v3052, %v3051
        %v3056 = vpack.c.bf16 %v3054, %v3053
        %3057 = vmatprep.subr.bf16.mxu0 0
        %3058 = vmatpush1.bf16.msra.mxu0 %v992
        %3059 = vmatprep.subr.bf16.mxu0 0
        %3060 = vmatpush1.bf16.msra.mxu0 %v991
        %3061 = vmatprep.subr.bf16.mxu0 0
        %3062 = vmatpush1.bf16.msra.mxu0 %v990
        %3063 = vmatprep.subr.bf16.mxu0 0
        %3064 = vmatpush1.bf16.msra.mxu0 %v989
        %3065 = vmatprep.subr.bf16.mxu0 0
        %3066 = vmatpush1.bf16.msra.mxu0 %v988
        %3067 = vmatprep.subr.bf16.mxu0 0
        %3068 = vmatpush1.bf16.msra.mxu0 %v987
        %3069 = vmatprep.subr.bf16.mxu0 0
        %3070 = vmatpush1.bf16.msra.mxu0 %v986
        %3071 = vmatprep.subr.bf16.mxu0 0
        %3072 = vmatpush1.bf16.msra.mxu0 %v985
        %3073 = vmatprep.subr.bf16.mxu0 0
        %3074 = vmatpush2.bf16.msra.mxu0 0
        %3075 = vmatprep.subr.bf16.mxu0 0
        %3076 = vmatpush2.bf16.msra.mxu0 0
        %3077 = vmatprep.subr.bf16.mxu0 0
        %3078 = vmatpush2.bf16.msra.mxu0 0
        %3079 = vmatprep.subr.bf16.mxu0 0
        %3080 = vmatpush2.bf16.msra.mxu0 0
        %3081 = vmatprep.subr.bf16.mxu0 0
        %3082 = vmatpush2.bf16.msra.mxu0 0
        %3083 = vmatprep.subr.bf16.mxu0 0
        %3084 = vmatpush2.bf16.msra.mxu0 0
        %3085 = vmatprep.subr.bf16.mxu0 0
        %3086 = vmatpush2.bf16.msra.mxu0 0
        %3087 = vmatprep.subr.bf16.mxu0 0
        %3088 = vmatpush2.bf16.msra.mxu0 0
        %3089 = vmatprep.mubr.bf16.mxu0 0
        %3090 = vmatmul.mubr.bf16.gmra.mxu0 %v3055
        %v3091 = vpop.f32.mrf.mxu0
        %v3092 = vadd.f32 %v951, %v3091
        %v3093 = vpop.f32.mrf.mxu0
        %v3094 = vpop.f32.mrf.mxu0
        %v3095 = vadd.f32 %v951, %v3094
        %v3096 = vpop.f32.mrf.mxu0
        %3097 = vmatprep.mubr.bf16.mxu0 0
        %3098 = vmatmul.mubr.bf16.gmra.mxu0 %v3056
        %v3099 = vpop.f32.mrf.mxu0
        %v3100 = vadd.f32 %v951, %v3099
        %v3101 = vpop.f32.mrf.mxu0
        %v3102 = vpop.f32.mrf.mxu0
        %v3103 = vadd.f32 %v951, %v3102
        %v3104 = vpop.f32.mrf.mxu0
        %3105 = vdwg.mxu0
        %3106 = vmatprep.subr.bf16.mxu0 0
        %3107 = vmatpush1.bf16.msra.mxu0 %v1095
        %3108 = vmatprep.subr.bf16.mxu0 0
        %3109 = vmatpush1.bf16.msra.mxu0 %v1094
        %3110 = vmatprep.subr.bf16.mxu0 0
        %3111 = vmatpush1.bf16.msra.mxu0 %v1093
        %3112 = vmatprep.subr.bf16.mxu0 0
        %3113 = vmatpush1.bf16.msra.mxu0 %v1092
        %3114 = vmatprep.subr.bf16.mxu0 0
        %3115 = vmatpush1.bf16.msra.mxu0 %v1091
        %3116 = vmatprep.subr.bf16.mxu0 0
        %3117 = vmatpush1.bf16.msra.mxu0 %v1090
        %3118 = vmatprep.subr.bf16.mxu0 0
        %3119 = vmatpush1.bf16.msra.mxu0 %v1089
        %3120 = vmatprep.subr.bf16.mxu0 0
        %3121 = vmatpush1.bf16.msra.mxu0 %v1088
        %3122 = vmatprep.subr.bf16.mxu0 0
        %3123 = vmatpush2.bf16.msra.mxu0 0
        %3124 = vmatprep.subr.bf16.mxu0 0
        %3125 = vmatpush2.bf16.msra.mxu0 0
        %3126 = vmatprep.subr.bf16.mxu0 0
        %3127 = vmatpush2.bf16.msra.mxu0 0
        %3128 = vmatprep.subr.bf16.mxu0 0
        %3129 = vmatpush2.bf16.msra.mxu0 0
        %3130 = vmatprep.subr.bf16.mxu0 0
        %3131 = vmatpush2.bf16.msra.mxu0 0
        %3132 = vmatprep.subr.bf16.mxu0 0
        %3133 = vmatpush2.bf16.msra.mxu0 0
        %3134 = vmatprep.subr.bf16.mxu0 0
        %3135 = vmatpush2.bf16.msra.mxu0 0
        %3136 = vmatprep.subr.bf16.mxu0 0
        %3137 = vmatpush2.bf16.msra.mxu0 0
        %3138 = vmatprep.mubr.bf16.mxu0 0
        %3139 = vmatmul.mubr.bf16.gmra.mxu0 %v3055
        %v3140 = vpop.f32.mrf.mxu0
        %v3141 = vadd.f32 %v1054, %v3140
        %v3142 = vpop.f32.mrf.mxu0
        %v3143 = vpop.f32.mrf.mxu0
        %v3144 = vadd.f32 %v1054, %v3143
        %v3145 = vpop.f32.mrf.mxu0
        %3146 = vmatprep.mubr.bf16.mxu0 0
        %3147 = vmatmul.mubr.bf16.gmra.mxu0 %v3056
        %v3148 = vpop.f32.mrf.mxu0
        %v3149 = vadd.f32 %v1054, %v3148
        %v3150 = vpop.f32.mrf.mxu0
        %v3151 = vpop.f32.mrf.mxu0
        %v3152 = vadd.f32 %v1054, %v3151
        %v3153 = vpop.f32.mrf.mxu0
        %3154 = vdwg.mxu0
        %3155 = vmatprep.subr.bf16.mxu0 0
        %3156 = vmatpush1.bf16.msra.mxu0 %v1198
        %3157 = vmatprep.subr.bf16.mxu0 0
        %3158 = vmatpush1.bf16.msra.mxu0 %v1197
        %3159 = vmatprep.subr.bf16.mxu0 0
        %3160 = vmatpush1.bf16.msra.mxu0 %v1196
        %3161 = vmatprep.subr.bf16.mxu0 0
        %3162 = vmatpush1.bf16.msra.mxu0 %v1195
        %3163 = vmatprep.subr.bf16.mxu0 0
        %3164 = vmatpush1.bf16.msra.mxu0 %v1194
        %3165 = vmatprep.subr.bf16.mxu0 0
        %3166 = vmatpush1.bf16.msra.mxu0 %v1193
        %3167 = vmatprep.subr.bf16.mxu0 0
        %3168 = vmatpush1.bf16.msra.mxu0 %v1192
        %3169 = vmatprep.subr.bf16.mxu0 0
        %3170 = vmatpush1.bf16.msra.mxu0 %v1191
        %3171 = vmatprep.subr.bf16.mxu0 0
        %3172 = vmatpush2.bf16.msra.mxu0 0
        %3173 = vmatprep.subr.bf16.mxu0 0
        %3174 = vmatpush2.bf16.msra.mxu0 0
        %3175 = vmatprep.subr.bf16.mxu0 0
        %3176 = vmatpush2.bf16.msra.mxu0 0
        %3177 = vmatprep.subr.bf16.mxu0 0
        %3178 = vmatpush2.bf16.msra.mxu0 0
        %3179 = vmatprep.subr.bf16.mxu0 0
        %3180 = vmatpush2.bf16.msra.mxu0 0
        %3181 = vmatprep.subr.bf16.mxu0 0
        %3182 = vmatpush2.bf16.msra.mxu0 0
        %3183 = vmatprep.subr.bf16.mxu0 0
        %3184 = vmatpush2.bf16.msra.mxu0 0
        %3185 = vmatprep.subr.bf16.mxu0 0
        %3186 = vmatpush2.bf16.msra.mxu0 0
        %3187 = vmatprep.mubr.bf16.mxu0 0
        %3188 = vmatmul.mubr.bf16.gmra.mxu0 %v3055
        %v3189 = vpop.f32.mrf.mxu0
        %v3190 = vadd.f32 %v1157, %v3189
        %v3191 = vpop.f32.mrf.mxu0
        %v3192 = vpop.f32.mrf.mxu0
        %v3193 = vadd.f32 %v1157, %v3192
        %v3194 = vpop.f32.mrf.mxu0
        %3195 = vmatprep.mubr.bf16.mxu0 0
        %3196 = vmatmul.mubr.bf16.gmra.mxu0 %v3056
        %v3197 = vpop.f32.mrf.mxu0
        %v3198 = vadd.f32 %v1157, %v3197
        %v3199 = vpop.f32.mrf.mxu0
        %v3200 = vpop.f32.mrf.mxu0
        %v3201 = vadd.f32 %v1157, %v3200
        %v3202 = vpop.f32.mrf.mxu0
        %3203 = vdwg.mxu0
        %v3204 = vpack.c.bf16 %v3095, %v3092
        %v3205 = vpack.c.bf16 %v3103, %v3100
        %v3206 = vpack.c.bf16 %v3144, %v3141
        %v3207 = vpack.c.bf16 %v3152, %v3149
        %v3208 = vpack.c.bf16 %v3193, %v3190
        %v3209 = vpack.c.bf16 %v3201, %v3198
        %v3211 = vsel %vm1262, %v3204, 0
        %v3214 = vsel %vm1262, %v3205, 0
        %v3217 = vsel %vm1262, %v3206, 0
        %v3220 = vsel %vm1262, %v3207, 0
        %3222 = vmatprep.subr.bf16.mxu0 0
        %3223 = vmatpush1.bf16.xpose.msra.mxu0 0
        %3224 = vmatprep.subr.bf16.mxu0 0
        %3225 = vmatpush1.bf16.xpose.msra.mxu0 0
        %3226 = vmatprep.subr.bf16.mxu0 0
        %3227 = vmatpush1.bf16.xpose.msra.mxu0 0
        %3228 = vmatprep.subr.bf16.mxu0 0
        %3229 = vmatpush1.bf16.xpose.msra.mxu0 0
        %3230 = vmatprep.subr.bf16.mxu0 0
        %3231 = vmatpush1.bf16.xpose.msra.mxu0 0
        %3232 = vmatprep.subr.bf16.mxu0 0
        %3233 = vmatpush1.bf16.xpose.msra.mxu0 0
        %3234 = vmatprep.subr.bf16.mxu0 0
        %3235 = vmatpush1.bf16.xpose.msra.mxu0 %v3220
        %3236 = vmatprep.subr.bf16.mxu0 0
        %3237 = vmatpush1.bf16.xpose.msra.mxu0 %v3217
        %3238 = vmatprep.subr.bf16.mxu0 0
        %3239 = vmatpush2.bf16.xpose.msra.mxu0 0
        %3240 = vmatprep.subr.bf16.mxu0 0
        %3241 = vmatpush2.bf16.xpose.msra.mxu0 0
        %3242 = vmatprep.subr.bf16.mxu0 0
        %3243 = vmatpush2.bf16.xpose.msra.mxu0 0
        %3244 = vmatprep.subr.bf16.mxu0 0
        %3245 = vmatpush2.bf16.xpose.msra.mxu0 0
        %3246 = vmatprep.subr.bf16.mxu0 0
        %3247 = vmatpush2.bf16.xpose.msra.mxu0 0
        %3248 = vmatprep.subr.bf16.mxu0 0
        %3249 = vmatpush2.bf16.xpose.msra.mxu0 0
        %3250 = vmatprep.subr.bf16.mxu0 0
        %3251 = vmatpush2.bf16.xpose.msra.mxu0 0
        %3252 = vmatprep.subr.bf16.mxu0 0
        %3253 = vmatpush2.bf16.xpose.msra.mxu0 0
        %3254 = vmatprep.mubr.bf16.mxu0 0
        %3255 = vmatmul.mubr.bf16.gmra.mxu0 %v3211
        %v3256 = vpop.f32.mrf.mxu0
        %v3257 = vadd.f32 0.0, %v3256
        %v3258 = vpop.f32.mrf.mxu0
        %v3259 = vpop.f32.mrf.mxu0
        %v3260 = vadd.f32 0.0, %v3259
        %v3261 = vpop.f32.mrf.mxu0
        %3262 = vmatprep.mubr.bf16.mxu0 0
        %3263 = vmatmul.mubr.bf16.gmra.mxu0 %v3214
        %v3264 = vpop.f32.mrf.mxu0
        %v3265 = vadd.f32 0.0, %v3264
        %v3266 = vpop.f32.mrf.mxu0
        %v3267 = vpop.f32.mrf.mxu0
        %v3268 = vadd.f32 0.0, %v3267
        %v3269 = vpop.f32.mrf.mxu0
        %3270 = vdwg.mxu0
        %v3271 = vmul.f32 %v3257, 0.17677669
        %v3272 = vmul.f32 %v3260, 0.17677669
        %v3273 = vmul.f32 %v3265, 0.17677669
        %v3274 = vmul.f32 %v3268, 0.17677669
        %v3275 = vadd.f32 %v3271, %v1332
        %v3276 = vadd.f32 %v3272, %v1332
        %v3277 = vadd.f32 %v3273, %v1332
        %v3278 = vadd.f32 %v3274, %v1332
        %v3279 = vsel %vm1338, %v3275, -inf
        %3280 = vmax.xlane.f32.xlu0 %v3279
        %v3281 = vpop.xlane.xlu0 %3280
        %v3282 = vsel %vm1338, %v3276, -inf
        %3283 = vmax.xlane.f32.xlu0 %v3282
        %v3284 = vpop.xlane.xlu0 %3283
        %v3285 = vsel %vm1338, %v3277, -inf
        %3286 = vmax.xlane.f32.xlu0 %v3285
        %v3287 = vpop.xlane.xlu0 %3286
        %v3288 = vsel %vm1348, %v3278, -inf
        %3289 = vmax.xlane.f32.xlu0 %v3288
        %v3290 = vpop.xlane.xlu0 %3289
        %v3291 = vsub.f32 %v3275, %v3281
        %v3292 = vsub.f32 %v3276, %v3284
        %v3293 = vsub.f32 %v3277, %v3287
        %v3294 = vsub.f32 %v3278, %v3290
        %v3295 = vmul.f32 %v3291, 1.442695
        %v3296 = vpow.pop %v3295
        %v3297 = vmul.f32 %v3292, 1.442695
        %v3298 = vpow.pop %v3297
        %v3299 = vmul.f32 %v3293, 1.442695
        %v3300 = vpow.pop %v3299
        %v3301 = vmul.f32 %v3294, 1.442695
        %v3302 = vpow.pop %v3301
        %v3303 = vsel %vm1338, %v3296, 0.0
        %3304 = vadd.xlane.f32.xlu0 %v3303
        %v3305 = vpop.xlane.xlu0 %3304
        %v3306 = vsel %vm1338, %v3298, 0.0
        %3307 = vadd.xlane.f32.xlu0 %v3306
        %v3308 = vpop.xlane.xlu0 %3307
        %v3309 = vsel %vm1338, %v3300, 0.0
        %3310 = vadd.xlane.f32.xlu0 %v3309
        %v3311 = vpop.xlane.xlu0 %3310
        %v3312 = vsel %vm1348, %v3302, 0.0
        %3313 = vadd.xlane.f32.xlu0 %v3312
        %v3314 = vpop.xlane.xlu0 %3313
        %v3315 = vrcp.pop %v3305
        %v3316 = vrcp.pop %v3308
        %v3317 = vrcp.pop %v3311
        %v3318 = vrcp.pop %v3314
        %v3319 = vmul.f32 %v3296, %v3315
        %v3320 = vmul.f32 %v3298, %v3316
        %v3321 = vmul.f32 %v3300, %v3317
        %v3322 = vmul.f32 %v3302, %v3318
        %v3323 = vpack.c.bf16 %v3320, %v3319
        %v3324 = vpack.c.bf16 %v3322, %v3321
        %v3326 = vsel %vm1338, %v3323, 0
        %v3329 = vsel %vm1338, %v3324, 0
        %v3332 = vsel %vm1392, %v3209, 0
        %3334 = vmatprep.subr.bf16.mxu0 0
        %3335 = vmatpush1.bf16.msra.mxu0 0
        %3336 = vmatprep.subr.bf16.mxu0 0
        %3337 = vmatpush1.bf16.msra.mxu0 0
        %3338 = vmatprep.subr.bf16.mxu0 0
        %3339 = vmatpush1.bf16.msra.mxu0 0
        %3340 = vmatprep.subr.bf16.mxu0 0
        %3341 = vmatpush1.bf16.msra.mxu0 0
        %3342 = vmatprep.subr.bf16.mxu0 0
        %3343 = vmatpush1.bf16.msra.mxu0 0
        %3344 = vmatprep.subr.bf16.mxu0 0
        %3345 = vmatpush1.bf16.msra.mxu0 0
        %3346 = vmatprep.subr.bf16.mxu0 0
        %3347 = vmatpush1.bf16.msra.mxu0 %v3332
        %3348 = vmatprep.subr.bf16.mxu0 0
        %3349 = vmatpush1.bf16.msra.mxu0 %v3208
        %3350 = vmatprep.subr.bf16.mxu0 0
        %3351 = vmatpush2.bf16.msra.mxu0 0
        %3352 = vmatprep.subr.bf16.mxu0 0
        %3353 = vmatpush2.bf16.msra.mxu0 0
        %3354 = vmatprep.subr.bf16.mxu0 0
        %3355 = vmatpush2.bf16.msra.mxu0 0
        %3356 = vmatprep.subr.bf16.mxu0 0
        %3357 = vmatpush2.bf16.msra.mxu0 0
        %3358 = vmatprep.subr.bf16.mxu0 0
        %3359 = vmatpush2.bf16.msra.mxu0 0
        %3360 = vmatprep.subr.bf16.mxu0 0
        %3361 = vmatpush2.bf16.msra.mxu0 0
        %3362 = vmatprep.subr.bf16.mxu0 0
        %3363 = vmatpush2.bf16.msra.mxu0 0
        %3364 = vmatprep.subr.bf16.mxu0 0
        %3365 = vmatpush2.bf16.msra.mxu0 0
        %3366 = vmatprep.mubr.bf16.mxu0 0
        %3367 = vmatmul.mubr.bf16.gmra.mxu0 %v3326
        %v3368 = vpop.f32.mrf.mxu0
        %v3369 = vadd.f32 0.0, %v3368
        %v3370 = vpop.f32.mrf.mxu0
        %v3371 = vpop.f32.mrf.mxu0
        %v3372 = vadd.f32 0.0, %v3371
        %v3373 = vpop.f32.mrf.mxu0
        %3374 = vmatprep.mubr.bf16.mxu0 0
        %3375 = vmatmul.mubr.bf16.gmra.mxu0 %v3329
        %v3376 = vpop.f32.mrf.mxu0
        %v3377 = vadd.f32 0.0, %v3376
        %v3378 = vpop.f32.mrf.mxu0
        %v3379 = vpop.f32.mrf.mxu0
        %v3380 = vadd.f32 0.0, %v3379
        %v3381 = vpop.f32.mrf.mxu0
        %3382 = vdwg.mxu0
        %3385 = vrot.lane.b32.xlu0 %v3204, 96
        %v3386 = vpop.permute.xlu0 %3385
        %3387 = vrot.lane.b32.xlu0 %v3205, 96
        %v3388 = vpop.permute.xlu0 %3387
        %3391 = vrot.lane.b32.xlu0 %v3206, 96
        %v3392 = vpop.permute.xlu0 %3391
        %3393 = vrot.lane.b32.xlu0 %v3207, 96
        %v3394 = vpop.permute.xlu0 %3393
        %v3396 = vsel %vm1262, %v3386, 0
        %v3399 = vsel %vm1262, %v3388, 0
        %v3402 = vsel %vm1262, %v3392, 0
        %v3405 = vsel %vm1262, %v3394, 0
        %3407 = vmatprep.subr.bf16.mxu0 0
        %3408 = vmatpush1.bf16.xpose.msra.mxu0 0
        %3409 = vmatprep.subr.bf16.mxu0 0
        %3410 = vmatpush1.bf16.xpose.msra.mxu0 0
        %3411 = vmatprep.subr.bf16.mxu0 0
        %3412 = vmatpush1.bf16.xpose.msra.mxu0 0
        %3413 = vmatprep.subr.bf16.mxu0 0
        %3414 = vmatpush1.bf16.xpose.msra.mxu0 0
        %3415 = vmatprep.subr.bf16.mxu0 0
        %3416 = vmatpush1.bf16.xpose.msra.mxu0 0
        %3417 = vmatprep.subr.bf16.mxu0 0
        %3418 = vmatpush1.bf16.xpose.msra.mxu0 0
        %3419 = vmatprep.subr.bf16.mxu0 0
        %3420 = vmatpush1.bf16.xpose.msra.mxu0 %v3405
        %3421 = vmatprep.subr.bf16.mxu0 0
        %3422 = vmatpush1.bf16.xpose.msra.mxu0 %v3402
        %3423 = vmatprep.subr.bf16.mxu0 0
        %3424 = vmatpush2.bf16.xpose.msra.mxu0 0
        %3425 = vmatprep.subr.bf16.mxu0 0
        %3426 = vmatpush2.bf16.xpose.msra.mxu0 0
        %3427 = vmatprep.subr.bf16.mxu0 0
        %3428 = vmatpush2.bf16.xpose.msra.mxu0 0
        %3429 = vmatprep.subr.bf16.mxu0 0
        %3430 = vmatpush2.bf16.xpose.msra.mxu0 0
        %3431 = vmatprep.subr.bf16.mxu0 0
        %3432 = vmatpush2.bf16.xpose.msra.mxu0 0
        %3433 = vmatprep.subr.bf16.mxu0 0
        %3434 = vmatpush2.bf16.xpose.msra.mxu0 0
        %3435 = vmatprep.subr.bf16.mxu0 0
        %3436 = vmatpush2.bf16.xpose.msra.mxu0 0
        %3437 = vmatprep.subr.bf16.mxu0 0
        %3438 = vmatpush2.bf16.xpose.msra.mxu0 0
        %3439 = vmatprep.mubr.bf16.mxu0 0
        %3440 = vmatmul.mubr.bf16.gmra.mxu0 %v3396
        %v3441 = vpop.f32.mrf.mxu0
        %v3442 = vadd.f32 0.0, %v3441
        %v3443 = vpop.f32.mrf.mxu0
        %v3444 = vpop.f32.mrf.mxu0
        %v3445 = vadd.f32 0.0, %v3444
        %v3446 = vpop.f32.mrf.mxu0
        %3447 = vmatprep.mubr.bf16.mxu0 0
        %3448 = vmatmul.mubr.bf16.gmra.mxu0 %v3399
        %v3449 = vpop.f32.mrf.mxu0
        %v3450 = vadd.f32 0.0, %v3449
        %v3451 = vpop.f32.mrf.mxu0
        %v3452 = vpop.f32.mrf.mxu0
        %v3453 = vadd.f32 0.0, %v3452
        %v3454 = vpop.f32.mrf.mxu0
        %3455 = vdwg.mxu0
        %v3456 = vmul.f32 %v3442, 0.17677669
        %v3457 = vmul.f32 %v3445, 0.17677669
        %v3458 = vmul.f32 %v3450, 0.17677669
        %v3459 = vmul.f32 %v3453, 0.17677669
        %v3460 = vadd.f32 %v3456, %v1332
        %v3461 = vadd.f32 %v3457, %v1332
        %v3462 = vadd.f32 %v3458, %v1332
        %v3463 = vadd.f32 %v3459, %v1332
        %v3464 = vsel %vm1338, %v3460, -inf
        %3465 = vmax.xlane.f32.xlu0 %v3464
        %v3466 = vpop.xlane.xlu0 %3465
        %v3467 = vsel %vm1338, %v3461, -inf
        %3468 = vmax.xlane.f32.xlu0 %v3467
        %v3469 = vpop.xlane.xlu0 %3468
        %v3470 = vsel %vm1338, %v3462, -inf
        %3471 = vmax.xlane.f32.xlu0 %v3470
        %v3472 = vpop.xlane.xlu0 %3471
        %v3473 = vsel %vm1348, %v3463, -inf
        %3474 = vmax.xlane.f32.xlu0 %v3473
        %v3475 = vpop.xlane.xlu0 %3474
        %v3476 = vsub.f32 %v3460, %v3466
        %v3477 = vsub.f32 %v3461, %v3469
        %v3478 = vsub.f32 %v3462, %v3472
        %v3479 = vsub.f32 %v3463, %v3475
        %v3480 = vmul.f32 %v3476, 1.442695
        %v3481 = vpow.pop %v3480
        %v3482 = vmul.f32 %v3477, 1.442695
        %v3483 = vpow.pop %v3482
        %v3484 = vmul.f32 %v3478, 1.442695
        %v3485 = vpow.pop %v3484
        %v3486 = vmul.f32 %v3479, 1.442695
        %v3487 = vpow.pop %v3486
        %v3488 = vsel %vm1338, %v3481, 0.0
        %3489 = vadd.xlane.f32.xlu0 %v3488
        %v3490 = vpop.xlane.xlu0 %3489
        %v3491 = vsel %vm1338, %v3483, 0.0
        %3492 = vadd.xlane.f32.xlu0 %v3491
        %v3493 = vpop.xlane.xlu0 %3492
        %v3494 = vsel %vm1338, %v3485, 0.0
        %3495 = vadd.xlane.f32.xlu0 %v3494
        %v3496 = vpop.xlane.xlu0 %3495
        %v3497 = vsel %vm1348, %v3487, 0.0
        %3498 = vadd.xlane.f32.xlu0 %v3497
        %v3499 = vpop.xlane.xlu0 %3498
        %v3500 = vrcp.pop %v3490
        %v3501 = vrcp.pop %v3493
        %v3502 = vrcp.pop %v3496
        %v3503 = vrcp.pop %v3499
        %v3504 = vmul.f32 %v3481, %v3500
        %v3505 = vmul.f32 %v3483, %v3501
        %v3506 = vmul.f32 %v3485, %v3502
        %v3507 = vmul.f32 %v3487, %v3503
        %v3508 = vpack.c.bf16 %v3505, %v3504
        %v3509 = vpack.c.bf16 %v3507, %v3506
        %3512 = vrot.lane.b32.xlu0 %v3208, 96
        %v3513 = vpop.permute.xlu0 %3512
        %3514 = vrot.lane.b32.xlu0 %v3209, 96
        %v3515 = vpop.permute.xlu0 %3514
        %v3518 = vsel %vm1338, %v3508, 0
        %v3521 = vsel %vm1338, %v3509, 0
        %v3524 = vsel %vm1392, %v3515, 0
        %3526 = vmatprep.subr.bf16.mxu0 0
        %3527 = vmatpush1.bf16.msra.mxu0 0
        %3528 = vmatprep.subr.bf16.mxu0 0
        %3529 = vmatpush1.bf16.msra.mxu0 0
        %3530 = vmatprep.subr.bf16.mxu0 0
        %3531 = vmatpush1.bf16.msra.mxu0 0
        %3532 = vmatprep.subr.bf16.mxu0 0
        %3533 = vmatpush1.bf16.msra.mxu0 0
        %3534 = vmatprep.subr.bf16.mxu0 0
        %3535 = vmatpush1.bf16.msra.mxu0 0
        %3536 = vmatprep.subr.bf16.mxu0 0
        %3537 = vmatpush1.bf16.msra.mxu0 0
        %3538 = vmatprep.subr.bf16.mxu0 0
        %3539 = vmatpush1.bf16.msra.mxu0 %v3524
        %3540 = vmatprep.subr.bf16.mxu0 0
        %3541 = vmatpush1.bf16.msra.mxu0 %v3513
        %3542 = vmatprep.subr.bf16.mxu0 0
        %3543 = vmatpush2.bf16.msra.mxu0 0
        %3544 = vmatprep.subr.bf16.mxu0 0
        %3545 = vmatpush2.bf16.msra.mxu0 0
        %3546 = vmatprep.subr.bf16.mxu0 0
        %3547 = vmatpush2.bf16.msra.mxu0 0
        %3548 = vmatprep.subr.bf16.mxu0 0
        %3549 = vmatpush2.bf16.msra.mxu0 0
        %3550 = vmatprep.subr.bf16.mxu0 0
        %3551 = vmatpush2.bf16.msra.mxu0 0
        %3552 = vmatprep.subr.bf16.mxu0 0
        %3553 = vmatpush2.bf16.msra.mxu0 0
        %3554 = vmatprep.subr.bf16.mxu0 0
        %3555 = vmatpush2.bf16.msra.mxu0 0
        %3556 = vmatprep.subr.bf16.mxu0 0
        %3557 = vmatpush2.bf16.msra.mxu0 0
        %3558 = vmatprep.mubr.bf16.mxu0 0
        %3559 = vmatmul.mubr.bf16.gmra.mxu0 %v3518
        %v3560 = vpop.f32.mrf.mxu0
        %v3561 = vadd.f32 0.0, %v3560
        %v3562 = vpop.f32.mrf.mxu0
        %v3563 = vpop.f32.mrf.mxu0
        %v3564 = vadd.f32 0.0, %v3563
        %v3565 = vpop.f32.mrf.mxu0
        %3566 = vmatprep.mubr.bf16.mxu0 0
        %3567 = vmatmul.mubr.bf16.gmra.mxu0 %v3521
        %v3568 = vpop.f32.mrf.mxu0
        %v3569 = vadd.f32 0.0, %v3568
        %v3570 = vpop.f32.mrf.mxu0
        %v3571 = vpop.f32.mrf.mxu0
        %v3572 = vadd.f32 0.0, %v3571
        %v3573 = vpop.f32.mrf.mxu0
        %3574 = vdwg.mxu0
        %3575 = vrot.lane.b32.xlu0 %v3204, 64
        %v3576 = vpop.permute.xlu0 %3575
        %3577 = vrot.lane.b32.xlu0 %v3205, 64
        %v3578 = vpop.permute.xlu0 %3577
        %3579 = vrot.lane.b32.xlu0 %v3206, 64
        %v3580 = vpop.permute.xlu0 %3579
        %3581 = vrot.lane.b32.xlu0 %v3207, 64
        %v3582 = vpop.permute.xlu0 %3581
        %v3584 = vsel %vm1262, %v3576, 0
        %v3587 = vsel %vm1262, %v3578, 0
        %v3590 = vsel %vm1262, %v3580, 0
        %v3593 = vsel %vm1262, %v3582, 0
        %3595 = vmatprep.subr.bf16.mxu0 0
        %3596 = vmatpush1.bf16.xpose.msra.mxu0 0
        %3597 = vmatprep.subr.bf16.mxu0 0
        %3598 = vmatpush1.bf16.xpose.msra.mxu0 0
        %3599 = vmatprep.subr.bf16.mxu0 0
        %3600 = vmatpush1.bf16.xpose.msra.mxu0 0
        %3601 = vmatprep.subr.bf16.mxu0 0
        %3602 = vmatpush1.bf16.xpose.msra.mxu0 0
        %3603 = vmatprep.subr.bf16.mxu0 0
        %3604 = vmatpush1.bf16.xpose.msra.mxu0 0
        %3605 = vmatprep.subr.bf16.mxu0 0
        %3606 = vmatpush1.bf16.xpose.msra.mxu0 0
        %3607 = vmatprep.subr.bf16.mxu0 0
        %3608 = vmatpush1.bf16.xpose.msra.mxu0 %v3593
        %3609 = vmatprep.subr.bf16.mxu0 0
        %3610 = vmatpush1.bf16.xpose.msra.mxu0 %v3590
        %3611 = vmatprep.subr.bf16.mxu0 0
        %3612 = vmatpush2.bf16.xpose.msra.mxu0 0
        %3613 = vmatprep.subr.bf16.mxu0 0
        %3614 = vmatpush2.bf16.xpose.msra.mxu0 0
        %3615 = vmatprep.subr.bf16.mxu0 0
        %3616 = vmatpush2.bf16.xpose.msra.mxu0 0
        %3617 = vmatprep.subr.bf16.mxu0 0
        %3618 = vmatpush2.bf16.xpose.msra.mxu0 0
        %3619 = vmatprep.subr.bf16.mxu0 0
        %3620 = vmatpush2.bf16.xpose.msra.mxu0 0
        %3621 = vmatprep.subr.bf16.mxu0 0
        %3622 = vmatpush2.bf16.xpose.msra.mxu0 0
        %3623 = vmatprep.subr.bf16.mxu0 0
        %3624 = vmatpush2.bf16.xpose.msra.mxu0 0
        %3625 = vmatprep.subr.bf16.mxu0 0
        %3626 = vmatpush2.bf16.xpose.msra.mxu0 0
        %3627 = vmatprep.mubr.bf16.mxu0 0
        %3628 = vmatmul.mubr.bf16.gmra.mxu0 %v3584
        %v3629 = vpop.f32.mrf.mxu0
        %v3630 = vadd.f32 0.0, %v3629
        %v3631 = vpop.f32.mrf.mxu0
        %v3632 = vpop.f32.mrf.mxu0
        %v3633 = vadd.f32 0.0, %v3632
        %v3634 = vpop.f32.mrf.mxu0
        %3635 = vmatprep.mubr.bf16.mxu0 0
        %3636 = vmatmul.mubr.bf16.gmra.mxu0 %v3587
        %v3637 = vpop.f32.mrf.mxu0
        %v3638 = vadd.f32 0.0, %v3637
        %v3639 = vpop.f32.mrf.mxu0
        %v3640 = vpop.f32.mrf.mxu0
        %v3641 = vadd.f32 0.0, %v3640
        %v3642 = vpop.f32.mrf.mxu0
        %3643 = vdwg.mxu0
        %v3644 = vmul.f32 %v3630, 0.17677669
        %v3645 = vmul.f32 %v3633, 0.17677669
        %v3646 = vmul.f32 %v3638, 0.17677669
        %v3647 = vmul.f32 %v3641, 0.17677669
        %v3648 = vadd.f32 %v3644, %v1332
        %v3649 = vadd.f32 %v3645, %v1332
        %v3650 = vadd.f32 %v3646, %v1332
        %v3651 = vadd.f32 %v3647, %v1332
        %v3652 = vsel %vm1338, %v3648, -inf
        %3653 = vmax.xlane.f32.xlu0 %v3652
        %v3654 = vpop.xlane.xlu0 %3653
        %v3655 = vsel %vm1338, %v3649, -inf
        %3656 = vmax.xlane.f32.xlu0 %v3655
        %v3657 = vpop.xlane.xlu0 %3656
        %v3658 = vsel %vm1338, %v3650, -inf
        %3659 = vmax.xlane.f32.xlu0 %v3658
        %v3660 = vpop.xlane.xlu0 %3659
        %v3661 = vsel %vm1348, %v3651, -inf
        %3662 = vmax.xlane.f32.xlu0 %v3661
        %v3663 = vpop.xlane.xlu0 %3662
        %v3664 = vsub.f32 %v3648, %v3654
        %v3665 = vsub.f32 %v3649, %v3657
        %v3666 = vsub.f32 %v3650, %v3660
        %v3667 = vsub.f32 %v3651, %v3663
        %v3668 = vmul.f32 %v3664, 1.442695
        %v3669 = vpow.pop %v3668
        %v3670 = vmul.f32 %v3665, 1.442695
        %v3671 = vpow.pop %v3670
        %v3672 = vmul.f32 %v3666, 1.442695
        %v3673 = vpow.pop %v3672
        %v3674 = vmul.f32 %v3667, 1.442695
        %v3675 = vpow.pop %v3674
        %v3676 = vsel %vm1338, %v3669, 0.0
        %3677 = vadd.xlane.f32.xlu0 %v3676
        %v3678 = vpop.xlane.xlu0 %3677
        %v3679 = vsel %vm1338, %v3671, 0.0
        %3680 = vadd.xlane.f32.xlu0 %v3679
        %v3681 = vpop.xlane.xlu0 %3680
        %v3682 = vsel %vm1338, %v3673, 0.0
        %3683 = vadd.xlane.f32.xlu0 %v3682
        %v3684 = vpop.xlane.xlu0 %3683
        %v3685 = vsel %vm1348, %v3675, 0.0
        %3686 = vadd.xlane.f32.xlu0 %v3685
        %v3687 = vpop.xlane.xlu0 %3686
        %v3688 = vrcp.pop %v3678
        %v3689 = vrcp.pop %v3681
        %v3690 = vrcp.pop %v3684
        %v3691 = vrcp.pop %v3687
        %v3692 = vmul.f32 %v3669, %v3688
        %v3693 = vmul.f32 %v3671, %v3689
        %v3694 = vmul.f32 %v3673, %v3690
        %v3695 = vmul.f32 %v3675, %v3691
        %v3696 = vpack.c.bf16 %v3693, %v3692
        %v3697 = vpack.c.bf16 %v3695, %v3694
        %3698 = vrot.lane.b32.xlu0 %v3208, 64
        %v3699 = vpop.permute.xlu0 %3698
        %3700 = vrot.lane.b32.xlu0 %v3209, 64
        %v3701 = vpop.permute.xlu0 %3700
        %v3704 = vsel %vm1338, %v3696, 0
        %v3707 = vsel %vm1338, %v3697, 0
        %v3710 = vsel %vm1392, %v3701, 0
        %3712 = vmatprep.subr.bf16.mxu0 0
        %3713 = vmatpush1.bf16.msra.mxu0 0
        %3714 = vmatprep.subr.bf16.mxu0 0
        %3715 = vmatpush1.bf16.msra.mxu0 0
        %3716 = vmatprep.subr.bf16.mxu0 0
        %3717 = vmatpush1.bf16.msra.mxu0 0
        %3718 = vmatprep.subr.bf16.mxu0 0
        %3719 = vmatpush1.bf16.msra.mxu0 0
        %3720 = vmatprep.subr.bf16.mxu0 0
        %3721 = vmatpush1.bf16.msra.mxu0 0
        %3722 = vmatprep.subr.bf16.mxu0 0
        %3723 = vmatpush1.bf16.msra.mxu0 0
        %3724 = vmatprep.subr.bf16.mxu0 0
        %3725 = vmatpush1.bf16.msra.mxu0 %v3710
        %3726 = vmatprep.subr.bf16.mxu0 0
        %3727 = vmatpush1.bf16.msra.mxu0 %v3699
        %3728 = vmatprep.subr.bf16.mxu0 0
        %3729 = vmatpush2.bf16.msra.mxu0 0
        %3730 = vmatprep.subr.bf16.mxu0 0
        %3731 = vmatpush2.bf16.msra.mxu0 0
        %3732 = vmatprep.subr.bf16.mxu0 0
        %3733 = vmatpush2.bf16.msra.mxu0 0
        %3734 = vmatprep.subr.bf16.mxu0 0
        %3735 = vmatpush2.bf16.msra.mxu0 0
        %3736 = vmatprep.subr.bf16.mxu0 0
        %3737 = vmatpush2.bf16.msra.mxu0 0
        %3738 = vmatprep.subr.bf16.mxu0 0
        %3739 = vmatpush2.bf16.msra.mxu0 0
        %3740 = vmatprep.subr.bf16.mxu0 0
        %3741 = vmatpush2.bf16.msra.mxu0 0
        %3742 = vmatprep.subr.bf16.mxu0 0
        %3743 = vmatpush2.bf16.msra.mxu0 0
        %3744 = vmatprep.mubr.bf16.mxu0 0
        %3745 = vmatmul.mubr.bf16.gmra.mxu0 %v3704
        %v3746 = vpop.f32.mrf.mxu0
        %v3747 = vadd.f32 0.0, %v3746
        %v3748 = vpop.f32.mrf.mxu0
        %v3749 = vpop.f32.mrf.mxu0
        %v3750 = vadd.f32 0.0, %v3749
        %v3751 = vpop.f32.mrf.mxu0
        %3752 = vmatprep.mubr.bf16.mxu0 0
        %3753 = vmatmul.mubr.bf16.gmra.mxu0 %v3707
        %v3754 = vpop.f32.mrf.mxu0
        %v3755 = vadd.f32 0.0, %v3754
        %v3756 = vpop.f32.mrf.mxu0
        %v3757 = vpop.f32.mrf.mxu0
        %v3758 = vadd.f32 0.0, %v3757
        %v3759 = vpop.f32.mrf.mxu0
        %3760 = vdwg.mxu0
        %3761 = vrot.lane.b32.xlu0 %v3204, 32
        %v3762 = vpop.permute.xlu0 %3761
        %3763 = vrot.lane.b32.xlu0 %v3205, 32
        %v3764 = vpop.permute.xlu0 %3763
        %3765 = vrot.lane.b32.xlu0 %v3206, 32
        %v3766 = vpop.permute.xlu0 %3765
        %3767 = vrot.lane.b32.xlu0 %v3207, 32
        %v3768 = vpop.permute.xlu0 %3767
        %v3770 = vsel %vm1262, %v3762, 0
        %v3773 = vsel %vm1262, %v3764, 0
        %v3776 = vsel %vm1262, %v3766, 0
        %v3779 = vsel %vm1262, %v3768, 0
        %3781 = vmatprep.subr.bf16.mxu0 0
        %3782 = vmatpush1.bf16.xpose.msra.mxu0 0
        %3783 = vmatprep.subr.bf16.mxu0 0
        %3784 = vmatpush1.bf16.xpose.msra.mxu0 0
        %3785 = vmatprep.subr.bf16.mxu0 0
        %3786 = vmatpush1.bf16.xpose.msra.mxu0 0
        %3787 = vmatprep.subr.bf16.mxu0 0
        %3788 = vmatpush1.bf16.xpose.msra.mxu0 0
        %3789 = vmatprep.subr.bf16.mxu0 0
        %3790 = vmatpush1.bf16.xpose.msra.mxu0 0
        %3791 = vmatprep.subr.bf16.mxu0 0
        %3792 = vmatpush1.bf16.xpose.msra.mxu0 0
        %3793 = vmatprep.subr.bf16.mxu0 0
        %3794 = vmatpush1.bf16.xpose.msra.mxu0 %v3779
        %3795 = vmatprep.subr.bf16.mxu0 0
        %3796 = vmatpush1.bf16.xpose.msra.mxu0 %v3776
        %3797 = vmatprep.subr.bf16.mxu0 0
        %3798 = vmatpush2.bf16.xpose.msra.mxu0 0
        %3799 = vmatprep.subr.bf16.mxu0 0
        %3800 = vmatpush2.bf16.xpose.msra.mxu0 0
        %3801 = vmatprep.subr.bf16.mxu0 0
        %3802 = vmatpush2.bf16.xpose.msra.mxu0 0
        %3803 = vmatprep.subr.bf16.mxu0 0
        %3804 = vmatpush2.bf16.xpose.msra.mxu0 0
        %3805 = vmatprep.subr.bf16.mxu0 0
        %3806 = vmatpush2.bf16.xpose.msra.mxu0 0
        %3807 = vmatprep.subr.bf16.mxu0 0
        %3808 = vmatpush2.bf16.xpose.msra.mxu0 0
        %3809 = vmatprep.subr.bf16.mxu0 0
        %3810 = vmatpush2.bf16.xpose.msra.mxu0 0
        %3811 = vmatprep.subr.bf16.mxu0 0
        %3812 = vmatpush2.bf16.xpose.msra.mxu0 0
        %3813 = vmatprep.mubr.bf16.mxu0 0
        %3814 = vmatmul.mubr.bf16.gmra.mxu0 %v3770
        %v3815 = vpop.f32.mrf.mxu0
        %v3816 = vadd.f32 0.0, %v3815
        %v3817 = vpop.f32.mrf.mxu0
        %v3818 = vpop.f32.mrf.mxu0
        %v3819 = vadd.f32 0.0, %v3818
        %v3820 = vpop.f32.mrf.mxu0
        %3821 = vmatprep.mubr.bf16.mxu0 0
        %3822 = vmatmul.mubr.bf16.gmra.mxu0 %v3773
        %v3823 = vpop.f32.mrf.mxu0
        %v3824 = vadd.f32 0.0, %v3823
        %v3825 = vpop.f32.mrf.mxu0
        %v3826 = vpop.f32.mrf.mxu0
        %v3827 = vadd.f32 0.0, %v3826
        %v3828 = vpop.f32.mrf.mxu0
        %3829 = vdwg.mxu0
        %v3830 = vmul.f32 %v3816, 0.17677669
        %v3831 = vmul.f32 %v3819, 0.17677669
        %v3832 = vmul.f32 %v3824, 0.17677669
        %v3833 = vmul.f32 %v3827, 0.17677669
        %v3834 = vadd.f32 %v3830, %v1332
        %v3835 = vadd.f32 %v3831, %v1332
        %v3836 = vadd.f32 %v3832, %v1332
        %v3837 = vadd.f32 %v3833, %v1332
        %v3838 = vsel %vm1338, %v3834, -inf
        %3839 = vmax.xlane.f32.xlu0 %v3838
        %v3840 = vpop.xlane.xlu0 %3839
        %v3841 = vsel %vm1338, %v3835, -inf
        %3842 = vmax.xlane.f32.xlu0 %v3841
        %v3843 = vpop.xlane.xlu0 %3842
        %v3844 = vsel %vm1338, %v3836, -inf
        %3845 = vmax.xlane.f32.xlu0 %v3844
        %v3846 = vpop.xlane.xlu0 %3845
        %v3847 = vsel %vm1348, %v3837, -inf
        %3848 = vmax.xlane.f32.xlu0 %v3847
        %v3849 = vpop.xlane.xlu0 %3848
        %v3850 = vsub.f32 %v3834, %v3840
        %v3851 = vsub.f32 %v3835, %v3843
        %v3852 = vsub.f32 %v3836, %v3846
        %v3853 = vsub.f32 %v3837, %v3849
        %v3854 = vmul.f32 %v3850, 1.442695
        %v3855 = vpow.pop %v3854
        %v3856 = vmul.f32 %v3851, 1.442695
        %v3857 = vpow.pop %v3856
        %v3858 = vmul.f32 %v3852, 1.442695
        %v3859 = vpow.pop %v3858
        %v3860 = vmul.f32 %v3853, 1.442695
        %v3861 = vpow.pop %v3860
        %v3862 = vsel %vm1338, %v3855, 0.0
        %3863 = vadd.xlane.f32.xlu0 %v3862
        %v3864 = vpop.xlane.xlu0 %3863
        %v3865 = vsel %vm1338, %v3857, 0.0
        %3866 = vadd.xlane.f32.xlu0 %v3865
        %v3867 = vpop.xlane.xlu0 %3866
        %v3868 = vsel %vm1338, %v3859, 0.0
        %3869 = vadd.xlane.f32.xlu0 %v3868
        %v3870 = vpop.xlane.xlu0 %3869
        %v3871 = vsel %vm1348, %v3861, 0.0
        %3872 = vadd.xlane.f32.xlu0 %v3871
        %v3873 = vpop.xlane.xlu0 %3872
        %v3874 = vrcp.pop %v3864
        %v3875 = vrcp.pop %v3867
        %v3876 = vrcp.pop %v3870
        %v3877 = vrcp.pop %v3873
        %v3878 = vmul.f32 %v3855, %v3874
        %v3879 = vmul.f32 %v3857, %v3875
        %v3880 = vmul.f32 %v3859, %v3876
        %v3881 = vmul.f32 %v3861, %v3877
        %v3882 = vpack.c.bf16 %v3879, %v3878
        %v3883 = vpack.c.bf16 %v3881, %v3880
        %3884 = vrot.lane.b32.xlu0 %v3208, 32
        %v3885 = vpop.permute.xlu0 %3884
        %3886 = vrot.lane.b32.xlu0 %v3209, 32
        %v3887 = vpop.permute.xlu0 %3886
        %v3890 = vsel %vm1338, %v3882, 0
        %v3893 = vsel %vm1338, %v3883, 0
        %v3896 = vsel %vm1392, %v3887, 0
        %3898 = vmatprep.subr.bf16.mxu0 0
        %3899 = vmatpush1.bf16.msra.mxu0 0
        %3900 = vmatprep.subr.bf16.mxu0 0
        %3901 = vmatpush1.bf16.msra.mxu0 0
        %3902 = vmatprep.subr.bf16.mxu0 0
        %3903 = vmatpush1.bf16.msra.mxu0 0
        %3904 = vmatprep.subr.bf16.mxu0 0
        %3905 = vmatpush1.bf16.msra.mxu0 0
        %3906 = vmatprep.subr.bf16.mxu0 0
        %3907 = vmatpush1.bf16.msra.mxu0 0
        %3908 = vmatprep.subr.bf16.mxu0 0
        %3909 = vmatpush1.bf16.msra.mxu0 0
        %3910 = vmatprep.subr.bf16.mxu0 0
        %3911 = vmatpush1.bf16.msra.mxu0 %v3896
        %3912 = vmatprep.subr.bf16.mxu0 0
        %3913 = vmatpush1.bf16.msra.mxu0 %v3885
        %3914 = vmatprep.subr.bf16.mxu0 0
        %3915 = vmatpush2.bf16.msra.mxu0 0
        %3916 = vmatprep.subr.bf16.mxu0 0
        %3917 = vmatpush2.bf16.msra.mxu0 0
        %3918 = vmatprep.subr.bf16.mxu0 0
        %3919 = vmatpush2.bf16.msra.mxu0 0
        %3920 = vmatprep.subr.bf16.mxu0 0
        %3921 = vmatpush2.bf16.msra.mxu0 0
        %3922 = vmatprep.subr.bf16.mxu0 0
        %3923 = vmatpush2.bf16.msra.mxu0 0
        %3924 = vmatprep.subr.bf16.mxu0 0
        %3925 = vmatpush2.bf16.msra.mxu0 0
        %3926 = vmatprep.subr.bf16.mxu0 0
        %3927 = vmatpush2.bf16.msra.mxu0 0
        %3928 = vmatprep.subr.bf16.mxu0 0
        %3929 = vmatpush2.bf16.msra.mxu0 0
        %3930 = vmatprep.mubr.bf16.mxu0 0
        %3931 = vmatmul.mubr.bf16.gmra.mxu0 %v3890
        %v3932 = vpop.f32.mrf.mxu0
        %v3933 = vadd.f32 0.0, %v3932
        %v3934 = vpop.f32.mrf.mxu0
        %v3935 = vpop.f32.mrf.mxu0
        %v3936 = vadd.f32 0.0, %v3935
        %v3937 = vpop.f32.mrf.mxu0
        %3938 = vmatprep.mubr.bf16.mxu0 0
        %3939 = vmatmul.mubr.bf16.gmra.mxu0 %v3893
        %v3940 = vpop.f32.mrf.mxu0
        %v3941 = vadd.f32 0.0, %v3940
        %v3942 = vpop.f32.mrf.mxu0
        %v3943 = vpop.f32.mrf.mxu0
        %v3944 = vadd.f32 0.0, %v3943
        %v3945 = vpop.f32.mrf.mxu0
        %3946 = vdwg.mxu0
        %3951 = vrot.lane.b32.xlu0 %v3561, 32
        %v3952 = vpop.permute.xlu0 %3951
        %3953 = vrot.lane.b32.xlu0 %v3564, 32
        %v3954 = vpop.permute.xlu0 %3953
        %3955 = vrot.lane.b32.xlu0 %v3569, 32
        %v3956 = vpop.permute.xlu0 %3955
        %3957 = vrot.lane.b32.xlu0 %v3572, 32
        %v3958 = vpop.permute.xlu0 %3957
        %3967 = vrot.lane.b32.xlu0 %v3747, 64
        %v3968 = vpop.permute.xlu0 %3967
        %3969 = vrot.lane.b32.xlu0 %v3750, 64
        %v3970 = vpop.permute.xlu0 %3969
        %3971 = vrot.lane.b32.xlu0 %v3755, 64
        %v3972 = vpop.permute.xlu0 %3971
        %3973 = vrot.lane.b32.xlu0 %v3758, 64
        %v3974 = vpop.permute.xlu0 %3973
        %3983 = vrot.lane.b32.xlu0 %v3933, 96
        %v3984 = vpop.permute.xlu0 %3983
        %3985 = vrot.lane.b32.xlu0 %v3936, 96
        %v3986 = vpop.permute.xlu0 %3985
        %3987 = vrot.lane.b32.xlu0 %v3941, 96
        %v3988 = vpop.permute.xlu0 %3987
        %3989 = vrot.lane.b32.xlu0 %v3944, 96
        %v3990 = vpop.permute.xlu0 %3989
        %v3995 = vsel %vm1262, %v3369, %v3952
        %v3996 = vsel %vm1262, %v3372, %v3954
        %v3997 = vsel %vm1262, %v3377, %v3956
        %v3998 = vsel %vm1262, %v3380, %v3958
        %v3999 = vsel %vm2061, %v3995, %v3968
        %v4000 = vsel %vm2061, %v3996, %v3970
        %v4001 = vsel %vm2061, %v3997, %v3972
        %v4002 = vsel %vm2061, %v3998, %v3974
        %v4003 = vsel %vm2066, %v3999, %v3984
        %v4004 = vsel %vm2066, %v4000, %v3986
        %v4005 = vsel %vm2066, %v4001, %v3988
        %v4006 = vsel %vm2066, %v4002, %v3990
        %v4007 = vpack.c.bf16 %v4004, %v4003
        %v4008 = vpack.c.bf16 %v4006, %v4005
        %4009 = vmatprep.subr.bf16.mxu0 0
        %4010 = vmatpush1.bf16.msra.mxu0 %v2118
        %4011 = vmatprep.subr.bf16.mxu0 0
        %4012 = vmatpush1.bf16.msra.mxu0 %v2117
        %4013 = vmatprep.subr.bf16.mxu0 0
        %4014 = vmatpush1.bf16.msra.mxu0 %v2116
        %4015 = vmatprep.subr.bf16.mxu0 0
        %4016 = vmatpush1.bf16.msra.mxu0 %v2115
        %4017 = vmatprep.subr.bf16.mxu0 0
        %4018 = vmatpush1.bf16.msra.mxu0 %v2114
        %4019 = vmatprep.subr.bf16.mxu0 0
        %4020 = vmatpush1.bf16.msra.mxu0 %v2113
        %4021 = vmatprep.subr.bf16.mxu0 0
        %4022 = vmatpush1.bf16.msra.mxu0 %v2112
        %4023 = vmatprep.subr.bf16.mxu0 0
        %4024 = vmatpush1.bf16.msra.mxu0 %v2111
        %4025 = vmatprep.subr.bf16.mxu0 0
        %4026 = vmatpush2.bf16.msra.mxu0 0
        %4027 = vmatprep.subr.bf16.mxu0 0
        %4028 = vmatpush2.bf16.msra.mxu0 0
        %4029 = vmatprep.subr.bf16.mxu0 0
        %4030 = vmatpush2.bf16.msra.mxu0 0
        %4031 = vmatprep.subr.bf16.mxu0 0
        %4032 = vmatpush2.bf16.msra.mxu0 0
        %4033 = vmatprep.subr.bf16.mxu0 0
        %4034 = vmatpush2.bf16.msra.mxu0 0
        %4035 = vmatprep.subr.bf16.mxu0 0
        %4036 = vmatpush2.bf16.msra.mxu0 0
        %4037 = vmatprep.subr.bf16.mxu0 0
        %4038 = vmatpush2.bf16.msra.mxu0 0
        %4039 = vmatprep.subr.bf16.mxu0 0
        %4040 = vmatpush2.bf16.msra.mxu0 0
        %4041 = vmatprep.mubr.bf16.mxu0 0
        %4042 = vmatmul.mubr.bf16.gmra.mxu0 %v4007
        %v4043 = vpop.f32.mrf.mxu0
        %v4044 = vadd.f32 %v2077, %v4043
        %v4045 = vpop.f32.mrf.mxu0
        %v4046 = vpop.f32.mrf.mxu0
        %v4047 = vadd.f32 %v2077, %v4046
        %v4048 = vpop.f32.mrf.mxu0
        %4049 = vmatprep.mubr.bf16.mxu0 0
        %4050 = vmatmul.mubr.bf16.gmra.mxu0 %v4008
        %v4051 = vpop.f32.mrf.mxu0
        %v4052 = vadd.f32 %v2077, %v4051
        %v4053 = vpop.f32.mrf.mxu0
        %v4054 = vpop.f32.mrf.mxu0
        %v4055 = vadd.f32 %v2077, %v4054
        %v4056 = vpop.f32.mrf.mxu0
        %4057 = vdwg.mxu0
        %v4058 = vadd.f32 %v3051, %v4044
        %v4059 = vadd.f32 %v3052, %v4047
        %v4060 = vadd.f32 %v3053, %v4052
        %v4061 = vadd.f32 %v3054, %v4055
        %4062 = vadd.xlane.f32.xlu0 %v4058
        %v4063 = vpop.xlane.xlu0 %4062
        %4064 = vadd.xlane.f32.xlu0 %v4059
        %v4065 = vpop.xlane.xlu0 %4064
        %4066 = vadd.xlane.f32.xlu0 %v4060
        %v4067 = vpop.xlane.xlu0 %4066
        %v4068 = vsel %vm2186, %v4061, 0.0
        %4069 = vadd.xlane.f32.xlu0 %v4068
        %v4070 = vpop.xlane.xlu0 %4069
        %v4071 = vmul.f32 %v4063, %v2190
        %v4072 = vmul.f32 %v4065, %v2190
        %v4073 = vmul.f32 %v4067, %v2190
        %v4074 = vmul.f32 %v4070, %v2190
        %v4075 = vsub.f32 %v4058, %v4071
        %v4076 = vsub.f32 %v4059, %v4072
        %v4077 = vsub.f32 %v4060, %v4073
        %v4078 = vsub.f32 %v4061, %v4074
        %v4079 = vmul.f32 %v4075, %v4075
        %v4080 = vmul.f32 %v4076, %v4076
        %v4081 = vmul.f32 %v4077, %v4077
        %v4082 = vmul.f32 %v4078, %v4078
        %4083 = vadd.xlane.f32.xlu0 %v4079
        %v4084 = vpop.xlane.xlu0 %4083
        %4085 = vadd.xlane.f32.xlu0 %v4080
        %v4086 = vpop.xlane.xlu0 %4085
        %4087 = vadd.xlane.f32.xlu0 %v4081
        %v4088 = vpop.xlane.xlu0 %4087
        %v4089 = vsel %vm2186, %v4082, 0.0
        %4090 = vadd.xlane.f32.xlu0 %v4089
        %v4091 = vpop.xlane.xlu0 %4090
        %v4092 = vmul.f32 %v4084, %v2190
        %v4093 = vmul.f32 %v4086, %v2190
        %v4094 = vmul.f32 %v4088, %v2190
        %v4095 = vmul.f32 %v4091, %v2190
        %v4096 = vadd.f32 %v4092, 1e-05
        %v4097 = vadd.f32 %v4093, 1e-05
        %v4098 = vadd.f32 %v4094, 1e-05
        %v4099 = vadd.f32 %v4095, 1e-05
        %v4100 = vrsqrt.pop %v4096
        %v4101 = vrsqrt.pop %v4097
        %v4102 = vrsqrt.pop %v4098
        %v4103 = vrsqrt.pop %v4099
        %v4104 = vmul.f32 %v4075, %v4100
        %v4105 = vmul.f32 %v4076, %v4101
        %v4106 = vmul.f32 %v4077, %v4102
        %v4107 = vmul.f32 %v4078, %v4103
        %v4108 = vmul.f32 %v4104, %v2232
        %v4109 = vmul.f32 %v4105, %v2232
        %v4110 = vmul.f32 %v4106, %v2232
        %v4111 = vmul.f32 %v4107, %v2232
        %v4112 = vadd.f32 %v4108, %v2242
        %v4113 = vadd.f32 %v4109, %v2242
        %v4114 = vadd.f32 %v4110, %v2242
        %v4115 = vadd.f32 %v4111, %v2242
        %v4116 = vpack.c.bf16 %v4113, %v4112
        %v4117 = vpack.c.bf16 %v4115, %v4114
        %4118 = vmatprep.subr.bf16.mxu0 %v2396
        %4119 = vmatpush1.bf16.msra.mxu0 %v2395
        %4120 = vmatprep.subr.bf16.mxu0 %v2392
        %4121 = vmatpush1.bf16.msra.mxu0 %v2391
        %4122 = vmatprep.subr.bf16.mxu0 %v2388
        %4123 = vmatpush1.bf16.msra.mxu0 %v2387
        %4124 = vmatprep.subr.bf16.mxu0 %v2384
        %4125 = vmatpush1.bf16.msra.mxu0 %v2383
        %4126 = vmatprep.subr.bf16.mxu0 %v2380
        %4127 = vmatpush1.bf16.msra.mxu0 %v2379
        %4128 = vmatprep.subr.bf16.mxu0 %v2376
        %4129 = vmatpush1.bf16.msra.mxu0 %v2375
        %4130 = vmatprep.subr.bf16.mxu0 %v2372
        %4131 = vmatpush1.bf16.msra.mxu0 %v2371
        %4132 = vmatprep.subr.bf16.mxu0 %v2368
        %4133 = vmatpush1.bf16.msra.mxu0 %v2367
        %4134 = vmatprep.subr.bf16.mxu0 0
        %4135 = vmatpush2.bf16.msra.mxu0 0
        %4136 = vmatprep.subr.bf16.mxu0 0
        %4137 = vmatpush2.bf16.msra.mxu0 0
        %4138 = vmatprep.subr.bf16.mxu0 0
        %4139 = vmatpush2.bf16.msra.mxu0 0
        %4140 = vmatprep.subr.bf16.mxu0 0
        %4141 = vmatpush2.bf16.msra.mxu0 0
        %4142 = vmatprep.subr.bf16.mxu0 0
        %4143 = vmatpush2.bf16.msra.mxu0 0
        %4144 = vmatprep.subr.bf16.mxu0 0
        %4145 = vmatpush2.bf16.msra.mxu0 0
        %4146 = vmatprep.subr.bf16.mxu0 0
        %4147 = vmatpush2.bf16.msra.mxu0 0
        %4148 = vmatprep.subr.bf16.mxu0 0
        %4149 = vmatpush2.bf16.msra.mxu0 0
        %4150 = vmatprep.mubr.bf16.mxu0 0
        %4151 = vmatmul.mubr.bf16.gmra.mxu0 %v4116
        %v4152 = vpop.f32.mrf.mxu0
        %v4153 = vadd.f32 %v2254, %v4152
        %v4154 = vpop.f32.mrf.mxu0
        %v4155 = vadd.f32 %v2258, %v4154
        %v4156 = vpop.f32.mrf.mxu0
        %v4157 = vadd.f32 %v2254, %v4156
        %v4158 = vpop.f32.mrf.mxu0
        %v4159 = vadd.f32 %v2258, %v4158
        %4160 = vmatprep.mubr.bf16.mxu0 0
        %4161 = vmatmul.mubr.bf16.gmra.mxu0 %v4117
        %v4162 = vpop.f32.mrf.mxu0
        %v4163 = vadd.f32 %v2254, %v4162
        %v4164 = vpop.f32.mrf.mxu0
        %v4165 = vadd.f32 %v2258, %v4164
        %v4166 = vpop.f32.mrf.mxu0
        %v4167 = vadd.f32 %v2254, %v4166
        %v4168 = vpop.f32.mrf.mxu0
        %v4169 = vadd.f32 %v2258, %v4168
        %4170 = vdwg.mxu0
        %4171 = vmatprep.subr.bf16.mxu0 %v2398
        %4172 = vmatpush1.bf16.msra.mxu0 %v2397
        %4173 = vmatprep.subr.bf16.mxu0 %v2394
        %4174 = vmatpush1.bf16.msra.mxu0 %v2393
        %4175 = vmatprep.subr.bf16.mxu0 %v2390
        %4176 = vmatpush1.bf16.msra.mxu0 %v2389
        %4177 = vmatprep.subr.bf16.mxu0 %v2386
        %4178 = vmatpush1.bf16.msra.mxu0 %v2385
        %4179 = vmatprep.subr.bf16.mxu0 %v2382
        %4180 = vmatpush1.bf16.msra.mxu0 %v2381
        %4181 = vmatprep.subr.bf16.mxu0 %v2378
        %4182 = vmatpush1.bf16.msra.mxu0 %v2377
        %4183 = vmatprep.subr.bf16.mxu0 %v2374
        %4184 = vmatpush1.bf16.msra.mxu0 %v2373
        %4185 = vmatprep.subr.bf16.mxu0 %v2370
        %4186 = vmatpush1.bf16.msra.mxu0 %v2369
        %4187 = vmatprep.subr.bf16.mxu0 0
        %4188 = vmatpush2.bf16.msra.mxu0 0
        %4189 = vmatprep.subr.bf16.mxu0 0
        %4190 = vmatpush2.bf16.msra.mxu0 0
        %4191 = vmatprep.subr.bf16.mxu0 0
        %4192 = vmatpush2.bf16.msra.mxu0 0
        %4193 = vmatprep.subr.bf16.mxu0 0
        %4194 = vmatpush2.bf16.msra.mxu0 0
        %4195 = vmatprep.subr.bf16.mxu0 0
        %4196 = vmatpush2.bf16.msra.mxu0 0
        %4197 = vmatprep.subr.bf16.mxu0 0
        %4198 = vmatpush2.bf16.msra.mxu0 0
        %4199 = vmatprep.subr.bf16.mxu0 0
        %4200 = vmatpush2.bf16.msra.mxu0 0
        %4201 = vmatprep.subr.bf16.mxu0 0
        %4202 = vmatpush2.bf16.msra.mxu0 0
        %4203 = vmatprep.mubr.bf16.mxu0 0
        %4204 = vmatmul.mubr.bf16.gmra.mxu0 %v4116
        %v4205 = vpop.f32.mrf.mxu0
        %v4206 = vadd.f32 %v2262, %v4205
        %v4207 = vpop.f32.mrf.mxu0
        %v4208 = vadd.f32 %v2266, %v4207
        %v4209 = vpop.f32.mrf.mxu0
        %v4210 = vadd.f32 %v2262, %v4209
        %v4211 = vpop.f32.mrf.mxu0
        %v4212 = vadd.f32 %v2266, %v4211
        %4213 = vmatprep.mubr.bf16.mxu0 0
        %4214 = vmatmul.mubr.bf16.gmra.mxu0 %v4117
        %v4215 = vpop.f32.mrf.mxu0
        %v4216 = vadd.f32 %v2262, %v4215
        %v4217 = vpop.f32.mrf.mxu0
        %v4218 = vadd.f32 %v2266, %v4217
        %v4219 = vpop.f32.mrf.mxu0
        %v4220 = vadd.f32 %v2262, %v4219
        %v4221 = vpop.f32.mrf.mxu0
        %v4222 = vadd.f32 %v2266, %v4221
        %4223 = vdwg.mxu0
        %v4224 = vmul.f32 %v4153, %v4153
        %v4225 = vmul.f32 %v4155, %v4155
        %v4226 = vmul.f32 %v4206, %v4206
        %v4227 = vmul.f32 %v4208, %v4208
        %v4228 = vmul.f32 %v4157, %v4157
        %v4229 = vmul.f32 %v4159, %v4159
        %v4230 = vmul.f32 %v4210, %v4210
        %v4231 = vmul.f32 %v4212, %v4212
        %v4232 = vmul.f32 %v4163, %v4163
        %v4233 = vmul.f32 %v4165, %v4165
        %v4234 = vmul.f32 %v4216, %v4216
        %v4235 = vmul.f32 %v4218, %v4218
        %v4236 = vmul.f32 %v4167, %v4167
        %v4237 = vmul.f32 %v4169, %v4169
        %v4238 = vmul.f32 %v4220, %v4220
        %v4239 = vmul.f32 %v4222, %v4222
        %v4240 = vmul.f32 %v4153, %v4224
        %v4241 = vmul.f32 %v4155, %v4225
        %v4242 = vmul.f32 %v4206, %v4226
        %v4243 = vmul.f32 %v4208, %v4227
        %v4244 = vmul.f32 %v4157, %v4228
        %v4245 = vmul.f32 %v4159, %v4229
        %v4246 = vmul.f32 %v4210, %v4230
        %v4247 = vmul.f32 %v4212, %v4231
        %v4248 = vmul.f32 %v4163, %v4232
        %v4249 = vmul.f32 %v4165, %v4233
        %v4250 = vmul.f32 %v4216, %v4234
        %v4251 = vmul.f32 %v4218, %v4235
        %v4252 = vmul.f32 %v4167, %v4236
        %v4253 = vmul.f32 %v4169, %v4237
        %v4254 = vmul.f32 %v4220, %v4238
        %v4255 = vmul.f32 %v4222, %v4239
        %v4256 = vmul.f32 %v4240, 0.044715
        %v4257 = vmul.f32 %v4241, 0.044715
        %v4258 = vmul.f32 %v4242, 0.044715
        %v4259 = vmul.f32 %v4243, 0.044715
        %v4260 = vmul.f32 %v4244, 0.044715
        %v4261 = vmul.f32 %v4245, 0.044715
        %v4262 = vmul.f32 %v4246, 0.044715
        %v4263 = vmul.f32 %v4247, 0.044715
        %v4264 = vmul.f32 %v4248, 0.044715
        %v4265 = vmul.f32 %v4249, 0.044715
        %v4266 = vmul.f32 %v4250, 0.044715
        %v4267 = vmul.f32 %v4251, 0.044715
        %v4268 = vmul.f32 %v4252, 0.044715
        %v4269 = vmul.f32 %v4253, 0.044715
        %v4270 = vmul.f32 %v4254, 0.044715
        %v4271 = vmul.f32 %v4255, 0.044715
        %v4272 = vadd.f32 %v4153, %v4256
        %v4273 = vadd.f32 %v4155, %v4257
        %v4274 = vadd.f32 %v4206, %v4258
        %v4275 = vadd.f32 %v4208, %v4259
        %v4276 = vadd.f32 %v4157, %v4260
        %v4277 = vadd.f32 %v4159, %v4261
        %v4278 = vadd.f32 %v4210, %v4262
        %v4279 = vadd.f32 %v4212, %v4263
        %v4280 = vadd.f32 %v4163, %v4264
        %v4281 = vadd.f32 %v4165, %v4265
        %v4282 = vadd.f32 %v4216, %v4266
        %v4283 = vadd.f32 %v4218, %v4267
        %v4284 = vadd.f32 %v4167, %v4268
        %v4285 = vadd.f32 %v4169, %v4269
        %v4286 = vadd.f32 %v4220, %v4270
        %v4287 = vadd.f32 %v4222, %v4271
        %v4288 = vmul.f32 %v4272, 0.7978846
        %v4289 = vmul.f32 %v4273, 0.7978846
        %v4290 = vmul.f32 %v4274, 0.7978846
        %v4291 = vmul.f32 %v4275, 0.7978846
        %v4292 = vmul.f32 %v4276, 0.7978846
        %v4293 = vmul.f32 %v4277, 0.7978846
        %v4294 = vmul.f32 %v4278, 0.7978846
        %v4295 = vmul.f32 %v4279, 0.7978846
        %v4296 = vmul.f32 %v4280, 0.7978846
        %v4297 = vmul.f32 %v4281, 0.7978846
        %v4298 = vmul.f32 %v4282, 0.7978846
        %v4299 = vmul.f32 %v4283, 0.7978846
        %v4300 = vmul.f32 %v4284, 0.7978846
        %v4301 = vmul.f32 %v4285, 0.7978846
        %v4302 = vmul.f32 %v4286, 0.7978846
        %v4303 = vmul.f32 %v4287, 0.7978846
        %v4304 = vtanh.pop %v4288
        %v4305 = vtanh.pop %v4289
        %v4306 = vtanh.pop %v4290
        %v4307 = vtanh.pop %v4291
        %v4308 = vtanh.pop %v4292
        %v4309 = vtanh.pop %v4293
        %v4310 = vtanh.pop %v4294
        %v4311 = vtanh.pop %v4295
        %v4312 = vtanh.pop %v4296
        %v4313 = vtanh.pop %v4297
        %v4314 = vtanh.pop %v4298
        %v4315 = vtanh.pop %v4299
        %v4316 = vtanh.pop %v4300
        %v4317 = vtanh.pop %v4301
        %v4318 = vtanh.pop %v4302
        %v4319 = vtanh.pop %v4303
        %v4320 = vadd.f32 %v4304, 1.0
        %v4321 = vadd.f32 %v4305, 1.0
        %v4322 = vadd.f32 %v4306, 1.0
        %v4323 = vadd.f32 %v4307, 1.0
        %v4324 = vadd.f32 %v4308, 1.0
        %v4325 = vadd.f32 %v4309, 1.0
        %v4326 = vadd.f32 %v4310, 1.0
        %v4327 = vadd.f32 %v4311, 1.0
        %v4328 = vadd.f32 %v4312, 1.0
        %v4329 = vadd.f32 %v4313, 1.0
        %v4330 = vadd.f32 %v4314, 1.0
        %v4331 = vadd.f32 %v4315, 1.0
        %v4332 = vadd.f32 %v4316, 1.0
        %v4333 = vadd.f32 %v4317, 1.0
        %v4334 = vadd.f32 %v4318, 1.0
        %v4335 = vadd.f32 %v4319, 1.0
        %v4336 = vmul.f32 %v4320, 0.5
        %v4337 = vmul.f32 %v4321, 0.5
        %v4338 = vmul.f32 %v4322, 0.5
        %v4339 = vmul.f32 %v4323, 0.5
        %v4340 = vmul.f32 %v4324, 0.5
        %v4341 = vmul.f32 %v4325, 0.5
        %v4342 = vmul.f32 %v4326, 0.5
        %v4343 = vmul.f32 %v4327, 0.5
        %v4344 = vmul.f32 %v4328, 0.5
        %v4345 = vmul.f32 %v4329, 0.5
        %v4346 = vmul.f32 %v4330, 0.5
        %v4347 = vmul.f32 %v4331, 0.5
        %v4348 = vmul.f32 %v4332, 0.5
        %v4349 = vmul.f32 %v4333, 0.5
        %v4350 = vmul.f32 %v4334, 0.5
        %v4351 = vmul.f32 %v4335, 0.5
        %v4352 = vmul.f32 %v4153, %v4336
        %v4353 = vmul.f32 %v4155, %v4337
        %v4354 = vmul.f32 %v4206, %v4338
        %v4355 = vmul.f32 %v4208, %v4339
        %v4356 = vmul.f32 %v4157, %v4340
        %v4357 = vmul.f32 %v4159, %v4341
        %v4358 = vmul.f32 %v4210, %v4342
        %v4359 = vmul.f32 %v4212, %v4343
        %v4360 = vmul.f32 %v4163, %v4344
        %v4361 = vmul.f32 %v4165, %v4345
        %v4362 = vmul.f32 %v4216, %v4346
        %v4363 = vmul.f32 %v4218, %v4347
        %v4364 = vmul.f32 %v4167, %v4348
        %v4365 = vmul.f32 %v4169, %v4349
        %v4366 = vmul.f32 %v4220, %v4350
        %v4367 = vmul.f32 %v4222, %v4351
        %v4368 = vpack.c.bf16 %v4356, %v4352
        %v4369 = vpack.c.bf16 %v4357, %v4353
        %v4370 = vpack.c.bf16 %v4358, %v4354
        %v4371 = vpack.c.bf16 %v4359, %v4355
        %v4372 = vpack.c.bf16 %v4364, %v4360
        %v4373 = vpack.c.bf16 %v4365, %v4361
        %v4374 = vpack.c.bf16 %v4366, %v4362
        %v4375 = vpack.c.bf16 %v4367, %v4363
        %4376 = vmatprep.subr.bf16.mxu0 0
        %4377 = vmatpush1.bf16.msra.mxu0 %v2830
        %4378 = vmatprep.subr.bf16.mxu0 0
        %4379 = vmatpush1.bf16.msra.mxu0 %v2829
        %4380 = vmatprep.subr.bf16.mxu0 0
        %4381 = vmatpush1.bf16.msra.mxu0 %v2828
        %4382 = vmatprep.subr.bf16.mxu0 0
        %4383 = vmatpush1.bf16.msra.mxu0 %v2827
        %4384 = vmatprep.subr.bf16.mxu0 0
        %4385 = vmatpush1.bf16.msra.mxu0 %v2826
        %4386 = vmatprep.subr.bf16.mxu0 0
        %4387 = vmatpush1.bf16.msra.mxu0 %v2825
        %4388 = vmatprep.subr.bf16.mxu0 0
        %4389 = vmatpush1.bf16.msra.mxu0 %v2824
        %4390 = vmatprep.subr.bf16.mxu0 0
        %4391 = vmatpush1.bf16.msra.mxu0 %v2823
        %4392 = vmatprep.subr.bf16.mxu0 0
        %4393 = vmatpush2.bf16.msra.mxu0 %v2838
        %4394 = vmatprep.subr.bf16.mxu0 0
        %4395 = vmatpush2.bf16.msra.mxu0 %v2837
        %4396 = vmatprep.subr.bf16.mxu0 0
        %4397 = vmatpush2.bf16.msra.mxu0 %v2836
        %4398 = vmatprep.subr.bf16.mxu0 0
        %4399 = vmatpush2.bf16.msra.mxu0 %v2835
        %4400 = vmatprep.subr.bf16.mxu0 0
        %4401 = vmatpush2.bf16.msra.mxu0 %v2834
        %4402 = vmatprep.subr.bf16.mxu0 0
        %4403 = vmatpush2.bf16.msra.mxu0 %v2833
        %4404 = vmatprep.subr.bf16.mxu0 0
        %4405 = vmatpush2.bf16.msra.mxu0 %v2832
        %4406 = vmatprep.subr.bf16.mxu0 0
        %4407 = vmatpush2.bf16.msra.mxu0 %v2831
        %4408 = vmatprep.mubr.bf16.mxu0 %v4369
        %4409 = vmatmul.mubr.bf16.gmra.mxu0 %v4368
        %v4410 = vpop.f32.mrf.mxu0
        %v4411 = vpop.f32.mrf.mxu0
        %v4412 = vpop.f32.mrf.mxu0
        %v4413 = vpop.f32.mrf.mxu0
        %4414 = vmatprep.mubr.bf16.mxu0 %v4373
        %4415 = vmatmul.mubr.bf16.gmra.mxu0 %v4372
        %v4416 = vpop.f32.mrf.mxu0
        %v4417 = vadd.f32 %v2693, %v4416
        %v4418 = vpop.f32.mrf.mxu0
        %v4419 = vpop.f32.mrf.mxu0
        %v4420 = vadd.f32 %v2693, %v4419
        %v4421 = vpop.f32.mrf.mxu0
        %4422 = vdwg.mxu0
        %4423 = vmatprep.subr.bf16.mxu0 0
        %4424 = vmatpush1.bf16.msra.mxu0 %v2846
        %4425 = vmatprep.subr.bf16.mxu0 0
        %4426 = vmatpush1.bf16.msra.mxu0 %v2845
        %4427 = vmatprep.subr.bf16.mxu0 0
        %4428 = vmatpush1.bf16.msra.mxu0 %v2844
        %4429 = vmatprep.subr.bf16.mxu0 0
        %4430 = vmatpush1.bf16.msra.mxu0 %v2843
        %4431 = vmatprep.subr.bf16.mxu0 0
        %4432 = vmatpush1.bf16.msra.mxu0 %v2842
        %4433 = vmatprep.subr.bf16.mxu0 0
        %4434 = vmatpush1.bf16.msra.mxu0 %v2841
        %4435 = vmatprep.subr.bf16.mxu0 0
        %4436 = vmatpush1.bf16.msra.mxu0 %v2840
        %4437 = vmatprep.subr.bf16.mxu0 0
        %4438 = vmatpush1.bf16.msra.mxu0 %v2839
        %4439 = vmatprep.subr.bf16.mxu0 0
        %4440 = vmatpush2.bf16.msra.mxu0 %v2854
        %4441 = vmatprep.subr.bf16.mxu0 0
        %4442 = vmatpush2.bf16.msra.mxu0 %v2853
        %4443 = vmatprep.subr.bf16.mxu0 0
        %4444 = vmatpush2.bf16.msra.mxu0 %v2852
        %4445 = vmatprep.subr.bf16.mxu0 0
        %4446 = vmatpush2.bf16.msra.mxu0 %v2851
        %4447 = vmatprep.subr.bf16.mxu0 0
        %4448 = vmatpush2.bf16.msra.mxu0 %v2850
        %4449 = vmatprep.subr.bf16.mxu0 0
        %4450 = vmatpush2.bf16.msra.mxu0 %v2849
        %4451 = vmatprep.subr.bf16.mxu0 0
        %4452 = vmatpush2.bf16.msra.mxu0 %v2848
        %4453 = vmatprep.subr.bf16.mxu0 0
        %4454 = vmatpush2.bf16.msra.mxu0 %v2847
        %4455 = vmatprep.mubr.bf16.mxu0 %v4371
        %4456 = vmatmul.mubr.bf16.gmra.mxu0 %v4370
        %v4457 = vpop.f32.mrf.mxu0
        %v4458 = vpop.f32.mrf.mxu0
        %v4459 = vpop.f32.mrf.mxu0
        %v4460 = vpop.f32.mrf.mxu0
        %4461 = vmatprep.mubr.bf16.mxu0 %v4375
        %4462 = vmatmul.mubr.bf16.gmra.mxu0 %v4374
        %v4463 = vpop.f32.mrf.mxu0
        %v4464 = vadd.f32 %v4417, %v4463
        %v4465 = vpop.f32.mrf.mxu0
        %v4466 = vpop.f32.mrf.mxu0
        %v4467 = vadd.f32 %v4420, %v4466
        %v4468 = vpop.f32.mrf.mxu0
        %4469 = vdwg.mxu0
        %v4470 = vadd.f32 %v4114, %v4464
        %v4471 = vadd.f32 %v4115, %v4467
        %4472 = vadd.xlane.f32.xlu0 %v4470
        %v4473 = vpop.xlane.xlu0 %4472
        %v4474 = vsel %vm2186, %v4471, 0.0
        %4475 = vadd.xlane.f32.xlu0 %v4474
        %v4476 = vpop.xlane.xlu0 %4475
        %v4477 = vmul.f32 %v4473, %v2190
        %v4478 = vmul.f32 %v4476, %v2190
        %v4479 = vsub.f32 %v4470, %v4477
        %v4480 = vsub.f32 %v4471, %v4478
        %v4481 = vmul.f32 %v4479, %v4479
        %v4482 = vmul.f32 %v4480, %v4480
        %4483 = vadd.xlane.f32.xlu0 %v4481
        %v4484 = vpop.xlane.xlu0 %4483
        %v4485 = vsel %vm2186, %v4482, 0.0
        %4486 = vadd.xlane.f32.xlu0 %v4485
        %v4487 = vpop.xlane.xlu0 %4486
        %v4488 = vmul.f32 %v4484, %v2190
        %v4489 = vmul.f32 %v4487, %v2190
        %v4490 = vadd.f32 %v4488, 1e-05
        %v4491 = vadd.f32 %v4489, 1e-05
        %v4492 = vrsqrt.pop %v4490
        %v4493 = vrsqrt.pop %v4491
        %v4494 = vmul.f32 %v4479, %v4492
        %v4495 = vmul.f32 %v4480, %v4493
        %v4496 = vmul.f32 %v4494, %v3039
        %v4497 = vmul.f32 %v4495, %v3039
        %v4498 = vadd.f32 %v4496, %v3049
        %v4499 = vadd.f32 %v4497, %v3049
        %v4500 = vpack.c.bf16 %v4499, %v4498
        %v4501 = vld [vmem:[#allocation9] sm:$0xff]
        %v4502 = vld [vmem:[#allocation9 + $0x8] sm:$0xff]
        %v4503 = vld [vmem:[#allocation9 + $0x10] sm:$0xff]
        %v4504 = vld [vmem:[#allocation9 + $0x18] sm:$0xff]
        %v4505 = vld [vmem:[#allocation9 + $0x20] sm:$0xff]
        %v4506 = vld [vmem:[#allocation9 + $0x28] sm:$0xff]
        %v4507 = vld [vmem:[#allocation9 + $0x30] sm:$0xff]
        %v4508 = vld [vmem:[#allocation9 + $0x38] sm:$0xff]
        %v4509 = vld [vmem:[#allocation9 + $0x40] sm:$0xff]
        %v4510 = vld [vmem:[#allocation9 + $0x48] sm:$0xff]
        %v4511 = vld [vmem:[#allocation9 + $0x50] sm:$0xff]
        %v4512 = vld [vmem:[#allocation9 + $0x58] sm:$0xff]
        %v4513 = vld [vmem:[#allocation9 + $0x60] sm:$0xff]
        %v4514 = vld [vmem:[#allocation9 + $0x68] sm:$0xff]
        %v4515 = vld [vmem:[#allocation9 + $0x70] sm:$0xff]
        %v4516 = vld [vmem:[#allocation9 + $0x78] sm:$0xff]
        %v4517 = vld [vmem:[#allocation9 + $0x80] sm:$0xff]
        %v4518 = vld [vmem:[#allocation9 + $0x88] sm:$0xff]
        %v4519 = vld [vmem:[#allocation9 + $0x90] sm:$0xff]
        %v4520 = vld [vmem:[#allocation9 + $0x98] sm:$0xff]
        %v4521 = vld [vmem:[#allocation9 + $0xa0] sm:$0xff]
        %v4522 = vld [vmem:[#allocation9 + $0xa8] sm:$0xff]
        %v4523 = vld [vmem:[#allocation9 + $0xb0] sm:$0xff]
        %v4524 = vld [vmem:[#allocation9 + $0xb8] sm:$0xff]
        %v4525 = vld [vmem:[#allocation9 + $0xc0] sm:$0xff]
        %v4526 = vld [vmem:[#allocation9 + $0xc8] sm:$0xff]
        %v4527 = vld [vmem:[#allocation9 + $0xd0] sm:$0xff]
        %v4528 = vld [vmem:[#allocation9 + $0xd8] sm:$0xff]
        %v4529 = vld [vmem:[#allocation9 + $0xe0] sm:$0xff]
        %v4530 = vld [vmem:[#allocation9 + $0xe8] sm:$0xff]
        %v4531 = vld [vmem:[#allocation9 + $0xf0] sm:$0xff]
        %v4532 = vld [vmem:[#allocation9 + $0xf8] sm:$0xff]
        %v4533 = vld [vmem:[#allocation9 + $0x100] sm:$0xff]
        %v4534 = vld [vmem:[#allocation9 + $0x108] sm:$0xff]
        %v4535 = vld [vmem:[#allocation9 + $0x110] sm:$0xff]
        %v4536 = vld [vmem:[#allocation9 + $0x118] sm:$0xff]
        %v4537 = vld [vmem:[#allocation9 + $0x120] sm:$0xff]
        %v4538 = vld [vmem:[#allocation9 + $0x128] sm:$0xff]
        %v4539 = vld [vmem:[#allocation9 + $0x130] sm:$0xff]
        %v4540 = vld [vmem:[#allocation9 + $0x138] sm:$0xff]
        %v4541 = vld [vmem:[#allocation9 + $0x140] sm:$0xff]
        %v4542 = vld [vmem:[#allocation9 + $0x148] sm:$0xff]
        %v4543 = vld [vmem:[#allocation9 + $0x150] sm:$0xff]
        %v4544 = vld [vmem:[#allocation9 + $0x158] sm:$0xff]
        %v4545 = vld [vmem:[#allocation9 + $0x160] sm:$0xff]
        %v4546 = vld [vmem:[#allocation9 + $0x168] sm:$0xff]
        %v4547 = vld [vmem:[#allocation9 + $0x170] sm:$0xff]
        %v4548 = vld [vmem:[#allocation9 + $0x178] sm:$0xff]
        %v4549 = vld [vmem:[#allocation9 + $0x180] sm:$0xff]
        %v4550 = vld [vmem:[#allocation9 + $0x188] sm:$0xff]
        %v4551 = vld [vmem:[#allocation9 + $0x190] sm:$0xff]
        %v4552 = vld [vmem:[#allocation9 + $0x198] sm:$0xff]
        %v4553 = vld [vmem:[#allocation9 + $0x1a0] sm:$0xff]
        %v4554 = vld [vmem:[#allocation9 + $0x1a8] sm:$0xff]
        %v4555 = vld [vmem:[#allocation9 + $0x1b0] sm:$0xff]
        %v4556 = vld [vmem:[#allocation9 + $0x1b8] sm:$0xff]
        %v4557 = vld [vmem:[#allocation9 + $0x1c0] sm:$0xff]
        %v4558 = vld [vmem:[#allocation9 + $0x1c8] sm:$0xff]
        %v4559 = vld [vmem:[#allocation9 + $0x1d0] sm:$0xff]
        %v4560 = vld [vmem:[#allocation9 + $0x1d8] sm:$0xff]
        %v4561 = vld [vmem:[#allocation9 + $0x1e0] sm:$0xff]
        %v4562 = vld [vmem:[#allocation9 + $0x1e8] sm:$0xff]
        %v4563 = vld [vmem:[#allocation9 + $0x1f0] sm:$0xff]
        %v4564 = vld [vmem:[#allocation9 + $0x1f8] sm:$0xff]
        %v4629 = vunpack.c.l.b16 %v4501
        %v4630 = vunpack.c.h.b16 %v4501
        %v4631 = vunpack.c.l.b16 %v4502
        %v4632 = vunpack.c.h.b16 %v4502
        %v4633 = vunpack.c.l.b16 %v4503
        %v4634 = vunpack.c.h.b16 %v4503
        %v4635 = vunpack.c.l.b16 %v4504
        %v4636 = vunpack.c.h.b16 %v4504
        %v4637 = vunpack.c.l.b16 %v4505
        %v4638 = vunpack.c.h.b16 %v4505
        %v4639 = vunpack.c.l.b16 %v4506
        %v4640 = vunpack.c.h.b16 %v4506
        %v4641 = vunpack.c.l.b16 %v4507
        %v4642 = vunpack.c.h.b16 %v4507
        %v4643 = vunpack.c.l.b16 %v4508
        %v4644 = vunpack.c.h.b16 %v4508
        %v4645 = vunpack.c.l.b16 %v4509
        %v4646 = vunpack.c.h.b16 %v4509
        %v4647 = vunpack.c.l.b16 %v4510
        %v4648 = vunpack.c.h.b16 %v4510
        %v4649 = vunpack.c.l.b16 %v4511
        %v4650 = vunpack.c.h.b16 %v4511
        %v4651 = vunpack.c.l.b16 %v4512
        %v4652 = vunpack.c.h.b16 %v4512
        %v4653 = vunpack.c.l.b16 %v4513
        %v4654 = vunpack.c.h.b16 %v4513
        %v4655 = vunpack.c.l.b16 %v4514
        %v4656 = vunpack.c.h.b16 %v4514
        %v4657 = vunpack.c.l.b16 %v4515
        %v4658 = vunpack.c.h.b16 %v4515
        %v4659 = vunpack.c.l.b16 %v4516
        %v4660 = vunpack.c.h.b16 %v4516
        %v4661 = vunpack.c.l.b16 %v4517
        %v4662 = vunpack.c.h.b16 %v4517
        %v4663 = vunpack.c.l.b16 %v4518
        %v4664 = vunpack.c.h.b16 %v4518
        %v4665 = vunpack.c.l.b16 %v4519
        %v4666 = vunpack.c.h.b16 %v4519
        %v4667 = vunpack.c.l.b16 %v4520
        %v4668 = vunpack.c.h.b16 %v4520
        %v4669 = vunpack.c.l.b16 %v4521
        %v4670 = vunpack.c.h.b16 %v4521
        %v4671 = vunpack.c.l.b16 %v4522
        %v4672 = vunpack.c.h.b16 %v4522
        %v4673 = vunpack.c.l.b16 %v4523
        %v4674 = vunpack.c.h.b16 %v4523
        %v4675 = vunpack.c.l.b16 %v4524
        %v4676 = vunpack.c.h.b16 %v4524
        %v4677 = vunpack.c.l.b16 %v4525
        %v4678 = vunpack.c.h.b16 %v4525
        %v4679 = vunpack.c.l.b16 %v4526
        %v4680 = vunpack.c.h.b16 %v4526
        %v4681 = vunpack.c.l.b16 %v4527
        %v4682 = vunpack.c.h.b16 %v4527
        %v4683 = vunpack.c.l.b16 %v4528
        %v4684 = vunpack.c.h.b16 %v4528
        %v4685 = vunpack.c.l.b16 %v4529
        %v4686 = vunpack.c.h.b16 %v4529
        %v4687 = vunpack.c.l.b16 %v4530
        %v4688 = vunpack.c.h.b16 %v4530
        %v4689 = vunpack.c.l.b16 %v4531
        %v4690 = vunpack.c.h.b16 %v4531
        %v4691 = vunpack.c.l.b16 %v4532
        %v4692 = vunpack.c.h.b16 %v4532
        %v4693 = vunpack.c.l.b16 %v4533
        %v4694 = vunpack.c.h.b16 %v4533
        %v4695 = vunpack.c.l.b16 %v4534
        %v4696 = vunpack.c.h.b16 %v4534
        %v4697 = vunpack.c.l.b16 %v4535
        %v4698 = vunpack.c.h.b16 %v4535
        %v4699 = vunpack.c.l.b16 %v4536
        %v4700 = vunpack.c.h.b16 %v4536
        %v4701 = vunpack.c.l.b16 %v4537
        %v4702 = vunpack.c.h.b16 %v4537
        %v4703 = vunpack.c.l.b16 %v4538
        %v4704 = vunpack.c.h.b16 %v4538
        %v4705 = vunpack.c.l.b16 %v4539
        %v4706 = vunpack.c.h.b16 %v4539
        %v4707 = vunpack.c.l.b16 %v4540
        %v4708 = vunpack.c.h.b16 %v4540
        %v4709 = vunpack.c.l.b16 %v4541
        %v4710 = vunpack.c.h.b16 %v4541
        %v4711 = vunpack.c.l.b16 %v4542
        %v4712 = vunpack.c.h.b16 %v4542
        %v4713 = vunpack.c.l.b16 %v4543
        %v4714 = vunpack.c.h.b16 %v4543
        %v4715 = vunpack.c.l.b16 %v4544
        %v4716 = vunpack.c.h.b16 %v4544
        %v4717 = vunpack.c.l.b16 %v4545
        %v4718 = vunpack.c.h.b16 %v4545
        %v4719 = vunpack.c.l.b16 %v4546
        %v4720 = vunpack.c.h.b16 %v4546
        %v4721 = vunpack.c.l.b16 %v4547
        %v4722 = vunpack.c.h.b16 %v4547
        %v4723 = vunpack.c.l.b16 %v4548
        %v4724 = vunpack.c.h.b16 %v4548
        %v4725 = vunpack.c.l.b16 %v4549
        %v4726 = vunpack.c.h.b16 %v4549
        %v4727 = vunpack.c.l.b16 %v4550
        %v4728 = vunpack.c.h.b16 %v4550
        %v4729 = vunpack.c.l.b16 %v4551
        %v4730 = vunpack.c.h.b16 %v4551
        %v4731 = vunpack.c.l.b16 %v4552
        %v4732 = vunpack.c.h.b16 %v4552
        %v4733 = vunpack.c.l.b16 %v4553
        %v4734 = vunpack.c.h.b16 %v4553
        %v4735 = vunpack.c.l.b16 %v4554
        %v4736 = vunpack.c.h.b16 %v4554
        %v4737 = vunpack.c.l.b16 %v4555
        %v4738 = vunpack.c.h.b16 %v4555
        %v4739 = vunpack.c.l.b16 %v4556
        %v4740 = vunpack.c.h.b16 %v4556
        %v4741 = vunpack.c.l.b16 %v4557
        %v4742 = vunpack.c.h.b16 %v4557
        %v4743 = vunpack.c.l.b16 %v4558
        %v4744 = vunpack.c.h.b16 %v4558
        %v4745 = vunpack.c.l.b16 %v4559
        %v4746 = vunpack.c.h.b16 %v4559
        %v4747 = vunpack.c.l.b16 %v4560
        %v4748 = vunpack.c.h.b16 %v4560
        %v4749 = vunpack.c.l.b16 %v4561
        %v4750 = vunpack.c.h.b16 %v4561
        %v4751 = vunpack.c.l.b16 %v4562
        %v4752 = vunpack.c.h.b16 %v4562
        %v4753 = vunpack.c.l.b16 %v4563
        %v4754 = vunpack.c.h.b16 %v4563
        %v4755 = vunpack.c.l.b16 %v4564
        %v4756 = vunpack.c.h.b16 %v4564
        %v4757 = vpack.c.b16 %v4637, %v4629
        %v4758 = vpack.c.b16 %v4638, %v4630
        %v4759 = vpack.c.b16 %v4639, %v4631
        %v4760 = vpack.c.b16 %v4640, %v4632
        %v4761 = vpack.c.b16 %v4641, %v4633
        %v4762 = vpack.c.b16 %v4642, %v4634
        %v4763 = vpack.c.b16 %v4643, %v4635
        %v4764 = vpack.c.b16 %v4644, %v4636
        %v4765 = vpack.c.b16 %v4653, %v4645
        %v4766 = vpack.c.b16 %v4654, %v4646
        %v4767 = vpack.c.b16 %v4655, %v4647
        %v4768 = vpack.c.b16 %v4656, %v4648
        %v4769 = vpack.c.b16 %v4657, %v4649
        %v4770 = vpack.c.b16 %v4658, %v4650
        %v4771 = vpack.c.b16 %v4659, %v4651
        %v4772 = vpack.c.b16 %v4660, %v4652
        %v4773 = vpack.c.b16 %v4669, %v4661
        %v4774 = vpack.c.b16 %v4670, %v4662
        %v4775 = vpack.c.b16 %v4671, %v4663
        %v4776 = vpack.c.b16 %v4672, %v4664
        %v4777 = vpack.c.b16 %v4673, %v4665
        %v4778 = vpack.c.b16 %v4674, %v4666
        %v4779 = vpack.c.b16 %v4675, %v4667
        %v4780 = vpack.c.b16 %v4676, %v4668
        %v4781 = vpack.c.b16 %v4685, %v4677
        %v4782 = vpack.c.b16 %v4686, %v4678
        %v4783 = vpack.c.b16 %v4687, %v4679
        %v4784 = vpack.c.b16 %v4688, %v4680
        %v4785 = vpack.c.b16 %v4689, %v4681
        %v4786 = vpack.c.b16 %v4690, %v4682
        %v4787 = vpack.c.b16 %v4691, %v4683
        %v4788 = vpack.c.b16 %v4692, %v4684
        %v4789 = vpack.c.b16 %v4701, %v4693
        %v4790 = vpack.c.b16 %v4702, %v4694
        %v4791 = vpack.c.b16 %v4703, %v4695
        %v4792 = vpack.c.b16 %v4704, %v4696
        %v4793 = vpack.c.b16 %v4705, %v4697
        %v4794 = vpack.c.b16 %v4706, %v4698
        %v4795 = vpack.c.b16 %v4707, %v4699
        %v4796 = vpack.c.b16 %v4708, %v4700
        %v4797 = vpack.c.b16 %v4717, %v4709
        %v4798 = vpack.c.b16 %v4718, %v4710
        %v4799 = vpack.c.b16 %v4719, %v4711
        %v4800 = vpack.c.b16 %v4720, %v4712
        %v4801 = vpack.c.b16 %v4721, %v4713
        %v4802 = vpack.c.b16 %v4722, %v4714
        %v4803 = vpack.c.b16 %v4723, %v4715
        %v4804 = vpack.c.b16 %v4724, %v4716
        %v4805 = vpack.c.b16 %v4733, %v4725
        %v4806 = vpack.c.b16 %v4734, %v4726
        %v4807 = vpack.c.b16 %v4735, %v4727
        %v4808 = vpack.c.b16 %v4736, %v4728
        %v4809 = vpack.c.b16 %v4737, %v4729
        %v4810 = vpack.c.b16 %v4738, %v4730
        %v4811 = vpack.c.b16 %v4739, %v4731
        %v4812 = vpack.c.b16 %v4740, %v4732
        %v4813 = vpack.c.b16 %v4749, %v4741
        %v4814 = vpack.c.b16 %v4750, %v4742
        %v4815 = vpack.c.b16 %v4751, %v4743
        %v4816 = vpack.c.b16 %v4752, %v4744
        %v4817 = vpack.c.b16 %v4753, %v4745
        %v4818 = vpack.c.b16 %v4754, %v4746
        %v4819 = vpack.c.b16 %v4755, %v4747
        %v4820 = vpack.c.b16 %v4756, %v4748
        %4885 = vmatprep.subr.bf16.mxu0 %v4814
        %4886 = vmatpush1.bf16.msra.mxu0 %v4813
        %4887 = vmatprep.subr.bf16.mxu0 %v4806
        %4888 = vmatpush1.bf16.msra.mxu0 %v4805
        %4889 = vmatprep.subr.bf16.mxu0 %v4798
        %4890 = vmatpush1.bf16.msra.mxu0 %v4797
        %4891 = vmatprep.subr.bf16.mxu0 %v4790
        %4892 = vmatpush1.bf16.msra.mxu0 %v4789
        %4893 = vmatprep.subr.bf16.mxu0 %v4782
        %4894 = vmatpush1.bf16.msra.mxu0 %v4781
        %4895 = vmatprep.subr.bf16.mxu0 %v4774
        %4896 = vmatpush1.bf16.msra.mxu0 %v4773
        %4897 = vmatprep.subr.bf16.mxu0 %v4766
        %4898 = vmatpush1.bf16.msra.mxu0 %v4765
        %4899 = vmatprep.subr.bf16.mxu0 %v4758
        %4900 = vmatpush1.bf16.msra.mxu0 %v4757
        %4901 = vmatprep.subr.bf16.mxu0 0
        %4902 = vmatpush2.bf16.msra.mxu0 0
        %4903 = vmatprep.subr.bf16.mxu0 0
        %4904 = vmatpush2.bf16.msra.mxu0 0
        %4905 = vmatprep.subr.bf16.mxu0 0
        %4906 = vmatpush2.bf16.msra.mxu0 0
        %4907 = vmatprep.subr.bf16.mxu0 0
        %4908 = vmatpush2.bf16.msra.mxu0 0
        %4909 = vmatprep.subr.bf16.mxu0 0
        %4910 = vmatpush2.bf16.msra.mxu0 0
        %4911 = vmatprep.subr.bf16.mxu0 0
        %4912 = vmatpush2.bf16.msra.mxu0 0
        %4913 = vmatprep.subr.bf16.mxu0 0
        %4914 = vmatpush2.bf16.msra.mxu0 0
        %4915 = vmatprep.subr.bf16.mxu0 0
        %4916 = vmatpush2.bf16.msra.mxu0 0
        %4917 = vmatprep.mubr.bf16.mxu0 0
        %4918 = vmatmul.mubr.bf16.gmra.mxu0 %v4500
        %v4919 = vpop.f32.mrf.mxu0
        %v4920 = vadd.f32 0.0, %v4919
        %v4921 = vpop.f32.mrf.mxu0
        %v4922 = vadd.f32 0.0, %v4921
        %v4923 = vpop.f32.mrf.mxu0
        %v4924 = vadd.f32 0.0, %v4923
        %v4925 = vpop.f32.mrf.mxu0
        %v4926 = vadd.f32 0.0, %v4925
        %4927 = vdwg.mxu0
        %4928 = vmatprep.subr.bf16.mxu0 %v4816
        %4929 = vmatpush1.bf16.msra.mxu0 %v4815
        %4930 = vmatprep.subr.bf16.mxu0 %v4808
        %4931 = vmatpush1.bf16.msra.mxu0 %v4807
        %4932 = vmatprep.subr.bf16.mxu0 %v4800
        %4933 = vmatpush1.bf16.msra.mxu0 %v4799
        %4934 = vmatprep.subr.bf16.mxu0 %v4792
        %4935 = vmatpush1.bf16.msra.mxu0 %v4791
        %4936 = vmatprep.subr.bf16.mxu0 %v4784
        %4937 = vmatpush1.bf16.msra.mxu0 %v4783
        %4938 = vmatprep.subr.bf16.mxu0 %v4776
        %4939 = vmatpush1.bf16.msra.mxu0 %v4775
        %4940 = vmatprep.subr.bf16.mxu0 %v4768
        %4941 = vmatpush1.bf16.msra.mxu0 %v4767
        %4942 = vmatprep.subr.bf16.mxu0 %v4760
        %4943 = vmatpush1.bf16.msra.mxu0 %v4759
        %4944 = vmatprep.subr.bf16.mxu0 0
        %4945 = vmatpush2.bf16.msra.mxu0 0
        %4946 = vmatprep.subr.bf16.mxu0 0
        %4947 = vmatpush2.bf16.msra.mxu0 0
        %4948 = vmatprep.subr.bf16.mxu0 0
        %4949 = vmatpush2.bf16.msra.mxu0 0
        %4950 = vmatprep.subr.bf16.mxu0 0
        %4951 = vmatpush2.bf16.msra.mxu0 0
        %4952 = vmatprep.subr.bf16.mxu0 0
        %4953 = vmatpush2.bf16.msra.mxu0 0
        %4954 = vmatprep.subr.bf16.mxu0 0
        %4955 = vmatpush2.bf16.msra.mxu0 0
        %4956 = vmatprep.subr.bf16.mxu0 0
        %4957 = vmatpush2.bf16.msra.mxu0 0
        %4958 = vmatprep.subr.bf16.mxu0 0
        %4959 = vmatpush2.bf16.msra.mxu0 0
        %4960 = vmatprep.mubr.bf16.mxu0 0
        %4961 = vmatmul.mubr.bf16.gmra.mxu0 %v4500
        %v4962 = vpop.f32.mrf.mxu0
        %v4963 = vadd.f32 0.0, %v4962
        %v4964 = vpop.f32.mrf.mxu0
        %v4965 = vadd.f32 0.0, %v4964
        %v4966 = vpop.f32.mrf.mxu0
        %v4967 = vadd.f32 0.0, %v4966
        %v4968 = vpop.f32.mrf.mxu0
        %v4969 = vadd.f32 0.0, %v4968
        %4970 = vdwg.mxu0
        %4971 = vmatprep.subr.bf16.mxu0 %v4818
        %4972 = vmatpush1.bf16.msra.mxu0 %v4817
        %4973 = vmatprep.subr.bf16.mxu0 %v4810
        %4974 = vmatpush1.bf16.msra.mxu0 %v4809
        %4975 = vmatprep.subr.bf16.mxu0 %v4802
        %4976 = vmatpush1.bf16.msra.mxu0 %v4801
        %4977 = vmatprep.subr.bf16.mxu0 %v4794
        %4978 = vmatpush1.bf16.msra.mxu0 %v4793
        %4979 = vmatprep.subr.bf16.mxu0 %v4786
        %4980 = vmatpush1.bf16.msra.mxu0 %v4785
        %4981 = vmatprep.subr.bf16.mxu0 %v4778
        %4982 = vmatpush1.bf16.msra.mxu0 %v4777
        %4983 = vmatprep.subr.bf16.mxu0 %v4770
        %4984 = vmatpush1.bf16.msra.mxu0 %v4769
        %4985 = vmatprep.subr.bf16.mxu0 %v4762
        %4986 = vmatpush1.bf16.msra.mxu0 %v4761
        %4987 = vmatprep.subr.bf16.mxu0 0
        %4988 = vmatpush2.bf16.msra.mxu0 0
        %4989 = vmatprep.subr.bf16.mxu0 0
        %4990 = vmatpush2.bf16.msra.mxu0 0
        %4991 = vmatprep.subr.bf16.mxu0 0
        %4992 = vmatpush2.bf16.msra.mxu0 0
        %4993 = vmatprep.subr.bf16.mxu0 0
        %4994 = vmatpush2.bf16.msra.mxu0 0
        %4995 = vmatprep.subr.bf16.mxu0 0
        %4996 = vmatpush2.bf16.msra.mxu0 0
        %4997 = vmatprep.subr.bf16.mxu0 0
        %4998 = vmatpush2.bf16.msra.mxu0 0
        %4999 = vmatprep.subr.bf16.mxu0 0
        %5000 = vmatpush2.bf16.msra.mxu0 0
        %5001 = vmatprep.subr.bf16.mxu0 0
        %5002 = vmatpush2.bf16.msra.mxu0 0
        %5003 = vmatprep.mubr.bf16.mxu0 0
        %5004 = vmatmul.mubr.bf16.gmra.mxu0 %v4500
        %v5005 = vpop.f32.mrf.mxu0
        %v5006 = vadd.f32 0.0, %v5005
        %v5007 = vpop.f32.mrf.mxu0
        %v5008 = vadd.f32 0.0, %v5007
        %v5009 = vpop.f32.mrf.mxu0
        %v5010 = vadd.f32 0.0, %v5009
        %v5011 = vpop.f32.mrf.mxu0
        %v5012 = vadd.f32 0.0, %v5011
        %5013 = vdwg.mxu0
        %5014 = vmatprep.subr.bf16.mxu0 %v4820
        %5015 = vmatpush1.bf16.msra.mxu0 %v4819
        %5016 = vmatprep.subr.bf16.mxu0 %v4812
        %5017 = vmatpush1.bf16.msra.mxu0 %v4811
        %5018 = vmatprep.subr.bf16.mxu0 %v4804
        %5019 = vmatpush1.bf16.msra.mxu0 %v4803
        %5020 = vmatprep.subr.bf16.mxu0 %v4796
        %5021 = vmatpush1.bf16.msra.mxu0 %v4795
        %5022 = vmatprep.subr.bf16.mxu0 %v4788
        %5023 = vmatpush1.bf16.msra.mxu0 %v4787
        %5024 = vmatprep.subr.bf16.mxu0 %v4780
        %5025 = vmatpush1.bf16.msra.mxu0 %v4779
        %5026 = vmatprep.subr.bf16.mxu0 %v4772
        %5027 = vmatpush1.bf16.msra.mxu0 %v4771
        %5028 = vmatprep.subr.bf16.mxu0 %v4764
        %5029 = vmatpush1.bf16.msra.mxu0 %v4763
        %5030 = vmatprep.subr.bf16.mxu0 0
        %5031 = vmatpush2.bf16.msra.mxu0 0
        %5032 = vmatprep.subr.bf16.mxu0 0
        %5033 = vmatpush2.bf16.msra.mxu0 0
        %5034 = vmatprep.subr.bf16.mxu0 0
        %5035 = vmatpush2.bf16.msra.mxu0 0
        %5036 = vmatprep.subr.bf16.mxu0 0
        %5037 = vmatpush2.bf16.msra.mxu0 0
        %5038 = vmatprep.subr.bf16.mxu0 0
        %5039 = vmatpush2.bf16.msra.mxu0 0
        %5040 = vmatprep.subr.bf16.mxu0 0
        %5041 = vmatpush2.bf16.msra.mxu0 0
        %5042 = vmatprep.subr.bf16.mxu0 0
        %5043 = vmatpush2.bf16.msra.mxu0 0
        %5044 = vmatprep.subr.bf16.mxu0 0
        %5045 = vmatpush2.bf16.msra.mxu0 0
        %5046 = vmatprep.mubr.bf16.mxu0 0
        %5047 = vmatmul.mubr.bf16.gmra.mxu0 %v4500
        %v5048 = vpop.f32.mrf.mxu0
        %v5049 = vadd.f32 0.0, %v5048
        %v5050 = vpop.f32.mrf.mxu0
        %v5051 = vadd.f32 0.0, %v5050
        %v5052 = vpop.f32.mrf.mxu0
        %v5053 = vadd.f32 0.0, %v5052
        %v5054 = vpop.f32.mrf.mxu0
        %v5055 = vadd.f32 0.0, %v5054
        %5056 = vdwg.mxu0
        %v5057 = vld [vmem:[%s762] sm:$0xff]
        %v5058 = vld [vmem:[%s762 + $0x8] sm:$0x3]
        %v5059 = vlaneseq
        %v5060 = vand.u32 %v5059, 127
        %v5061 = vadd.s32 %v5060, 128
        %v5062 = vadd.s32 %v5060, 256
        %v5063 = vadd.s32 %v5060, 384
        %v5064 = vadd.s32 %v5060, 512
        %v5065 = vadd.s32 %v5060, 640
        %v5066 = vadd.s32 %v5060, 768
        %v5067 = vadd.s32 %v5060, 896
        %5068 = vset.pattern.permute.xlu0 0
        %5069 = vperm.xlu0 %5068, %v5057
        %v5070 = vpop.permute.xlu0 %5069
        %5071 = vset.pattern.permute.xlu0 0
        %5072 = vperm.xlu0 %5071, %v5058
        %v5073 = vpop.permute.xlu0 %5072
        %vm5074 = vcmp.eq.s32.totalorder %v5060, %v5070
        %vm5075 = vcmp.eq.s32.totalorder %v5061, %v5070
        %vm5076 = vcmp.eq.s32.totalorder %v5062, %v5070
        %vm5077 = vcmp.eq.s32.totalorder %v5063, %v5070
        %vm5078 = vcmp.eq.s32.totalorder %v5064, %v5070
        %vm5079 = vcmp.eq.s32.totalorder %v5065, %v5070
        %vm5080 = vcmp.eq.s32.totalorder %v5066, %v5070
        %vm5081 = vcmp.eq.s32.totalorder %v5067, %v5070
        %vm5082 = vcmp.eq.s32.totalorder %v5060, %v5073
        %vm5083 = vcmp.eq.s32.totalorder %v5061, %v5073
        %vm5084 = vcmp.eq.s32.totalorder %v5062, %v5073
        %vm5085 = vcmp.eq.s32.totalorder %v5063, %v5073
        %vm5086 = vcmp.eq.s32.totalorder %v5064, %v5073
        %vm5087 = vcmp.eq.s32.totalorder %v5065, %v5073
        %vm5088 = vcmp.eq.s32.totalorder %v5066, %v5073
        %vm5089 = vcmp.eq.s32.totalorder %v5067, %v5073
        %v5090 = vsel %vm5074, 1, 0
        %v5091 = vsel %vm5075, 1, 0
        %v5092 = vsel %vm5076, 1, 0
        %v5093 = vsel %vm5077, 1, 0
        %v5094 = vsel %vm5078, 1, 0
        %v5095 = vsel %vm5079, 1, 0
        %v5096 = vsel %vm5080, 1, 0
        %v5097 = vsel %vm5081, 1, 0
        %v5098 = vsel %vm5082, 1, 0
        %v5099 = vsel %vm5083, 1, 0
        %v5100 = vsel %vm5084, 1, 0
        %v5101 = vsel %vm5085, 1, 0
        %v5102 = vsel %vm5086, 1, 0
        %v5103 = vsel %vm5087, 1, 0
        %v5104 = vsel %vm5088, 1, 0
        %v5105 = vsel %vm5089, 1, 0
        %v5106 = vcvt.s32.f32 %v5090
        %v5107 = vcvt.s32.f32 %v5091
        %v5108 = vcvt.s32.f32 %v5092
        %v5109 = vcvt.s32.f32 %v5093
        %v5110 = vcvt.s32.f32 %v5094
        %v5111 = vcvt.s32.f32 %v5095
        %v5112 = vcvt.s32.f32 %v5096
        %v5113 = vcvt.s32.f32 %v5097
        %v5114 = vcvt.s32.f32 %v5098
        %v5115 = vcvt.s32.f32 %v5099
        %v5116 = vcvt.s32.f32 %v5100
        %v5117 = vcvt.s32.f32 %v5101
        %v5118 = vcvt.s32.f32 %v5102
        %v5119 = vcvt.s32.f32 %v5103
        %v5120 = vcvt.s32.f32 %v5104
        %v5121 = vcvt.s32.f32 %v5105
        %v5122 = vmax.f32 %v4920, %v4963
        %v5123 = vmax.f32 %v4922, %v4965
        %v5124 = vmax.f32 %v5122, %v5006
        %v5125 = vmax.f32 %v5123, %v5008
        %v5126 = vmax.f32 %v5124, %v5049
        %v5127 = vmax.f32 %v5125, %v5051
        %v5128 = vmax.f32 %v5126, %v5127
        %5129 = vmax.xlane.f32.xlu0 %v5128
        %v5130 = vpop.xlane.xlu0 %5129
        %v5131 = vsel %vm2186, %v4924, -inf
        %v5132 = vsel %vm2186, %v4926, -inf
        %v5133 = vsel %vm2186, %v4967, -inf
        %v5134 = vmax.f32 %v5131, %v5133
        %v5135 = vsel %vm2186, %v4969, -inf
        %v5136 = vmax.f32 %v5132, %v5135
        %v5137 = vsel %vm2186, %v5010, -inf
        %v5138 = vmax.f32 %v5134, %v5137
        %v5139 = vsel %vm2186, %v5012, -inf
        %v5140 = vmax.f32 %v5136, %v5139
        %v5141 = vsel %vm2186, %v5053, -inf
        %v5142 = vmax.f32 %v5138, %v5141
        %v5143 = vsel %vm2186, %v5055, -inf
        %v5144 = vmax.f32 %v5140, %v5143
        %v5145 = vmax.f32 %v5142, %v5144
        %5146 = vmax.xlane.f32.xlu0 %v5145
        %v5147 = vpop.xlane.xlu0 %5146
        %v5148 = vsub.f32 %v4920, %v5130
        %v5149 = vsub.f32 %v4922, %v5130
        %v5150 = vsub.f32 %v4963, %v5130
        %v5151 = vsub.f32 %v4965, %v5130
        %v5152 = vsub.f32 %v5006, %v5130
        %v5153 = vsub.f32 %v5008, %v5130
        %v5154 = vsub.f32 %v5049, %v5130
        %v5155 = vsub.f32 %v5051, %v5130
        %v5156 = vsub.f32 %v4924, %v5147
        %v5157 = vsub.f32 %v4926, %v5147
        %v5158 = vsub.f32 %v4967, %v5147
        %v5159 = vsub.f32 %v4969, %v5147
        %v5160 = vsub.f32 %v5010, %v5147
        %v5161 = vsub.f32 %v5012, %v5147
        %v5162 = vsub.f32 %v5053, %v5147
        %v5163 = vsub.f32 %v5055, %v5147
        %v5164 = vmul.f32 %v5148, 1.442695
        %v5165 = vpow.pop %v5164
        %v5166 = vmul.f32 %v5149, 1.442695
        %v5167 = vpow.pop %v5166
        %v5168 = vmul.f32 %v5150, 1.442695
        %v5169 = vpow.pop %v5168
        %v5170 = vmul.f32 %v5151, 1.442695
        %v5171 = vpow.pop %v5170
        %v5172 = vmul.f32 %v5152, 1.442695
        %v5173 = vpow.pop %v5172
        %v5174 = vmul.f32 %v5153, 1.442695
        %v5175 = vpow.pop %v5174
        %v5176 = vmul.f32 %v5154, 1.442695
        %v5177 = vpow.pop %v5176
        %v5178 = vmul.f32 %v5155, 1.442695
        %v5179 = vpow.pop %v5178
        %v5180 = vmul.f32 %v5156, 1.442695
        %v5181 = vpow.pop %v5180
        %v5182 = vmul.f32 %v5157, 1.442695
        %v5183 = vpow.pop %v5182
        %v5184 = vmul.f32 %v5158, 1.442695
        %v5185 = vpow.pop %v5184
        %v5186 = vmul.f32 %v5159, 1.442695
        %v5187 = vpow.pop %v5186
        %v5188 = vmul.f32 %v5160, 1.442695
        %v5189 = vpow.pop %v5188
        %v5190 = vmul.f32 %v5161, 1.442695
        %v5191 = vpow.pop %v5190
        %v5192 = vmul.f32 %v5162, 1.442695
        %v5193 = vpow.pop %v5192
        %v5194 = vmul.f32 %v5163, 1.442695
        %v5195 = vpow.pop %v5194
        %v5196 = vadd.f32 %v5165, %v5167
        %v5197 = vadd.f32 %v5196, %v5169
        %v5198 = vadd.f32 %v5197, %v5171
        %v5199 = vadd.f32 %v5198, %v5173
        %v5200 = vadd.f32 %v5199, %v5175
        %v5201 = vadd.f32 %v5200, %v5177
        %v5202 = vadd.f32 %v5201, %v5179
        %5203 = vadd.xlane.f32.xlu0 %v5202
        %v5204 = vpop.xlane.xlu0 %5203
        %v5205 = vsel %vm2186, %v5181, 0.0
        %v5206 = vsel %vm2186, %v5183, 0.0
        %v5207 = vadd.f32 %v5205, %v5206
        %v5208 = vsel %vm2186, %v5185, 0.0
        %v5209 = vadd.f32 %v5207, %v5208
        %v5210 = vsel %vm2186, %v5187, 0.0
        %v5211 = vadd.f32 %v5209, %v5210
        %v5212 = vsel %vm2186, %v5189, 0.0
        %v5213 = vadd.f32 %v5211, %v5212
        %v5214 = vsel %vm2186, %v5191, 0.0
        %v5215 = vadd.f32 %v5213, %v5214
        %v5216 = vsel %vm2186, %v5193, 0.0
        %v5217 = vadd.f32 %v5215, %v5216
        %v5218 = vsel %vm2186, %v5195, 0.0
        %v5219 = vadd.f32 %v5217, %v5218
        %5220 = vadd.xlane.f32.xlu0 %v5219
        %v5221 = vpop.xlane.xlu0 %5220
        %v5222 = vlog2.pop %v5204
        %v5223 = vmul.f32 %v5222, 0.6931472
        %v5224 = vlog2.pop %v5221
        %v5225 = vmul.f32 %v5224, 0.6931472
        %v5226 = vadd.f32 %v5130, %v5223
        %v5227 = vadd.f32 %v5147, %v5225
        %v5228 = vmul.f32 %v4920, %v5106
        %v5229 = vmul.f32 %v4922, %v5107
        %v5230 = vmul.f32 %v4963, %v5108
        %v5231 = vmul.f32 %v4965, %v5109
        %v5232 = vmul.f32 %v5006, %v5110
        %v5233 = vmul.f32 %v5008, %v5111
        %v5234 = vmul.f32 %v5049, %v5112
        %v5235 = vmul.f32 %v5051, %v5113
        %v5236 = vmul.f32 %v4924, %v5114
        %v5237 = vmul.f32 %v4926, %v5115
        %v5238 = vmul.f32 %v4967, %v5116
        %v5239 = vmul.f32 %v4969, %v5117
        %v5240 = vmul.f32 %v5010, %v5118
        %v5241 = vmul.f32 %v5012, %v5119
        %v5242 = vmul.f32 %v5053, %v5120
        %v5243 = vmul.f32 %v5055, %v5121
        %v5244 = vadd.f32 %v5228, %v5229
        %v5245 = vadd.f32 %v5244, %v5230
        %v5246 = vadd.f32 %v5245, %v5231
        %v5247 = vadd.f32 %v5246, %v5232
        %v5248 = vadd.f32 %v5247, %v5233
        %v5249 = vadd.f32 %v5248, %v5234
        %v5250 = vadd.f32 %v5249, %v5235
        %5251 = vadd.xlane.f32.xlu0 %v5250
        %v5252 = vpop.xlane.xlu0 %5251
        %v5253 = vsel %vm2186, %v5236, 0.0
        %v5254 = vsel %vm2186, %v5237, 0.0
        %v5255 = vadd.f32 %v5253, %v5254
        %v5256 = vsel %vm2186, %v5238, 0.0
        %v5257 = vadd.f32 %v5255, %v5256
        %v5258 = vsel %vm2186, %v5239, 0.0
        %v5259 = vadd.f32 %v5257, %v5258
        %v5260 = vsel %vm2186, %v5240, 0.0
        %v5261 = vadd.f32 %v5259, %v5260
        %v5262 = vsel %vm2186, %v5241, 0.0
        %v5263 = vadd.f32 %v5261, %v5262
        %v5264 = vsel %vm2186, %v5242, 0.0
        %v5265 = vadd.f32 %v5263, %v5264
        %v5266 = vsel %vm2186, %v5243, 0.0
        %v5267 = vadd.f32 %v5265, %v5266
        %5268 = vadd.xlane.f32.xlu0 %v5267
        %v5269 = vpop.xlane.xlu0 %5268
        %vm5270 = vcmp.ne.s32.totalorder %v5057, 4294967196
        %vm5271 = vcmp.ne.s32.totalorder %v5058, 4294967196
        %v5272 = vsel %vm5270, 1, 0
        %v5273 = vsel %vm5271, 1, 0
        %v5274 = vcvt.s32.f32 %v5272
        %v5275 = vcvt.s32.f32 %v5273
        %v5276 = vsub.f32 %v5226, %v5252
        %v5277 = vsub.f32 %v5227, %v5269
        %v5278 = vmul.f32 %v5274, %v5276
        %v5279 = vmul.f32 %v5275, %v5277
        %vm5280 = vcmask 7168
        %v5281 = vsel %vm5280, %v5278, 0.0
        %vm5282 = vcmask 1024
        %v5283 = vsel %vm5282, %v5279, 0.0
        %v5284 = vadd.f32 %v5281, %v5283
        %5285 = vadd.xlane.f32.xlu0 %v5284
        %v5286 = vpop.xlane.xlu0 %5285
        %v5287 = vrot.slane %v5286, 4
        %v5288 = vadd.f32 %v5286, %v5287
        %v5289 = vrot.slane %v5288, 2
        %v5290 = vadd.f32 %v5288, %v5289
        %v5291 = vrot.slane %v5290, 1
        %v5292 = vadd.f32 %v5290, %v5291
        %s5293 = vtos %v5292
        %v5294 = vstv %s5293
        %vm5295 = vcmask 0
        %5296 = vst.msk [vmem:[%s765] sm:$0x1] %vm5295, %v5294
        %v5297 = vsel %vm5280, %v5274, 0.0
        %v5298 = vsel %vm5282, %v5275, 0.0
        %v5299 = vadd.f32 %v5297, %v5298
        %5300 = vadd.xlane.f32.xlu0 %v5299
        %v5301 = vpop.xlane.xlu0 %5300
        %v5302 = vrot.slane %v5301, 4
        %v5303 = vadd.f32 %v5301, %v5302
        %v5304 = vrot.slane %v5303, 2
        %v5305 = vadd.f32 %v5303, %v5304
        %v5306 = vrot.slane %v5305, 1
        %v5307 = vadd.f32 %v5305, %v5306
        %s5308 = vtos %v5307
        %v5309 = vstv %s5308
        %5310 = vst.msk [vmem:[%s768] sm:$0x1] %vm5295, %v5309
        %p5311 = scmp.lt.s32.totalorder %s36, 1
        %s5312 = scalar_select %p5311, %s36, 1
        %s5313 = scalar_lea.vmem %s20, %s5312
        %p5314 = scmp.lt.s32.totalorder %s36, 1
        %s5315 = scalar_select %p5314, %s36, 1
        %s5316 = scalar_lea.vmem %s21, %s5315
        // Predicated region
        $region121: #{tpu_custom_call.1} parent=99 // pred_check
          %p5317 = pneg %p489
        $region122: #{tpu_custom_call.1} parent=99 // pred_check_branch
          %5319 = sbr.rel (%p5317) target = $region124
        $region123: #{tpu_custom_call.1} parent=99 // pred_region
          _
        $region124: #{tpu_custom_call.1} parent=99 // pred_fallthru
          _
        // Predicated region
        $region125: #{tpu_custom_call.1} parent=99 // pred_check
          %p5320 = pneg %p515
        $region126: #{tpu_custom_call.1} parent=99 // pred_check_branch
          %5322 = sbr.rel (%p5320) target = $region128
        $region127: #{tpu_custom_call.1} parent=99 // pred_region
          _
        $region128: #{tpu_custom_call.1} parent=99 // pred_fallthru
          _
      $region100: #{tpu_custom_call.1} parent=5 // pred_fallthru
        _
      %p5323 = scmp.le.s32.totalorder 2, %s31
      // Predicated region
      $region129: #{tpu_custom_call.1} parent=5 // pred_check
        %p5324 = pneg %p5323
      $region130: #{tpu_custom_call.1} parent=5 // pred_check_branch
        %5326 = sbr.rel (%p5324) target = $region132
      $region131: #{tpu_custom_call.1} parent=5 // pred_region
        %s5327 = ssub.s32 %s31, 2
        // Predicated region
        $region133: #{tpu_custom_call.1} parent=131 // pred_check
          %p5328 = pneg %p495
        $region134: #{tpu_custom_call.1} parent=131 // pred_check_branch
          %5330 = sbr.rel (%p5328) target = $region136
        $region135: #{tpu_custom_call.1} parent=131 // pred_region
          %p5331 = scmp.lt.s32.totalorder %s37, 1
          %s5332 = scalar_select %p5331, %s37, 1
          %s5333 = scalar_lea.vmem %s20, %s5332
        $region136: #{tpu_custom_call.1} parent=131 // pred_fallthru
          _
        // Predicated region
        $region137: #{tpu_custom_call.1} parent=131 // pred_check
          %p5334 = pneg %p521
        $region138: #{tpu_custom_call.1} parent=131 // pred_check_branch
          %5336 = sbr.rel (%p5334) target = $region140
        $region139: #{tpu_custom_call.1} parent=131 // pred_region
          %p5337 = scmp.lt.s32.totalorder %s37, 1
          %s5338 = scalar_select %p5337, %s37, 1
          %s5339 = scalar_lea.vmem %s21, %s5338
        $region140: #{tpu_custom_call.1} parent=131 // pred_fallthru
          _
      $region132: #{tpu_custom_call.1} parent=5 // pred_fallthru
        _
    $region6: #{tpu_custom_call.1} parent=1 // loop_footer
      %s35 = sadd.s32 1, %s31
    $region7: #{tpu_custom_call.1} parent=1 // loop_footer_branch
      %30 = sbr.rel target = $region3
    $region8: #{tpu_custom_call.1} parent=1 // loop_exit
      _
    %5340 = vsyncpa [#allocation3], 1
    %s5341 = scalar_lea.sflag [#allocation3], 1
    %5342 = vsyncpa %s5341, 1
    %5343 = vsyncpa [#allocation5], 1
    %5344 = vsyncpa [#allocation8], 1

</llo_original>
